<compile_context>
chip_gen: v7x
topology: tpu7x:2x2x1
jax: 0.10.0
libtpu: 0.0.40
codegen_flags: <defaults>
</compile_context>

<pallas_src>
import functools
import math

import jax
import jax.numpy as jnp
from jax.experimental import pallas as pl
from jax.experimental.pallas import tpu as pltpu

_GELU_C = math.sqrt(2.0 / math.pi)
_NEG_INF = -1e30  # large-negative instead of -inf: exp() underflows to exactly 0


# --------------------------------------------------------------------------- #
# Tiling helpers
# --------------------------------------------------------------------------- #

def _pick_tile(dim, cap, quantum):
    """Largest tile <= cap that divides `dim` and is a multiple of `quantum`
    (falls back to the full dim, which is always a legal TPU block)."""
    if dim <= cap:
        return dim
    t = (cap // quantum) * quantum
    while t >= quantum:
        if dim % t == 0:
            return t
        t -= quantum
    return dim


def _pick_head_group(n_head, head_dim):
    """Smallest group of heads whose combined width is 128-lane dense."""
    for g in range(1, n_head + 1):
        if n_head % g == 0 and (g * head_dim) % 128 == 0:
            return g
    return n_head  # tiny configs: fall back to all heads per grid step


# --------------------------------------------------------------------------- #
# Tiled linear kernel:  y = act(x @ w + b)
# --------------------------------------------------------------------------- #

def _linear_kernel(x_ref, w_ref, b_ref, o_ref, acc_ref, *, activation):
    # grid = (M/tm, N/tn, K/tk); K axis is the reduction ("arbitrary") axis.
    @pl.when(pl.program_id(2) == 0)
    def _init():
        acc_ref[...] = jnp.zeros_like(acc_ref)

    acc_ref[...] += jnp.dot(x_ref[...], w_ref[...],
                            preferred_element_type=jnp.float32)

    @pl.when(pl.program_id(2) == pl.num_programs(2) - 1)
    def _finalize():
        y = acc_ref[...] + b_ref[...]
        if activation == "gelu_tanh":
            y = 0.5 * y * (1.0 + jnp.tanh(_GELU_C * (y + 0.044715 * y * y * y)))
        o_ref[...] = y.astype(o_ref.dtype)


def pallas_linear(x2d, w, b=None, activation=None,
                  tm_cap=256, tn_cap=512, tk_cap=512):
    """Tiled, double-buffered matmul.  Tile caps keep the double-buffered working
    set around ~5 MiB (f32), comfortably inside the scoped-VMEM limit on v5e
    (16 MiB default), v6e (32 MiB) and v7x (32 MiB of 64 MiB physical); lane
    dims are multiples of 128 so output stores are unmasked vst."""
    M, K = x2d.shape
    K2, N = w.shape
    assert K == K2
    if b is None:
        b = jnp.zeros((N,), x2d.dtype)

    tm = _pick_tile(M, tm_cap, 8)
    tk = _pick_tile(K, tk_cap, 128)
    tn = _pick_tile(N, tn_cap, 128)
    grid = (M // tm, N // tn, K // tk)

    kernel = functools.partial(_linear_kernel, activation=activation)
    return pl.pallas_call(
        kernel,
        out_shape=jax.ShapeDtypeStruct((M, N), x2d.dtype),
        grid_spec=pltpu.PrefetchScalarGridSpec(
            num_scalar_prefetch=0,
            grid=grid,
            in_specs=[
                pl.BlockSpec((tm, tk), lambda i, j, k: (i, k)),
                pl.BlockSpec((tk, tn), lambda i, j, k: (k, j)),
                pl.BlockSpec((1, tn), lambda i, j, k: (0, j)),
            ],
            out_specs=pl.BlockSpec((tm, tn), lambda i, j, k: (i, j)),
            scratch_shapes=[pltpu.VMEM((tm, tn), jnp.float32)],
        ),
        compiler_params=pltpu.CompilerParams(
            dimension_semantics=("parallel", "parallel", "arbitrary"),
            vmem_limit_bytes=32 * 1024 * 1024,
        ),
    )(x2d, w, b.reshape(1, N))


# --------------------------------------------------------------------------- #
# LayerNorm kernel
# --------------------------------------------------------------------------- #

def _layernorm_kernel(x_ref, g_ref, b_ref, o_ref):
    x = x_ref[...].astype(jnp.float32)
    mu = jnp.mean(x, axis=-1, keepdims=True)
    xc = x - mu
    var = jnp.mean(xc * xc, axis=-1, keepdims=True)
    inv = jax.lax.rsqrt(var + 1e-5)
    o_ref[...] = ((xc * inv) * g_ref[...] + b_ref[...]).astype(o_ref.dtype)


def pallas_layernorm(x, g, b):
    B, T, C = x.shape
    M = B * T
    x2 = x.reshape(M, C)
    tm = _pick_tile(M, 256, 8)
    out = pl.pallas_call(
        _layernorm_kernel,
        out_shape=jax.ShapeDtypeStruct((M, C), x.dtype),
        grid=(M // tm,),
        in_specs=[
            pl.BlockSpec((tm, C), lambda i: (i, 0)),
            pl.BlockSpec((1, C), lambda i: (0, 0)),
            pl.BlockSpec((1, C), lambda i: (0, 0)),
        ],
        out_specs=pl.BlockSpec((tm, C), lambda i: (i, 0)),
        compiler_params=pltpu.CompilerParams(
            dimension_semantics=("parallel",)),
    )(x2, g.reshape(1, C), b.reshape(1, C))
    return out.reshape(B, T, C)


# --------------------------------------------------------------------------- #
# Head-grouped causal attention kernel
# --------------------------------------------------------------------------- #

def _attn_kernel(q_ref, k_ref, v_ref, bias_ref, o_ref, *,
                 n_group, head_dim, scale):
    # q/k/v refs are (1, T, G*hd) slabs sliced directly out of the packed qkv
    # activation; bias is the (T, T) additive causal mask (constant index_map =>
    # DMA'd once and reused by every grid step).
    bias = bias_ref[...]
    outs = []
    for h in range(n_group):  # short static loop, unrolled at trace time
        lo = h * head_dim
        hi = lo + head_dim
        q = q_ref[0, :, lo:hi]
        k = k_ref[0, :, lo:hi]
        v = v_ref[0, :, lo:hi]
        # q @ k^T without an in-kernel transpose: contract on the head dim.
        att = jax.lax.dot_general(
            q, k, (((1,), (1,)), ((), ())),
            preferred_element_type=jnp.float32) * scale + bias
        att = att - jnp.max(att, axis=-1, keepdims=True)
        e = jnp.exp(att)
        denom = jnp.sum(e, axis=-1, keepdims=True)
        r = pl.reciprocal(denom, approx=True)   # EUP slot
        r = r * (2.0 - denom * r)               # one Newton step -> ~f32 exact
        p = e * r
        outs.append(jnp.dot(p, v, preferred_element_type=jnp.float32))
    # single lane-dense store of the whole head group
    o_ref[0, :, :] = jnp.concatenate(outs, axis=-1).astype(o_ref.dtype)


def causal_self_attention(x, w_attn, b_attn, w_proj, b_proj, n_head, attn_bias):
    B, T, C = x.shape
    hd = C // n_head

    # qkv projection (tiled Pallas matmul) -> packed (B, T, 3C)
    qkv = pallas_linear(x.reshape(B * T, C), w_attn, b_attn).reshape(B, T, 3 * C)

    G = _pick_head_group(n_head, hd)   # e.g. hd=64 -> G=2 (128-lane dense blocks)
    n_hg = n_head // G
    gw = G * hd

    # TODO(synk): for T beyond ~1-2K, switch to a flash-style kv-tiled grid axis
    # with online-softmax scratch instead of materializing the full (T, T) scores.
    y = pl.pallas_call(
        functools.partial(_attn_kernel, n_group=G, head_dim=hd,
                          scale=1.0 / math.sqrt(hd)),
        out_shape=jax.ShapeDtypeStruct((B, T, C), x.dtype),
        grid=(B, n_hg),
        in_specs=[
            # q, k, v slabs read straight out of the packed qkv activation
            pl.BlockSpec((1, T, gw), lambda b, g: (b, 0, g)),
            pl.BlockSpec((1, T, gw), lambda b, g: (b, 0, n_hg + g)),
            pl.BlockSpec((1, T, gw), lambda b, g: (b, 0, 2 * n_hg + g)),
            # hoisted additive causal mask, shared by all grid steps
            pl.BlockSpec((T, T), lambda b, g: (0, 0)),
        ],
        out_specs=pl.BlockSpec((1, T, gw), lambda b, g: (b, 0, g)),
        compiler_params=pltpu.CompilerParams(
            dimension_semantics=("parallel", "parallel"),
            vmem_limit_bytes=32 * 1024 * 1024,
        ),
    )(qkv, qkv, qkv, attn_bias)

    # output projection (tiled Pallas matmul)
    return pallas_linear(y.reshape(B * T, C), w_proj, b_proj).reshape(B, T, C)


def pallas_mlp(x, w_fc, b_fc, w_proj, b_proj):
    B, T, C = x.shape
    h = pallas_linear(x.reshape(B * T, C), w_fc, b_fc, activation="gelu_tanh")
    return pallas_linear(h, w_proj, b_proj).reshape(B, T, C)


# --------------------------------------------------------------------------- #
# GPT forward (Pallas)
# --------------------------------------------------------------------------- #

def gpt_forward(params, idx, n_head):
    B, T = idx.shape
    C = params['wte'].shape[1]

    # TODO(synk): token/position embedding gather stays in XLA (jnp.take); a
    # Pallas scalar-prefetch gather kernel is not worthwhile at these sizes.
    x = jnp.take(params['wte'], idx, axis=0) + params['wpe'][:T][None, :, :]

    # Additive causal mask built once (outside all kernels) and reused everywhere.
    row = jax.lax.broadcasted_iota(jnp.int32, (T, T), 0)
    col = jax.lax.broadcasted_iota(jnp.int32, (T, T), 1)
    attn_bias = jnp.where(col <= row, 0.0, _NEG_INF).astype(jnp.float32)

    for blk in params['blocks']:
        h = pallas_layernorm(x, blk['ln1_g'], blk['ln1_b'])
        x = x + causal_self_attention(h, blk['w_attn'], blk['b_attn'],
                                      blk['w_attn_proj'], blk['b_attn_proj'],
                                      n_head, attn_bias)
        h = pallas_layernorm(x, blk['ln2_g'], blk['ln2_b'])
        x = x + pallas_mlp(h, blk['w_fc'], blk['b_fc'],
                           blk['w_mlp_proj'], blk['b_mlp_proj'])

    x = pallas_layernorm(x, params['lnf_g'], params['lnf_b'])
    # Tied lm_head (no bias): logits = x @ wte.T (one-off XLA transpose of wte).
    logits = pallas_linear(x.reshape(B * T, C), params['wte'].T)
    return logits.reshape(B, T, -1)


# --------------------------------------------------------------------------- #
# Pure-JAX reference (matches the PyTorch module math)
# --------------------------------------------------------------------------- #

def _gelu_tanh(x):
    return 0.5 * x * (1.0 + jnp.tanh(_GELU_C * (x + 0.044715 * x ** 3)))


def _reference_gpt(params, idx, n_head):
    B, T = idx.shape
    C = params['wte'].shape[1]
    hd = C // n_head

    def ln(x, g, b):
        mu = jnp.mean(x, -1, keepdims=True)
        var = jnp.mean((x - mu) ** 2, -1, keepdims=True)
        return (x - mu) * jax.lax.rsqrt(var + 1e-5) * g + b

    x = jnp.take(params['wte'], idx, axis=0) + params['wpe'][:T][None]
    mask = jnp.tril(jnp.ones((T, T), dtype=bool))
    for blk in params['blocks']:
        h = ln(x, blk['ln1_g'], blk['ln1_b'])
        qkv = h @ blk['w_attn'] + blk['b_attn']
        q, k, v = jnp.split(qkv, 3, axis=2)
        q = q.reshape(B, T, n_head, hd).transpose(0, 2, 1, 3)
        k = k.reshape(B, T, n_head, hd).transpose(0, 2, 1, 3)
        v = v.reshape(B, T, n_head, hd).transpose(0, 2, 1, 3)
        att = (q @ jnp.swapaxes(k, -1, -2)) * (1.0 / math.sqrt(hd))
        att = jnp.where(mask[None, None], att, -jnp.inf)
        att = jax.nn.softmax(att, axis=-1)
        y = (att @ v).transpose(0, 2, 1, 3).reshape(B, T, C)
        x = x + (y @ blk['w_attn_proj'] + blk['b_attn_proj'])
        h = ln(x, blk['ln2_g'], blk['ln2_b'])
        m = _gelu_tanh(h @ blk['w_fc'] + blk['b_fc'])
        x = x + (m @ blk['w_mlp_proj'] + blk['b_mlp_proj'])
    x = ln(x, params['lnf_g'], params['lnf_b'])
    return x @ params['wte'].T


# --------------------------------------------------------------------------- #
# Main
# --------------------------------------------------------------------------- #

def init_params(key, n_layer, n_head, n_embd, block_size, vocab):
    keys = jax.random.split(key, 4 + 12 * n_layer)
    it = iter(keys)
    std = 0.02
    proj_std = 0.02 * (2 * n_layer) ** -0.5

    def nrm(k, shape, s=std):
        return s * jax.random.normal(k, shape, jnp.float32)

    params = {
        'wte': nrm(next(it), (vocab, n_embd)),
        'wpe': nrm(next(it), (block_size, n_embd)),
        'lnf_g': 1.0 + 0.1 * jax.random.normal(next(it), (n_embd,), jnp.float32),
        'lnf_b': 0.1 * jax.random.normal(next(it), (n_embd,), jnp.float32),
        'blocks': [],
    }
    for _ in range(n_layer):
        params['blocks'].append({
            'ln1_g': 1.0 + 0.1 * jax.random.normal(next(it), (n_embd,), jnp.float32),
            'ln1_b': 0.1 * jax.random.normal(next(it), (n_embd,), jnp.float32),
            'w_attn': nrm(next(it), (n_embd, 3 * n_embd)),
            'b_attn': nrm(next(it), (3 * n_embd,)),
            'w_attn_proj': nrm(next(it), (n_embd, n_embd), proj_std),
            'b_attn_proj': nrm(next(it), (n_embd,)),
            'ln2_g': 1.0 + 0.1 * jax.random.normal(next(it), (n_embd,), jnp.float32),
            'ln2_b': 0.1 * jax.random.normal(next(it), (n_embd,), jnp.float32),
            'w_fc': nrm(next(it), (n_embd, 4 * n_embd)),
            'b_fc': nrm(next(it), (4 * n_embd,)),
            'w_mlp_proj': nrm(next(it), (4 * n_embd, n_embd), proj_std),
            'b_mlp_proj': nrm(next(it), (n_embd,)),
        })
    return params


if __name__ == "__main__":
    # Small GPT config that preserves the structure (n_embd % n_head == 0,
    # head_dim groups to 128 lanes): 2 layers, 4 heads, 128-dim embedding.
    B, T = 2, 16
    n_layer, n_head, n_embd, block_size, vocab = 2, 4, 128, 32, 512

    key = jax.random.PRNGKey(0)
    k_params, k_idx = jax.random.split(key, 2)
    params = init_params(k_params, n_layer, n_head, n_embd, block_size, vocab)
    idx = jax.random.randint(k_idx, (B, T), 0, vocab, dtype=jnp.int32)

    fwd = jax.jit(lambda p, i: gpt_forward(p, i, n_head))
    logits = jax.block_until_ready(fwd(params, idx))

    ref = _reference_gpt(params, idx, n_head)
    assert logits.shape == (B, T, vocab)
    assert jnp.allclose(logits, ref, atol=5e-4, rtol=5e-4), "mismatch vs reference"

    print("KERNEL_OK")
</pallas_src>

<mosaic_0001>
module attributes {stable_mosaic.version = 11 : i64} {
  func.func @_linear_kernel(%arg0: i32, %arg1: i32, %arg2: i32, %arg3: memref<32x128xf32, #tpu.memory_space<vmem>>, %arg4: memref<128x384xf32, #tpu.memory_space<vmem>>, %arg5: memref<1x384xf32, #tpu.memory_space<vmem>>, %arg6: memref<32x384xf32, #tpu.memory_space<vmem>>, %arg7: memref<32x384xf32, #tpu.memory_space<vmem>>) attributes {dimension_semantics = [#tpu.dimension_semantics<parallel>, #tpu.dimension_semantics<parallel>, #tpu.dimension_semantics<arbitrary>], iteration_bounds = array<i64: 1, 1, 1>, scalar_prefetch = 0 : i64, scratch_operands = 1 : i64, tpu.core_type = #tpu.core_type<tc>, window_params = [{transform_indices = @transform_0, window_bounds = array<i64: 32, 128>}, {transform_indices = @transform_1, window_bounds = array<i64: 128, 384>}, {transform_indices = @transform_2, window_bounds = array<i64: 1, 384>}, {transform_indices = @transform_3, window_bounds = array<i64: 32, 384>}]} {
    %c0_i32 = arith.constant 0 : i32
    %0 = arith.cmpi eq, %arg2, %c0_i32 : i32
    %1 = arith.extui %0 : i1 to i32
    %c0_i32_0 = arith.constant 0 : i32
    %2 = arith.cmpi ne, %1, %c0_i32_0 : i32
    scf.if %2 {
      %cst_10 = arith.constant 0.000000e+00 : f32
      %12 = vector.broadcast %cst_10 : f32 to vector<32x384xf32>
      %c0_11 = arith.constant 0 : index
      %c0_12 = arith.constant 0 : index
      %13 = vector.load %arg7[%c0_11, %c0_12] : memref<32x384xf32, #tpu.memory_space<vmem>>, vector<32x384xf32>
      tpu.vector_store %arg7[%c0_11, %c0_12], %12 {strides = array<i32>} : memref<32x384xf32, #tpu.memory_space<vmem>>, vector<32x384xf32>,
    } else {
    }
    %c0 = arith.constant 0 : index
    %c0_1 = arith.constant 0 : index
    %3 = vector.load %arg7[%c0, %c0_1] : memref<32x384xf32, #tpu.memory_space<vmem>>, vector<32x384xf32>
    %c0_2 = arith.constant 0 : index
    %c0_3 = arith.constant 0 : index
    %4 = vector.load %arg3[%c0_2, %c0_3] : memref<32x128xf32, #tpu.memory_space<vmem>>, vector<32x128xf32>
    %c0_4 = arith.constant 0 : index
    %c0_5 = arith.constant 0 : index
    %5 = vector.load %arg4[%c0_4, %c0_5] : memref<128x384xf32, #tpu.memory_space<vmem>>, vector<128x384xf32>
    %cst = arith.constant dense<0.000000e+00> : vector<32x384xf32>
    %6 = tpu.matmul %4, %5, %cst {dimension_numbers = #tpu.dot_dimension_numbers<[1], [0], [0], [1], [0, 0, 1, 1], [], []>} : vector<32x128xf32>, vector<128x384xf32>, vector<32x384xf32> -> vector<32x384xf32>
    %7 = arith.addf %3, %6 : vector<32x384xf32>
    %c0_6 = arith.constant 0 : index
    %c0_7 = arith.constant 0 : index
    %8 = vector.load %arg7[%c0_6, %c0_7] : memref<32x384xf32, #tpu.memory_space<vmem>>, vector<32x384xf32>
    tpu.vector_store %arg7[%c0_6, %c0_7], %7 {strides = array<i32>} : memref<32x384xf32, #tpu.memory_space<vmem>>, vector<32x384xf32>,
    %c0_i32_8 = arith.constant 0 : i32
    %9 = arith.cmpi eq, %arg2, %c0_i32_8 : i32
    %10 = arith.extui %9 : i1 to i32
    %c0_i32_9 = arith.constant 0 : i32
    %11 = arith.cmpi ne, %10, %c0_i32_9 : i32
    scf.if %11 {
      %c0_10 = arith.constant 0 : index
      %c0_11 = arith.constant 0 : index
      %12 = vector.load %arg7[%c0_10, %c0_11] : memref<32x384xf32, #tpu.memory_space<vmem>>, vector<32x384xf32>
      %c0_12 = arith.constant 0 : index
      %c0_13 = arith.constant 0 : index
      %13 = vector.load %arg5[%c0_12, %c0_13] : memref<1x384xf32, #tpu.memory_space<vmem>>, vector<1x384xf32>
      %14 = vector.broadcast %13 : vector<1x384xf32> to vector<32x384xf32>
      %15 = arith.addf %12, %14 : vector<32x384xf32>
      %c0_14 = arith.constant 0 : index
      %c0_15 = arith.constant 0 : index
      %16 = vector.load %arg6[%c0_14, %c0_15] : memref<32x384xf32, #tpu.memory_space<vmem>>, vector<32x384xf32>
      tpu.vector_store %arg6[%c0_14, %c0_15], %15 {strides = array<i32>} : memref<32x384xf32, #tpu.memory_space<vmem>>, vector<32x384xf32>,
    } else {
    }
    return
  }
  func.func @transform_0(%arg0: i32, %arg1: i32, %arg2: i32) -> (i32, i32) {
    %c0_i32 = arith.constant 0 : i32
    return %arg0, %arg2 : i32, i32
  }
  func.func @transform_1(%arg0: i32, %arg1: i32, %arg2: i32) -> (i32, i32) {
    %c0_i32 = arith.constant 0 : i32
    return %arg2, %arg1 : i32, i32
  }
  func.func @transform_2(%arg0: i32, %arg1: i32, %arg2: i32) -> (i32, i32) {
    %c0_i32 = arith.constant 0 : i32
    %c0_i32_0 = arith.constant 0 : i32
    return %c0_i32, %arg1 : i32, i32
  }
  func.func @transform_3(%arg0: i32, %arg1: i32, %arg2: i32) -> (i32, i32) {
    %c0_i32 = arith.constant 0 : i32
    return %arg0, %arg1 : i32, i32
  }
}

module attributes {stable_mosaic.version = 11 : i64} {
  func.func @_layernorm_kernel(%arg0: i32, %arg1: memref<32x128xf32, #tpu.memory_space<vmem>>, %arg2: memref<1x128xf32, #tpu.memory_space<vmem>>, %arg3: memref<1x128xf32, #tpu.memory_space<vmem>>, %arg4: memref<32x128xf32, #tpu.memory_space<vmem>>) attributes {dimension_semantics = [#tpu.dimension_semantics<parallel>], iteration_bounds = array<i64: 1>, scalar_prefetch = 0 : i64, scratch_operands = 0 : i64, tpu.core_type = #tpu.core_type<tc>, window_params = [{transform_indices = @transform_0, window_bounds = array<i64: 32, 128>}, {pipeline_mode = #tpu.pipeline_mode<synchronous>, transform_indices = @transform_1, window_bounds = array<i64: 1, 128>}, {pipeline_mode = #tpu.pipeline_mode<synchronous>, transform_indices = @transform_2, window_bounds = array<i64: 1, 128>}, {transform_indices = @transform_3, window_bounds = array<i64: 32, 128>}]} {
    %c0 = arith.constant 0 : index
    %c0_0 = arith.constant 0 : index
    %0 = vector.load %arg1[%c0, %c0_0] : memref<32x128xf32, #tpu.memory_space<vmem>>, vector<32x128xf32>
    %cst = arith.constant dense<0.000000e+00> : vector<32xf32>
    %1 = vector.multi_reduction <add>, %0, %cst [1] : vector<32x128xf32> to vector<32xf32>
    %2 = vector.shape_cast %1 : vector<32xf32> to vector<32x1xf32>
    %cst_1 = arith.constant 1.280000e+02 : f32
    %3 = vector.broadcast %cst_1 : f32 to vector<32x1xf32>
    %4 = arith.divf %2, %3 : vector<32x1xf32>
    %5 = vector.broadcast %4 : vector<32x1xf32> to vector<32x128xf32>
    %6 = arith.subf %0, %5 : vector<32x128xf32>
    %7 = arith.mulf %6, %6 : vector<32x128xf32>
    %cst_2 = arith.constant dense<0.000000e+00> : vector<32xf32>
    %8 = vector.multi_reduction <add>, %7, %cst_2 [1] : vector<32x128xf32> to vector<32xf32>
    %9 = vector.shape_cast %8 : vector<32xf32> to vector<32x1xf32>
    %cst_3 = arith.constant 1.280000e+02 : f32
    %10 = vector.broadcast %cst_3 : f32 to vector<32x1xf32>
    %11 = arith.divf %9, %10 : vector<32x1xf32>
    %cst_4 = arith.constant 9.99999974E-6 : f32
    %12 = vector.broadcast %cst_4 : f32 to vector<32x1xf32>
    %13 = arith.addf %11, %12 : vector<32x1xf32>
    %14 = math.rsqrt %13 : vector<32x1xf32>
    %15 = vector.broadcast %14 : vector<32x1xf32> to vector<32x128xf32>
    %16 = arith.mulf %6, %15 : vector<32x128xf32>
    %c0_5 = arith.constant 0 : index
    %c0_6 = arith.constant 0 : index
    %17 = vector.load %arg2[%c0_5, %c0_6] : memref<1x128xf32, #tpu.memory_space<vmem>>, vector<1x128xf32>
    %18 = vector.broadcast %17 : vector<1x128xf32> to vector<32x128xf32>
    %19 = arith.mulf %16, %18 : vector<32x128xf32>
    %c0_7 = arith.constant 0 : index
    %c0_8 = arith.constant 0 : index
    %20 = vector.load %arg3[%c0_7, %c0_8] : memref<1x128xf32, #tpu.memory_space<vmem>>, vector<1x128xf32>
    %21 = vector.broadcast %20 : vector<1x128xf32> to vector<32x128xf32>
    %22 = arith.addf %19, %21 : vector<32x128xf32>
    %c0_9 = arith.constant 0 : index
    %c0_10 = arith.constant 0 : index
    %23 = vector.load %arg4[%c0_9, %c0_10] : memref<32x128xf32, #tpu.memory_space<vmem>>, vector<32x128xf32>
    tpu.vector_store %arg4[%c0_9, %c0_10], %22 {strides = array<i32>} : memref<32x128xf32, #tpu.memory_space<vmem>>, vector<32x128xf32>,
    return
  }
  func.func @transform_0(%arg0: i32) -> (i32, i32) {
    %c0_i32 = arith.constant 0 : i32
    %c0_i32_0 = arith.constant 0 : i32
    return %arg0, %c0_i32 : i32, i32
  }
  func.func @transform_1(%arg0: i32) -> (i32, i32) {
    %c0_i32 = arith.constant 0 : i32
    %c0_i32_0 = arith.constant 0 : i32
    %c0_i32_1 = arith.constant 0 : i32
    return %c0_i32, %c0_i32_0 : i32, i32
  }
  func.func @transform_2(%arg0: i32) -> (i32, i32) {
    %c0_i32 = arith.constant 0 : i32
    %c0_i32_0 = arith.constant 0 : i32
    %c0_i32_1 = arith.constant 0 : i32
    return %c0_i32, %c0_i32_0 : i32, i32
  }
  func.func @transform_3(%arg0: i32) -> (i32, i32) {
    %c0_i32 = arith.constant 0 : i32
    %c0_i32_0 = arith.constant 0 : i32
    return %arg0, %c0_i32 : i32, i32
  }
}

module attributes {stable_mosaic.version = 11 : i64} {
  func.func @_attn_kernel(%arg0: i32, %arg1: i32, %arg2: memref<1x16x128xf32, #tpu.memory_space<vmem>>, %arg3: memref<1x16x128xf32, #tpu.memory_space<vmem>>, %arg4: memref<1x16x128xf32, #tpu.memory_space<vmem>>, %arg5: memref<16x16xf32, #tpu.memory_space<vmem>>, %arg6: memref<1x16x128xf32, #tpu.memory_space<vmem>>) attributes {dimension_semantics = [#tpu.dimension_semantics<parallel>, #tpu.dimension_semantics<parallel>], iteration_bounds = array<i64: 2, 1>, scalar_prefetch = 0 : i64, scratch_operands = 0 : i64, tpu.core_type = #tpu.core_type<tc>, window_params = [{transform_indices = @transform_0, window_bounds = array<i64: 1, 16, 128>}, {transform_indices = @transform_1, window_bounds = array<i64: 1, 16, 128>}, {transform_indices = @transform_2, window_bounds = array<i64: 1, 16, 128>}, {pipeline_mode = #tpu.pipeline_mode<synchronous>, transform_indices = @transform_3, window_bounds = array<i64: 16, 16>}, {transform_indices = @transform_4, window_bounds = array<i64: 1, 16, 128>}]} {
    %c0 = arith.constant 0 : index
    %c0_0 = arith.constant 0 : index
    %0 = vector.load %arg5[%c0, %c0_0] : memref<16x16xf32, #tpu.memory_space<vmem>>, vector<16x16xf32>
    %c0_1 = arith.constant 0 : index
    %c0_2 = arith.constant 0 : index
    %c0_3 = arith.constant 0 : index
    %1 = vector.load %arg2[%c0_1, %c0_2, %c0_3] : memref<1x16x128xf32, #tpu.memory_space<vmem>>, vector<1x16x32xf32>
    %2 = vector.shape_cast %1 : vector<1x16x32xf32> to vector<16x32xf32>
    %c0_4 = arith.constant 0 : index
    %c0_5 = arith.constant 0 : index
    %c0_6 = arith.constant 0 : index
    %3 = vector.load %arg3[%c0_4, %c0_5, %c0_6] : memref<1x16x128xf32, #tpu.memory_space<vmem>>, vector<1x16x32xf32>
    %4 = vector.shape_cast %3 : vector<1x16x32xf32> to vector<16x32xf32>
    %c0_7 = arith.constant 0 : index
    %c0_8 = arith.constant 0 : index
    %c0_9 = arith.constant 0 : index
    %5 = vector.load %arg4[%c0_7, %c0_8, %c0_9] : memref<1x16x128xf32, #tpu.memory_space<vmem>>, vector<1x16x32xf32>
    %6 = vector.shape_cast %5 : vector<1x16x32xf32> to vector<16x32xf32>
    %cst = arith.constant dense<0.000000e+00> : vector<16x16xf32>
    %7 = tpu.matmul %2, %4, %cst {dimension_numbers = #tpu.dot_dimension_numbers<[1], [1], [0], [0], [0, 0, 1, 0], [], []>} : vector<16x32xf32>, vector<16x32xf32>, vector<16x16xf32> -> vector<16x16xf32>
    %cst_10 = arith.constant 0.176776692 : f32
    %8 = vector.broadcast %cst_10 : f32 to vector<16x16xf32>
    %9 = arith.mulf %7, %8 : vector<16x16xf32>
    %10 = arith.addf %9, %0 : vector<16x16xf32>
    %cst_11 = arith.constant dense<0xFF800000> : vector<16xf32>
    %11 = vector.multi_reduction <maximumf>, %10, %cst_11 [1] : vector<16x16xf32> to vector<16xf32>
    %12 = vector.shape_cast %11 : vector<16xf32> to vector<16x1xf32>
    %13 = vector.broadcast %12 : vector<16x1xf32> to vector<16x16xf32>
    %14 = arith.subf %10, %13 : vector<16x16xf32>
    %15 = math.exp %14 : vector<16x16xf32>
    %cst_12 = arith.constant dense<0.000000e+00> : vector<16xf32>
    %16 = vector.multi_reduction <add>, %15, %cst_12 [1] : vector<16x16xf32> to vector<16xf32>
    %17 = vector.shape_cast %16 : vector<16xf32> to vector<16x1xf32>
    %18 = tpu.reciprocal %17 {approx = true} : vector<16x1xf32> -> vector<16x1xf32>
    %19 = arith.mulf %17, %18 : vector<16x1xf32>
    %cst_13 = arith.constant 2.000000e+00 : f32
    %20 = vector.broadcast %cst_13 : f32 to vector<16x1xf32>
    %21 = arith.subf %20, %19 : vector<16x1xf32>
    %22 = arith.mulf %18, %21 : vector<16x1xf32>
    %23 = vector.broadcast %22 : vector<16x1xf32> to vector<16x16xf32>
    %24 = arith.mulf %15, %23 : vector<16x16xf32>
    %cst_14 = arith.constant dense<0.000000e+00> : vector<16x32xf32>
    %25 = tpu.matmul %24, %6, %cst_14 {dimension_numbers = #tpu.dot_dimension_numbers<[1], [0], [0], [1], [0, 0, 1, 1], [], []>} : vector<16x16xf32>, vector<16x32xf32>, vector<16x32xf32> -> vector<16x32xf32>
    %c0_15 = arith.constant 0 : index
    %c0_16 = arith.constant 0 : index
    %c32 = arith.constant 32 : index
    %26 = vector.load %arg2[%c0_15, %c0_16, %c32] : memref<1x16x128xf32, #tpu.memory_space<vmem>>, vector<1x16x32xf32>
    %27 = vector.shape_cast %26 : vector<1x16x32xf32> to vector<16x32xf32>
    %c0_17 = arith.constant 0 : index
    %c0_18 = arith.constant 0 : index
    %c32_19 = arith.constant 32 : index
    %28 = vector.load %arg3[%c0_17, %c0_18, %c32_19] : memref<1x16x128xf32, #tpu.memory_space<vmem>>, vector<1x16x32xf32>
    %29 = vector.shape_cast %28 : vector<1x16x32xf32> to vector<16x32xf32>
    %c0_20 = arith.constant 0 : index
    %c0_21 = arith.constant 0 : index
    %c32_22 = arith.constant 32 : index
    %30 = vector.load %arg4[%c0_20, %c0_21, %c32_22] : memref<1x16x128xf32, #tpu.memory_space<vmem>>, vector<1x16x32xf32>
    %31 = vector.shape_cast %30 : vector<1x16x32xf32> to vector<16x32xf32>
    %cst_23 = arith.constant dense<0.000000e+00> : vector<16x16xf32>
    %32 = tpu.matmul %27, %29, %cst_23 {dimension_numbers = #tpu.dot_dimension_numbers<[1], [1], [0], [0], [0, 0, 1, 0], [], []>} : vector<16x32xf32>, vector<16x32xf32>, vector<16x16xf32> -> vector<16x16xf32>
    %cst_24 = arith.constant 0.176776692 : f32
    %33 = vector.broadcast %cst_24 : f32 to vector<16x16xf32>
    %34 = arith.mulf %32, %33 : vector<16x16xf32>
    %35 = arith.addf %34, %0 : vector<16x16xf32>
    %cst_25 = arith.constant dense<0xFF800000> : vector<16xf32>
    %36 = vector.multi_reduction <maximumf>, %35, %cst_25 [1] : vector<16x16xf32> to vector<16xf32>
    %37 = vector.shape_cast %36 : vector<16xf32> to vector<16x1xf32>
    %38 = vector.broadcast %37 : vector<16x1xf32> to vector<16x16xf32>
    %39 = arith.subf %35, %38 : vector<16x16xf32>
    %40 = math.exp %39 : vector<16x16xf32>
    %cst_26 = arith.constant dense<0.000000e+00> : vector<16xf32>
    %41 = vector.multi_reduction <add>, %40, %cst_26 [1] : vector<16x16xf32> to vector<16xf32>
    %42 = vector.shape_cast %41 : vector<16xf32> to vector<16x1xf32>
    %43 = tpu.reciprocal %42 {approx = true} : vector<16x1xf32> -> vector<16x1xf32>
    %44 = arith.mulf %42, %43 : vector<16x1xf32>
    %cst_27 = arith.constant 2.000000e+00 : f32
    %45 = vector.broadcast %cst_27 : f32 to vector<16x1xf32>
    %46 = arith.subf %45, %44 : vector<16x1xf32>
    %47 = arith.mulf %43, %46 : vector<16x1xf32>
    %48 = vector.broadcast %47 : vector<16x1xf32> to vector<16x16xf32>
    %49 = arith.mulf %40, %48 : vector<16x16xf32>
    %cst_28 = arith.constant dense<0.000000e+00> : vector<16x32xf32>
    %50 = tpu.matmul %49, %31, %cst_28 {dimension_numbers = #tpu.dot_dimension_numbers<[1], [0], [0], [1], [0, 0, 1, 1], [], []>} : vector<16x16xf32>, vector<16x32xf32>, vector<16x32xf32> -> vector<16x32xf32>
    %c0_29 = arith.constant 0 : index
    %c0_30 = arith.constant 0 : index
    %c64 = arith.constant 64 : index
    %51 = vector.load %arg2[%c0_29, %c0_30, %c64] : memref<1x16x128xf32, #tpu.memory_space<vmem>>, vector<1x16x32xf32>
    %52 = vector.shape_cast %51 : vector<1x16x32xf32> to vector<16x32xf32>
    %c0_31 = arith.constant 0 : index
    %c0_32 = arith.constant 0 : index
    %c64_33 = arith.constant 64 : index
    %53 = vector.load %arg3[%c0_31, %c0_32, %c64_33] : memref<1x16x128xf32, #tpu.memory_space<vmem>>, vector<1x16x32xf32>
    %54 = vector.shape_cast %53 : vector<1x16x32xf32> to vector<16x32xf32>
    %c0_34 = arith.constant 0 : index
    %c0_35 = arith.constant 0 : index
    %c64_36 = arith.constant 64 : index
    %55 = vector.load %arg4[%c0_34, %c0_35, %c64_36] : memref<1x16x128xf32, #tpu.memory_space<vmem>>, vector<1x16x32xf32>
    %56 = vector.shape_cast %55 : vector<1x16x32xf32> to vector<16x32xf32>
    %cst_37 = arith.constant dense<0.000000e+00> : vector<16x16xf32>
    %57 = tpu.matmul %52, %54, %cst_37 {dimension_numbers = #tpu.dot_dimension_numbers<[1], [1], [0], [0], [0, 0, 1, 0], [], []>} : vector<16x32xf32>, vector<16x32xf32>, vector<16x16xf32> -> vector<16x16xf32>
    %cst_38 = arith.constant 0.176776692 : f32
    %58 = vector.broadcast %cst_38 : f32 to vector<16x16xf32>
    %59 = arith.mulf %57, %58 : vector<16x16xf32>
    %60 = arith.addf %59, %0 : vector<16x16xf32>
    %cst_39 = arith.constant dense<0xFF800000> : vector<16xf32>
    %61 = vector.multi_reduction <maximumf>, %60, %cst_39 [1] : vector<16x16xf32> to vector<16xf32>
    %62 = vector.shape_cast %61 : vector<16xf32> to vector<16x1xf32>
    %63 = vector.broadcast %62 : vector<16x1xf32> to vector<16x16xf32>
    %64 = arith.subf %60, %63 : vector<16x16xf32>
    %65 = math.exp %64 : vector<16x16xf32>
    %cst_40 = arith.constant dense<0.000000e+00> : vector<16xf32>
    %66 = vector.multi_reduction <add>, %65, %cst_40 [1] : vector<16x16xf32> to vector<16xf32>
    %67 = vector.shape_cast %66 : vector<16xf32> to vector<16x1xf32>
    %68 = tpu.reciprocal %67 {approx = true} : vector<16x1xf32> -> vector<16x1xf32>
    %69 = arith.mulf %67, %68 : vector<16x1xf32>
    %cst_41 = arith.constant 2.000000e+00 : f32
    %70 = vector.broadcast %cst_41 : f32 to vector<16x1xf32>
    %71 = arith.subf %70, %69 : vector<16x1xf32>
    %72 = arith.mulf %68, %71 : vector<16x1xf32>
    %73 = vector.broadcast %72 : vector<16x1xf32> to vector<16x16xf32>
    %74 = arith.mulf %65, %73 : vector<16x16xf32>
    %cst_42 = arith.constant dense<0.000000e+00> : vector<16x32xf32>
    %75 = tpu.matmul %74, %56, %cst_42 {dimension_numbers = #tpu.dot_dimension_numbers<[1], [0], [0], [1], [0, 0, 1, 1], [], []>} : vector<16x16xf32>, vector<16x32xf32>, vector<16x32xf32> -> vector<16x32xf32>
    %c0_43 = arith.constant 0 : index
    %c0_44 = arith.constant 0 : index
    %c96 = arith.constant 96 : index
    %76 = vector.load %arg2[%c0_43, %c0_44, %c96] : memref<1x16x128xf32, #tpu.memory_space<vmem>>, vector<1x16x32xf32>
    %77 = vector.shape_cast %76 : vector<1x16x32xf32> to vector<16x32xf32>
    %c0_45 = arith.constant 0 : index
    %c0_46 = arith.constant 0 : index
    %c96_47 = arith.constant 96 : index
    %78 = vector.load %arg3[%c0_45, %c0_46, %c96_47] : memref<1x16x128xf32, #tpu.memory_space<vmem>>, vector<1x16x32xf32>
    %79 = vector.shape_cast %78 : vector<1x16x32xf32> to vector<16x32xf32>
    %c0_48 = arith.constant 0 : index
    %c0_49 = arith.constant 0 : index
    %c96_50 = arith.constant 96 : index
    %80 = vector.load %arg4[%c0_48, %c0_49, %c96_50] : memref<1x16x128xf32, #tpu.memory_space<vmem>>, vector<1x16x32xf32>
    %81 = vector.shape_cast %80 : vector<1x16x32xf32> to vector<16x32xf32>
    %cst_51 = arith.constant dense<0.000000e+00> : vector<16x16xf32>
    %82 = tpu.matmul %77, %79, %cst_51 {dimension_numbers = #tpu.dot_dimension_numbers<[1], [1], [0], [0], [0, 0, 1, 0], [], []>} : vector<16x32xf32>, vector<16x32xf32>, vector<16x16xf32> -> vector<16x16xf32>
    %cst_52 = arith.constant 0.176776692 : f32
    %83 = vector.broadcast %cst_52 : f32 to vector<16x16xf32>
    %84 = arith.mulf %82, %83 : vector<16x16xf32>
    %85 = arith.addf %84, %0 : vector<16x16xf32>
    %cst_53 = arith.constant dense<0xFF800000> : vector<16xf32>
    %86 = vector.multi_reduction <maximumf>, %85, %cst_53 [1] : vector<16x16xf32> to vector<16xf32>
    %87 = vector.shape_cast %86 : vector<16xf32> to vector<16x1xf32>
    %88 = vector.broadcast %87 : vector<16x1xf32> to vector<16x16xf32>
    %89 = arith.subf %85, %88 : vector<16x16xf32>
    %90 = math.exp %89 : vector<16x16xf32>
    %cst_54 = arith.constant dense<0.000000e+00> : vector<16xf32>
    %91 = vector.multi_reduction <add>, %90, %cst_54 [1] : vector<16x16xf32> to vector<16xf32>
    %92 = vector.shape_cast %91 : vector<16xf32> to vector<16x1xf32>
    %93 = tpu.reciprocal %92 {approx = true} : vector<16x1xf32> -> vector<16x1xf32>
    %94 = arith.mulf %92, %93 : vector<16x1xf32>
    %cst_55 = arith.constant 2.000000e+00 : f32
    %95 = vector.broadcast %cst_55 : f32 to vector<16x1xf32>
    %96 = arith.subf %95, %94 : vector<16x1xf32>
    %97 = arith.mulf %93, %96 : vector<16x1xf32>
    %98 = vector.broadcast %97 : vector<16x1xf32> to vector<16x16xf32>
    %99 = arith.mulf %90, %98 : vector<16x16xf32>
    %cst_56 = arith.constant dense<0.000000e+00> : vector<16x32xf32>
    %100 = tpu.matmul %99, %81, %cst_56 {dimension_numbers = #tpu.dot_dimension_numbers<[1], [0], [0], [1], [0, 0, 1, 1], [], []>} : vector<16x16xf32>, vector<16x32xf32>, vector<16x32xf32> -> vector<16x32xf32>
    %101 = tpu.concatenate %25, %50, %75, %100 in 1 : vector<16x32xf32>, vector<16x32xf32>, vector<16x32xf32>, vector<16x32xf32> -> vector<16x128xf32>
    %c0_57 = arith.constant 0 : index
    %c0_58 = arith.constant 0 : index
    %c0_59 = arith.constant 0 : index
    %102 = vector.load %arg6[%c0_57, %c0_58, %c0_59] : memref<1x16x128xf32, #tpu.memory_space<vmem>>, vector<1x16x128xf32>
    %103 = vector.shape_cast %102 : vector<1x16x128xf32> to vector<16x128xf32>
    %104 = vector.shape_cast %101 : vector<16x128xf32> to vector<1x16x128xf32>
    tpu.vector_store %arg6[%c0_57, %c0_58, %c0_59], %104 {strides = array<i32>} : memref<1x16x128xf32, #tpu.memory_space<vmem>>, vector<1x16x128xf32>,
    return
  }
  func.func @transform_0(%arg0: i32, %arg1: i32) -> (i32, i32, i32) {
    %c0_i32 = arith.constant 0 : i32
    %c0_i32_0 = arith.constant 0 : i32
    return %arg0, %c0_i32, %arg1 : i32, i32, i32
  }
  func.func @transform_1(%arg0: i32, %arg1: i32) -> (i32, i32, i32) {
    %c1_i32 = arith.constant 1 : i32
    %0 = arith.addi %c1_i32, %arg1 : i32
    %c0_i32 = arith.constant 0 : i32
    %c0_i32_0 = arith.constant 0 : i32
    return %arg0, %c0_i32, %0 : i32, i32, i32
  }
  func.func @transform_2(%arg0: i32, %arg1: i32) -> (i32, i32, i32) {
    %c2_i32 = arith.constant 2 : i32
    %0 = arith.addi %c2_i32, %arg1 : i32
    %c0_i32 = arith.constant 0 : i32
    %c0_i32_0 = arith.constant 0 : i32
    return %arg0, %c0_i32, %0 : i32, i32, i32
  }
  func.func @transform_3(%arg0: i32, %arg1: i32) -> (i32, i32) {
    %c0_i32 = arith.constant 0 : i32
    %c0_i32_0 = arith.constant 0 : i32
    %c0_i32_1 = arith.constant 0 : i32
    return %c0_i32, %c0_i32_0 : i32, i32
  }
  func.func @transform_4(%arg0: i32, %arg1: i32) -> (i32, i32, i32) {
    %c0_i32 = arith.constant 0 : i32
    %c0_i32_0 = arith.constant 0 : i32
    return %arg0, %c0_i32, %arg1 : i32, i32, i32
  }
}

module attributes {stable_mosaic.version = 11 : i64} {
  func.func @_linear_kernel(%arg0: i32, %arg1: i32, %arg2: i32, %arg3: memref<32x128xf32, #tpu.memory_space<vmem>>, %arg4: memref<128x128xf32, #tpu.memory_space<vmem>>, %arg5: memref<1x128xf32, #tpu.memory_space<vmem>>, %arg6: memref<32x128xf32, #tpu.memory_space<vmem>>, %arg7: memref<32x128xf32, #tpu.memory_space<vmem>>) attributes {dimension_semantics = [#tpu.dimension_semantics<parallel>, #tpu.dimension_semantics<parallel>, #tpu.dimension_semantics<arbitrary>], iteration_bounds = array<i64: 1, 1, 1>, scalar_prefetch = 0 : i64, scratch_operands = 1 : i64, tpu.core_type = #tpu.core_type<tc>, window_params = [{transform_indices = @transform_0, window_bounds = array<i64: 32, 128>}, {transform_indices = @transform_1, window_bounds = array<i64: 128, 128>}, {transform_indices = @transform_2, window_bounds = array<i64: 1, 128>}, {transform_indices = @transform_3, window_bounds = array<i64: 32, 128>}]} {
    %c0_i32 = arith.constant 0 : i32
    %0 = arith.cmpi eq, %arg2, %c0_i32 : i32
    %1 = arith.extui %0 : i1 to i32
    %c0_i32_0 = arith.constant 0 : i32
    %2 = arith.cmpi ne, %1, %c0_i32_0 : i32
    scf.if %2 {
      %cst_10 = arith.constant 0.000000e+00 : f32
      %12 = vector.broadcast %cst_10 : f32 to vector<32x128xf32>
      %c0_11 = arith.constant 0 : index
      %c0_12 = arith.constant 0 : index
      %13 = vector.load %arg7[%c0_11, %c0_12] : memref<32x128xf32, #tpu.memory_space<vmem>>, vector<32x128xf32>
      tpu.vector_store %arg7[%c0_11, %c0_12], %12 {strides = array<i32>} : memref<32x128xf32, #tpu.memory_space<vmem>>, vector<32x128xf32>,
    } else {
    }
    %c0 = arith.constant 0 : index
    %c0_1 = arith.constant 0 : index
    %3 = vector.load %arg7[%c0, %c0_1] : memref<32x128xf32, #tpu.memory_space<vmem>>, vector<32x128xf32>
    %c0_2 = arith.constant 0 : index
    %c0_3 = arith.constant 0 : index
    %4 = vector.load %arg3[%c0_2, %c0_3] : memref<32x128xf32, #tpu.memory_space<vmem>>, vector<32x128xf32>
    %c0_4 = arith.constant 0 : index
    %c0_5 = arith.constant 0 : index
    %5 = vector.load %arg4[%c0_4, %c0_5] : memref<128x128xf32, #tpu.memory_space<vmem>>, vector<128x128xf32>
    %cst = arith.constant dense<0.000000e+00> : vector<32x128xf32>
    %6 = tpu.matmul %4, %5, %cst {dimension_numbers = #tpu.dot_dimension_numbers<[1], [0], [0], [1], [0, 0, 1, 1], [], []>} : vector<32x128xf32>, vector<128x128xf32>, vector<32x128xf32> -> vector<32x128xf32>
    %7 = arith.addf %3, %6 : vector<32x128xf32>
    %c0_6 = arith.constant 0 : index
    %c0_7 = arith.constant 0 : index
    %8 = vector.load %arg7[%c0_6, %c0_7] : memref<32x128xf32, #tpu.memory_space<vmem>>, vector<32x128xf32>
    tpu.vector_store %arg7[%c0_6, %c0_7], %7 {strides = array<i32>} : memref<32x128xf32, #tpu.memory_space<vmem>>, vector<32x128xf32>,
    %c0_i32_8 = arith.constant 0 : i32
    %9 = arith.cmpi eq, %arg2, %c0_i32_8 : i32
    %10 = arith.extui %9 : i1 to i32
    %c0_i32_9 = arith.constant 0 : i32
    %11 = arith.cmpi ne, %10, %c0_i32_9 : i32
    scf.if %11 {
      %c0_10 = arith.constant 0 : index
      %c0_11 = arith.constant 0 : index
      %12 = vector.load %arg7[%c0_10, %c0_11] : memref<32x128xf32, #tpu.memory_space<vmem>>, vector<32x128xf32>
      %c0_12 = arith.constant 0 : index
      %c0_13 = arith.constant 0 : index
      %13 = vector.load %arg5[%c0_12, %c0_13] : memref<1x128xf32, #tpu.memory_space<vmem>>, vector<1x128xf32>
      %14 = vector.broadcast %13 : vector<1x128xf32> to vector<32x128xf32>
      %15 = arith.addf %12, %14 : vector<32x128xf32>
      %c0_14 = arith.constant 0 : index
      %c0_15 = arith.constant 0 : index
      %16 = vector.load %arg6[%c0_14, %c0_15] : memref<32x128xf32, #tpu.memory_space<vmem>>, vector<32x128xf32>
      tpu.vector_store %arg6[%c0_14, %c0_15], %15 {strides = array<i32>} : memref<32x128xf32, #tpu.memory_space<vmem>>, vector<32x128xf32>,
    } else {
    }
    return
  }
  func.func @transform_0(%arg0: i32, %arg1: i32, %arg2: i32) -> (i32, i32) {
    %c0_i32 = arith.constant 0 : i32
    return %arg0, %arg2 : i32, i32
  }
  func.func @transform_1(%arg0: i32, %arg1: i32, %arg2: i32) -> (i32, i32) {
    %c0_i32 = arith.constant 0 : i32
    return %arg2, %arg1 : i32, i32
  }
  func.func @transform_2(%arg0: i32, %arg1: i32, %arg2: i32) -> (i32, i32) {
    %c0_i32 = arith.constant 0 : i32
    %c0_i32_0 = arith.constant 0 : i32
    return %c0_i32, %arg1 : i32, i32
  }
  func.func @transform_3(%arg0: i32, %arg1: i32, %arg2: i32) -> (i32, i32) {
    %c0_i32 = arith.constant 0 : i32
    return %arg0, %arg1 : i32, i32
  }
}

module attributes {stable_mosaic.version = 11 : i64} {
  func.func @_linear_kernel(%arg0: i32, %arg1: i32, %arg2: i32, %arg3: memref<32x512xf32, #tpu.memory_space<vmem>>, %arg4: memref<512x128xf32, #tpu.memory_space<vmem>>, %arg5: memref<1x128xf32, #tpu.memory_space<vmem>>, %arg6: memref<32x128xf32, #tpu.memory_space<vmem>>, %arg7: memref<32x128xf32, #tpu.memory_space<vmem>>) attributes {dimension_semantics = [#tpu.dimension_semantics<parallel>, #tpu.dimension_semantics<parallel>, #tpu.dimension_semantics<arbitrary>], iteration_bounds = array<i64: 1, 1, 1>, scalar_prefetch = 0 : i64, scratch_operands = 1 : i64, tpu.core_type = #tpu.core_type<tc>, window_params = [{transform_indices = @transform_0, window_bounds = array<i64: 32, 512>}, {transform_indices = @transform_1, window_bounds = array<i64: 512, 128>}, {transform_indices = @transform_2, window_bounds = array<i64: 1, 128>}, {transform_indices = @transform_3, window_bounds = array<i64: 32, 128>}]} {
    %c0_i32 = arith.constant 0 : i32
    %0 = arith.cmpi eq, %arg2, %c0_i32 : i32
    %1 = arith.extui %0 : i1 to i32
    %c0_i32_0 = arith.constant 0 : i32
    %2 = arith.cmpi ne, %1, %c0_i32_0 : i32
    scf.if %2 {
      %cst_10 = arith.constant 0.000000e+00 : f32
      %12 = vector.broadcast %cst_10 : f32 to vector<32x128xf32>
      %c0_11 = arith.constant 0 : index
      %c0_12 = arith.constant 0 : index
      %13 = vector.load %arg7[%c0_11, %c0_12] : memref<32x128xf32, #tpu.memory_space<vmem>>, vector<32x128xf32>
      tpu.vector_store %arg7[%c0_11, %c0_12], %12 {strides = array<i32>} : memref<32x128xf32, #tpu.memory_space<vmem>>, vector<32x128xf32>,
    } else {
    }
    %c0 = arith.constant 0 : index
    %c0_1 = arith.constant 0 : index
    %3 = vector.load %arg7[%c0, %c0_1] : memref<32x128xf32, #tpu.memory_space<vmem>>, vector<32x128xf32>
    %c0_2 = arith.constant 0 : index
    %c0_3 = arith.constant 0 : index
    %4 = vector.load %arg3[%c0_2, %c0_3] : memref<32x512xf32, #tpu.memory_space<vmem>>, vector<32x512xf32>
    %c0_4 = arith.constant 0 : index
    %c0_5 = arith.constant 0 : index
    %5 = vector.load %arg4[%c0_4, %c0_5] : memref<512x128xf32, #tpu.memory_space<vmem>>, vector<512x128xf32>
    %cst = arith.constant dense<0.000000e+00> : vector<32x128xf32>
    %6 = tpu.matmul %4, %5, %cst {dimension_numbers = #tpu.dot_dimension_numbers<[1], [0], [0], [1], [0, 0, 1, 1], [], []>} : vector<32x512xf32>, vector<512x128xf32>, vector<32x128xf32> -> vector<32x128xf32>
    %7 = arith.addf %3, %6 : vector<32x128xf32>
    %c0_6 = arith.constant 0 : index
    %c0_7 = arith.constant 0 : index
    %8 = vector.load %arg7[%c0_6, %c0_7] : memref<32x128xf32, #tpu.memory_space<vmem>>, vector<32x128xf32>
    tpu.vector_store %arg7[%c0_6, %c0_7], %7 {strides = array<i32>} : memref<32x128xf32, #tpu.memory_space<vmem>>, vector<32x128xf32>,
    %c0_i32_8 = arith.constant 0 : i32
    %9 = arith.cmpi eq, %arg2, %c0_i32_8 : i32
    %10 = arith.extui %9 : i1 to i32
    %c0_i32_9 = arith.constant 0 : i32
    %11 = arith.cmpi ne, %10, %c0_i32_9 : i32
    scf.if %11 {
      %c0_10 = arith.constant 0 : index
      %c0_11 = arith.constant 0 : index
      %12 = vector.load %arg7[%c0_10, %c0_11] : memref<32x128xf32, #tpu.memory_space<vmem>>, vector<32x128xf32>
      %c0_12 = arith.constant 0 : index
      %c0_13 = arith.constant 0 : index
      %13 = vector.load %arg5[%c0_12, %c0_13] : memref<1x128xf32, #tpu.memory_space<vmem>>, vector<1x128xf32>
      %14 = vector.broadcast %13 : vector<1x128xf32> to vector<32x128xf32>
      %15 = arith.addf %12, %14 : vector<32x128xf32>
      %c0_14 = arith.constant 0 : index
      %c0_15 = arith.constant 0 : index
      %16 = vector.load %arg6[%c0_14, %c0_15] : memref<32x128xf32, #tpu.memory_space<vmem>>, vector<32x128xf32>
      tpu.vector_store %arg6[%c0_14, %c0_15], %15 {strides = array<i32>} : memref<32x128xf32, #tpu.memory_space<vmem>>, vector<32x128xf32>,
    } else {
    }
    return
  }
  func.func @transform_0(%arg0: i32, %arg1: i32, %arg2: i32) -> (i32, i32) {
    %c0_i32 = arith.constant 0 : i32
    return %arg0, %arg2 : i32, i32
  }
  func.func @transform_1(%arg0: i32, %arg1: i32, %arg2: i32) -> (i32, i32) {
    %c0_i32 = arith.constant 0 : i32
    return %arg2, %arg1 : i32, i32
  }
  func.func @transform_2(%arg0: i32, %arg1: i32, %arg2: i32) -> (i32, i32) {
    %c0_i32 = arith.constant 0 : i32
    %c0_i32_0 = arith.constant 0 : i32
    return %c0_i32, %arg1 : i32, i32
  }
  func.func @transform_3(%arg0: i32, %arg1: i32, %arg2: i32) -> (i32, i32) {
    %c0_i32 = arith.constant 0 : i32
    return %arg0, %arg1 : i32, i32
  }
}

module attributes {stable_mosaic.version = 11 : i64} {
  func.func @_linear_kernel(%arg0: i32, %arg1: i32, %arg2: i32, %arg3: memref<32x128xf32, #tpu.memory_space<vmem>>, %arg4: memref<128x512xf32, #tpu.memory_space<vmem>>, %arg5: memref<1x512xf32, #tpu.memory_space<vmem>>, %arg6: memref<32x512xf32, #tpu.memory_space<vmem>>, %arg7: memref<32x512xf32, #tpu.memory_space<vmem>>) attributes {dimension_semantics = [#tpu.dimension_semantics<parallel>, #tpu.dimension_semantics<parallel>, #tpu.dimension_semantics<arbitrary>], iteration_bounds = array<i64: 1, 1, 1>, scalar_prefetch = 0 : i64, scratch_operands = 1 : i64, tpu.core_type = #tpu.core_type<tc>, window_params = [{transform_indices = @transform_0, window_bounds = array<i64: 32, 128>}, {transform_indices = @transform_1, window_bounds = array<i64: 128, 512>}, {transform_indices = @transform_2, window_bounds = array<i64: 1, 512>}, {transform_indices = @transform_3, window_bounds = array<i64: 32, 512>}]} {
    %c0_i32 = arith.constant 0 : i32
    %0 = arith.cmpi eq, %arg2, %c0_i32 : i32
    %1 = arith.extui %0 : i1 to i32
    %c0_i32_0 = arith.constant 0 : i32
    %2 = arith.cmpi ne, %1, %c0_i32_0 : i32
    scf.if %2 {
      %cst_10 = arith.constant 0.000000e+00 : f32
      %12 = vector.broadcast %cst_10 : f32 to vector<32x512xf32>
      %c0_11 = arith.constant 0 : index
      %c0_12 = arith.constant 0 : index
      %13 = vector.load %arg7[%c0_11, %c0_12] : memref<32x512xf32, #tpu.memory_space<vmem>>, vector<32x512xf32>
      tpu.vector_store %arg7[%c0_11, %c0_12], %12 {strides = array<i32>} : memref<32x512xf32, #tpu.memory_space<vmem>>, vector<32x512xf32>,
    } else {
    }
    %c0 = arith.constant 0 : index
    %c0_1 = arith.constant 0 : index
    %3 = vector.load %arg7[%c0, %c0_1] : memref<32x512xf32, #tpu.memory_space<vmem>>, vector<32x512xf32>
    %c0_2 = arith.constant 0 : index
    %c0_3 = arith.constant 0 : index
    %4 = vector.load %arg3[%c0_2, %c0_3] : memref<32x128xf32, #tpu.memory_space<vmem>>, vector<32x128xf32>
    %c0_4 = arith.constant 0 : index
    %c0_5 = arith.constant 0 : index
    %5 = vector.load %arg4[%c0_4, %c0_5] : memref<128x512xf32, #tpu.memory_space<vmem>>, vector<128x512xf32>
    %cst = arith.constant dense<0.000000e+00> : vector<32x512xf32>
    %6 = tpu.matmul %4, %5, %cst {dimension_numbers = #tpu.dot_dimension_numbers<[1], [0], [0], [1], [0, 0, 1, 1], [], []>} : vector<32x128xf32>, vector<128x512xf32>, vector<32x512xf32> -> vector<32x512xf32>
    %7 = arith.addf %3, %6 : vector<32x512xf32>
    %c0_6 = arith.constant 0 : index
    %c0_7 = arith.constant 0 : index
    %8 = vector.load %arg7[%c0_6, %c0_7] : memref<32x512xf32, #tpu.memory_space<vmem>>, vector<32x512xf32>
    tpu.vector_store %arg7[%c0_6, %c0_7], %7 {strides = array<i32>} : memref<32x512xf32, #tpu.memory_space<vmem>>, vector<32x512xf32>,
    %c0_i32_8 = arith.constant 0 : i32
    %9 = arith.cmpi eq, %arg2, %c0_i32_8 : i32
    %10 = arith.extui %9 : i1 to i32
    %c0_i32_9 = arith.constant 0 : i32
    %11 = arith.cmpi ne, %10, %c0_i32_9 : i32
    scf.if %11 {
      %c0_10 = arith.constant 0 : index
      %c0_11 = arith.constant 0 : index
      %12 = vector.load %arg7[%c0_10, %c0_11] : memref<32x512xf32, #tpu.memory_space<vmem>>, vector<32x512xf32>
      %c0_12 = arith.constant 0 : index
      %c0_13 = arith.constant 0 : index
      %13 = vector.load %arg5[%c0_12, %c0_13] : memref<1x512xf32, #tpu.memory_space<vmem>>, vector<1x512xf32>
      %14 = vector.broadcast %13 : vector<1x512xf32> to vector<32x512xf32>
      %15 = arith.addf %12, %14 : vector<32x512xf32>
      %cst_14 = arith.constant 5.000000e-01 : f32
      %16 = vector.broadcast %cst_14 : f32 to vector<32x512xf32>
      %17 = arith.mulf %16, %15 : vector<32x512xf32>
      %cst_15 = arith.constant 4.471500e-02 : f32
      %18 = vector.broadcast %cst_15 : f32 to vector<32x512xf32>
      %19 = arith.mulf %18, %15 : vector<32x512xf32>
      %20 = arith.mulf %19, %15 : vector<32x512xf32>
      %21 = arith.mulf %20, %15 : vector<32x512xf32>
      %22 = arith.addf %15, %21 : vector<32x512xf32>
      %cst_16 = arith.constant 0.797884583 : f32
      %23 = vector.broadcast %cst_16 : f32 to vector<32x512xf32>
      %24 = arith.mulf %23, %22 : vector<32x512xf32>
      %25 = math.tanh %24 : vector<32x512xf32>
      %cst_17 = arith.constant 1.000000e+00 : f32
      %26 = vector.broadcast %cst_17 : f32 to vector<32x512xf32>
      %27 = arith.addf %26, %25 : vector<32x512xf32>
      %28 = arith.mulf %17, %27 : vector<32x512xf32>
      %c0_18 = arith.constant 0 : index
      %c0_19 = arith.constant 0 : index
      %29 = vector.load %arg6[%c0_18, %c0_19] : memref<32x512xf32, #tpu.memory_space<vmem>>, vector<32x512xf32>
      tpu.vector_store %arg6[%c0_18, %c0_19], %28 {strides = array<i32>} : memref<32x512xf32, #tpu.memory_space<vmem>>, vector<32x512xf32>,
    } else {
    }
    return
  }
  func.func @transform_0(%arg0: i32, %arg1: i32, %arg2: i32) -> (i32, i32) {
    %c0_i32 = arith.constant 0 : i32
    return %arg0, %arg2 : i32, i32
  }
  func.func @transform_1(%arg0: i32, %arg1: i32, %arg2: i32) -> (i32, i32) {
    %c0_i32 = arith.constant 0 : i32
    return %arg2, %arg1 : i32, i32
  }
  func.func @transform_2(%arg0: i32, %arg1: i32, %arg2: i32) -> (i32, i32) {
    %c0_i32 = arith.constant 0 : i32
    %c0_i32_0 = arith.constant 0 : i32
    return %c0_i32, %arg1 : i32, i32
  }
  func.func @transform_3(%arg0: i32, %arg1: i32, %arg2: i32) -> (i32, i32) {
    %c0_i32 = arith.constant 0 : i32
    return %arg0, %arg1 : i32, i32
  }
}

module attributes {stable_mosaic.version = 11 : i64} {
  func.func @_linear_kernel(%arg0: i32, %arg1: i32, %arg2: i32, %arg3: memref<32x128xf32, #tpu.memory_space<vmem>>, %arg4: memref<128x512xf32, #tpu.memory_space<vmem>>, %arg5: memref<1x512xf32, #tpu.memory_space<vmem>>, %arg6: memref<32x512xf32, #tpu.memory_space<vmem>>, %arg7: memref<32x512xf32, #tpu.memory_space<vmem>>) attributes {dimension_semantics = [#tpu.dimension_semantics<parallel>, #tpu.dimension_semantics<parallel>, #tpu.dimension_semantics<arbitrary>], iteration_bounds = array<i64: 1, 1, 1>, scalar_prefetch = 0 : i64, scratch_operands = 1 : i64, tpu.core_type = #tpu.core_type<tc>, window_params = [{transform_indices = @transform_0, window_bounds = array<i64: 32, 128>}, {transform_indices = @transform_1, window_bounds = array<i64: 128, 512>}, {transform_indices = @transform_2, window_bounds = array<i64: 1, 512>}, {transform_indices = @transform_3, window_bounds = array<i64: 32, 512>}]} {
    %c0_i32 = arith.constant 0 : i32
    %0 = arith.cmpi eq, %arg2, %c0_i32 : i32
    %1 = arith.extui %0 : i1 to i32
    %c0_i32_0 = arith.constant 0 : i32
    %2 = arith.cmpi ne, %1, %c0_i32_0 : i32
    scf.if %2 {
      %cst_10 = arith.constant 0.000000e+00 : f32
      %12 = vector.broadcast %cst_10 : f32 to vector<32x512xf32>
      %c0_11 = arith.constant 0 : index
      %c0_12 = arith.constant 0 : index
      %13 = vector.load %arg7[%c0_11, %c0_12] : memref<32x512xf32, #tpu.memory_space<vmem>>, vector<32x512xf32>
      tpu.vector_store %arg7[%c0_11, %c0_12], %12 {strides = array<i32>} : memref<32x512xf32, #tpu.memory_space<vmem>>, vector<32x512xf32>,
    } else {
    }
    %c0 = arith.constant 0 : index
    %c0_1 = arith.constant 0 : index
    %3 = vector.load %arg7[%c0, %c0_1] : memref<32x512xf32, #tpu.memory_space<vmem>>, vector<32x512xf32>
    %c0_2 = arith.constant 0 : index
    %c0_3 = arith.constant 0 : index
    %4 = vector.load %arg3[%c0_2, %c0_3] : memref<32x128xf32, #tpu.memory_space<vmem>>, vector<32x128xf32>
    %c0_4 = arith.constant 0 : index
    %c0_5 = arith.constant 0 : index
    %5 = vector.load %arg4[%c0_4, %c0_5] : memref<128x512xf32, #tpu.memory_space<vmem>>, vector<128x512xf32>
    %cst = arith.constant dense<0.000000e+00> : vector<32x512xf32>
    %6 = tpu.matmul %4, %5, %cst {dimension_numbers = #tpu.dot_dimension_numbers<[1], [0], [0], [1], [0, 0, 1, 1], [], []>} : vector<32x128xf32>, vector<128x512xf32>, vector<32x512xf32> -> vector<32x512xf32>
    %7 = arith.addf %3, %6 : vector<32x512xf32>
    %c0_6 = arith.constant 0 : index
    %c0_7 = arith.constant 0 : index
    %8 = vector.load %arg7[%c0_6, %c0_7] : memref<32x512xf32, #tpu.memory_space<vmem>>, vector<32x512xf32>
    tpu.vector_store %arg7[%c0_6, %c0_7], %7 {strides = array<i32>} : memref<32x512xf32, #tpu.memory_space<vmem>>, vector<32x512xf32>,
    %c0_i32_8 = arith.constant 0 : i32
    %9 = arith.cmpi eq, %arg2, %c0_i32_8 : i32
    %10 = arith.extui %9 : i1 to i32
    %c0_i32_9 = arith.constant 0 : i32
    %11 = arith.cmpi ne, %10, %c0_i32_9 : i32
    scf.if %11 {
      %c0_10 = arith.constant 0 : index
      %c0_11 = arith.constant 0 : index
      %12 = vector.load %arg7[%c0_10, %c0_11] : memref<32x512xf32, #tpu.memory_space<vmem>>, vector<32x512xf32>
      %c0_12 = arith.constant 0 : index
      %c0_13 = arith.constant 0 : index
      %13 = vector.load %arg5[%c0_12, %c0_13] : memref<1x512xf32, #tpu.memory_space<vmem>>, vector<1x512xf32>
      %14 = vector.broadcast %13 : vector<1x512xf32> to vector<32x512xf32>
      %15 = arith.addf %12, %14 : vector<32x512xf32>
      %c0_14 = arith.constant 0 : index
      %c0_15 = arith.constant 0 : index
      %16 = vector.load %arg6[%c0_14, %c0_15] : memref<32x512xf32, #tpu.memory_space<vmem>>, vector<32x512xf32>
      tpu.vector_store %arg6[%c0_14, %c0_15], %15 {strides = array<i32>} : memref<32x512xf32, #tpu.memory_space<vmem>>, vector<32x512xf32>,
    } else {
    }
    return
  }
  func.func @transform_0(%arg0: i32, %arg1: i32, %arg2: i32) -> (i32, i32) {
    %c0_i32 = arith.constant 0 : i32
    return %arg0, %arg2 : i32, i32
  }
  func.func @transform_1(%arg0: i32, %arg1: i32, %arg2: i32) -> (i32, i32) {
    %c0_i32 = arith.constant 0 : i32
    return %arg2, %arg1 : i32, i32
  }
  func.func @transform_2(%arg0: i32, %arg1: i32, %arg2: i32) -> (i32, i32) {
    %c0_i32 = arith.constant 0 : i32
    %c0_i32_0 = arith.constant 0 : i32
    return %c0_i32, %arg1 : i32, i32
  }
  func.func @transform_3(%arg0: i32, %arg1: i32, %arg2: i32) -> (i32, i32) {
    %c0_i32 = arith.constant 0 : i32
    return %arg0, %arg1 : i32, i32
  }
}

</mosaic_0001>

<llo_original>
// kernel: _lambda_.16
$region0: #{_lambda_.16}
  #allocation0 [shape = 'u32[]', space=smem, size = 0x4, offset = 0x4, fixed_abs, tag = 'smem constant byte address 0x4 - core index']
  #allocation1 [shape = 'u32[144,128]{1,0:T(1,128)}', space=vmem, size = 0x12000, scoped, tag = 'internal scratch']
  %s0 = inlined_call_operand.vmem [shape: f32[32,128], index: 0, kind: input, shape index: {}]
  %s1 = inlined_call_operand.vmem [shape: f32[1,128], index: 1, kind: input, shape index: {}]
  %s2 = inlined_call_operand.vmem [shape: f32[1,128], index: 2, kind: input, shape index: {}]
  %s3 = inlined_call_operand.vmem [shape: f32[32,128], index: 3, kind: output, shape index: {}]
  %s4 = sld [smem:[#allocation0]]
  $region22: #{_lambda_.16} parent=0
    _
  %s6 = ssub.s32 1, %s4
  %s7 = scalar_select 0, %s6, %s4
  // Predicated region
  $region2: #{_lambda_.16} parent=0 // pred_check
    _
  $region3: #{_lambda_.16} parent=0 // pred_check_branch
    %9 = sbr.rel (0) target = $region5
  $region4: #{_lambda_.16} parent=0 // pred_region
    _
  $region5: #{_lambda_.16} parent=0 // pred_fallthru
    _
  // Predicated region
  $region6: #{_lambda_.16} parent=0 // pred_check
    _
  $region7: #{_lambda_.16} parent=0 // pred_check_branch
    %11 = sbr.rel (0) target = $region9
  $region8: #{_lambda_.16} parent=0 // pred_region
    _
  $region9: #{_lambda_.16} parent=0 // pred_fallthru
    _
  // Predicated region
  $region10: #{_lambda_.16} parent=0 // pred_check
    _
  $region11: #{_lambda_.16} parent=0 // pred_check_branch
    %13 = sbr.rel (0) target = $region13
  $region12: #{_lambda_.16} parent=0 // pred_region
    _
  $region13: #{_lambda_.16} parent=0 // pred_fallthru
    _
  %v14 = vld [vmem:[%s0] sm:$0xff]
  %v15 = vld [vmem:[%s0 + $0x8] sm:$0xff]
  %v16 = vld [vmem:[%s0 + $0x10] sm:$0xff]
  %v17 = vld [vmem:[%s0 + $0x18] sm:$0xff]
  %18 = vadd.xlane.f32.xlu0 %v14
  %v19 = vpop.xlane.xlu0 %18
  %20 = vadd.xlane.f32.xlu0 %v15
  %v21 = vpop.xlane.xlu0 %20
  %22 = vadd.xlane.f32.xlu0 %v16
  %v23 = vpop.xlane.xlu0 %22
  %24 = vadd.xlane.f32.xlu0 %v17
  %v25 = vpop.xlane.xlu0 %24
  %v26 = vrcp.pop 128.0
  %v27 = vmul.f32 %v19, %v26
  %v28 = vmul.f32 %v21, %v26
  %v29 = vmul.f32 %v23, %v26
  %v30 = vmul.f32 %v25, %v26
  %v31 = vsub.f32 %v14, %v27
  %v32 = vsub.f32 %v15, %v28
  %v33 = vsub.f32 %v16, %v29
  %v34 = vsub.f32 %v17, %v30
  %v35 = vmul.f32 %v31, %v31
  %v36 = vmul.f32 %v32, %v32
  %v37 = vmul.f32 %v33, %v33
  %v38 = vmul.f32 %v34, %v34
  %39 = vadd.xlane.f32.xlu0 %v35
  %v40 = vpop.xlane.xlu0 %39
  %41 = vadd.xlane.f32.xlu0 %v36
  %v42 = vpop.xlane.xlu0 %41
  %43 = vadd.xlane.f32.xlu0 %v37
  %v44 = vpop.xlane.xlu0 %43
  %45 = vadd.xlane.f32.xlu0 %v38
  %v46 = vpop.xlane.xlu0 %45
  %v47 = vmul.f32 %v40, %v26
  %v48 = vmul.f32 %v42, %v26
  %v49 = vmul.f32 %v44, %v26
  %v50 = vmul.f32 %v46, %v26
  %v51 = vadd.f32 %v47, 1e-05
  %v52 = vadd.f32 %v48, 1e-05
  %v53 = vadd.f32 %v49, 1e-05
  %v54 = vadd.f32 %v50, 1e-05
  %v55 = vrsqrt.pop %v51
  %v56 = vrsqrt.pop %v52
  %v57 = vrsqrt.pop %v53
  %v58 = vrsqrt.pop %v54
  %v59 = vmul.f32 %v31, %v55
  %v60 = vmul.f32 %v32, %v56
  %v61 = vmul.f32 %v33, %v57
  %v62 = vmul.f32 %v34, %v58
  %v63 = vld [vmem:[%s1] sm:$0x1]
  %v65 = vlaneseq
  %v66 = vshrl.u32 %v65, 7
  %v67 = vsub.s32 0, %v66
  %v68 = vrot.slane %v63, %v67
  %v70 = vmul.f32 %v59, %v68
  %v71 = vmul.f32 %v60, %v68
  %v72 = vmul.f32 %v61, %v68
  %v73 = vmul.f32 %v62, %v68
  %v74 = vld [vmem:[%s2] sm:$0x1]
  %v76 = vlaneseq
  %v77 = vshrl.u32 %v76, 7
  %v78 = vsub.s32 0, %v77
  %v79 = vrot.slane %v74, %v78
  %v81 = vadd.f32 %v70, %v79
  %v82 = vadd.f32 %v71, %v79
  %v83 = vadd.f32 %v72, %v79
  %v84 = vadd.f32 %v73, %v79
  %85 = vst [vmem:[%s3] sm:$0xff] %v81
  %86 = vst [vmem:[%s3 + $0x8] sm:$0xff] %v82
  %87 = vst [vmem:[%s3 + $0x10] sm:$0xff] %v83
  %88 = vst [vmem:[%s3 + $0x18] sm:$0xff] %v84
  // Predicated region
  $region14: #{_lambda_.16} parent=0 // pred_check
    _
  $region15: #{_lambda_.16} parent=0 // pred_check_branch
    %90 = sbr.rel (0) target = $region17
  $region16: #{_lambda_.16} parent=0 // pred_region
    _
  $region17: #{_lambda_.16} parent=0 // pred_fallthru
    _
  // Predicated region
  $region18: #{_lambda_.16} parent=0 // pred_check
    _
  $region19: #{_lambda_.16} parent=0 // pred_check_branch
    %92 = sbr.rel (0) target = $region21
  $region20: #{_lambda_.16} parent=0 // pred_region
    _
  $region21: #{_lambda_.16} parent=0 // pred_fallthru
    _

// kernel: _lambda_.19
$region0: #{_lambda_.19}
  #allocation0 [shape = 'u32[]', space=smem, size = 0x4, offset = 0x4, fixed_abs, tag = 'smem constant byte address 0x4 - core index']
  #allocation1 [shape = 'u32[144,128]{1,0:T(1,128)}', space=vmem, size = 0x12000, scoped, tag = 'internal scratch']
  #allocation2 [shape = 'f32[32,128]{1,0:T(8,128)}', space=vmem, size = 0x4000, scoped, tag = 'scratch operand']
  %s0 = inlined_call_operand.vmem [shape: f32[32,128], index: 0, kind: input, shape index: {}]
  %s1 = inlined_call_operand.vmem [shape: f32[128,128], index: 1, kind: input, shape index: {}]
  %s2 = inlined_call_operand.vmem [shape: f32[1,128], index: 2, kind: input, shape index: {}]
  %s3 = inlined_call_operand.vmem [shape: f32[32,128], index: 3, kind: output, shape index: {}]
  %s4 = sld [smem:[#allocation0]]
  $region30: #{_lambda_.19} parent=0
    _
  %s6 = ssub.s32 1, %s4
  %s7 = scalar_select 0, %s6, %s4
  // Predicated region
  $region2: #{_lambda_.19} parent=0 // pred_check
    _
  $region3: #{_lambda_.19} parent=0 // pred_check_branch
    %9 = sbr.rel (0) target = $region5
  $region4: #{_lambda_.19} parent=0 // pred_region
    _
  $region5: #{_lambda_.19} parent=0 // pred_fallthru
    _
  // Predicated region
  $region6: #{_lambda_.19} parent=0 // pred_check
    _
  $region7: #{_lambda_.19} parent=0 // pred_check_branch
    %11 = sbr.rel (0) target = $region9
  $region8: #{_lambda_.19} parent=0 // pred_region
    _
  $region9: #{_lambda_.19} parent=0 // pred_fallthru
    _
  // Predicated region
  $region10: #{_lambda_.19} parent=0 // pred_check
    _
  $region11: #{_lambda_.19} parent=0 // pred_check_branch
    %13 = sbr.rel (0) target = $region13
  $region12: #{_lambda_.19} parent=0 // pred_region
    _
  $region13: #{_lambda_.19} parent=0 // pred_fallthru
    _
  %p14 = scmp.eq.s32.totalorder 0, 0
  // Predicated region
  $region14: #{_lambda_.19} parent=0 // pred_check
    %p15 = pneg %p14
  $region15: #{_lambda_.19} parent=0 // pred_check_branch
    %17 = sbr.rel (%p15) target = $region17
  $region16: #{_lambda_.19} parent=0 // pred_region
    %18 = vst [vmem:[#allocation2] sm:$0xff] 0.0
    %19 = vst [vmem:[#allocation2 + $0x8] sm:$0xff] 0.0
    %20 = vst [vmem:[#allocation2 + $0x10] sm:$0xff] 0.0
    %21 = vst [vmem:[#allocation2 + $0x18] sm:$0xff] 0.0
  $region17: #{_lambda_.19} parent=0 // pred_fallthru
    _
  %v22 = vld [vmem:[#allocation2] sm:$0xff]
  %v23 = vld [vmem:[#allocation2 + $0x8] sm:$0xff]
  %v24 = vld [vmem:[#allocation2 + $0x10] sm:$0xff]
  %v25 = vld [vmem:[#allocation2 + $0x18] sm:$0xff]
  %v26 = vld [vmem:[%s0] sm:$0xff]
  %v27 = vld [vmem:[%s0 + $0x8] sm:$0xff]
  %v28 = vld [vmem:[%s0 + $0x10] sm:$0xff]
  %v29 = vld [vmem:[%s0 + $0x18] sm:$0xff]
  %v30 = vld [vmem:[%s1] sm:$0xff]
  %v31 = vld [vmem:[%s1 + $0x8] sm:$0xff]
  %v32 = vld [vmem:[%s1 + $0x10] sm:$0xff]
  %v33 = vld [vmem:[%s1 + $0x18] sm:$0xff]
  %v34 = vld [vmem:[%s1 + $0x20] sm:$0xff]
  %v35 = vld [vmem:[%s1 + $0x28] sm:$0xff]
  %v36 = vld [vmem:[%s1 + $0x30] sm:$0xff]
  %v37 = vld [vmem:[%s1 + $0x38] sm:$0xff]
  %v38 = vld [vmem:[%s1 + $0x40] sm:$0xff]
  %v39 = vld [vmem:[%s1 + $0x48] sm:$0xff]
  %v40 = vld [vmem:[%s1 + $0x50] sm:$0xff]
  %v41 = vld [vmem:[%s1 + $0x58] sm:$0xff]
  %v42 = vld [vmem:[%s1 + $0x60] sm:$0xff]
  %v43 = vld [vmem:[%s1 + $0x68] sm:$0xff]
  %v44 = vld [vmem:[%s1 + $0x70] sm:$0xff]
  %v45 = vld [vmem:[%s1 + $0x78] sm:$0xff]
  %46 = vmatprep.subr.mxu0 0.0
  %47 = vmatpush1.msra.mxu0 %v30
  %48 = vmatprep.subr.mxu0 0.0
  %49 = vmatpush1.msra.mxu0 %v31
  %50 = vmatprep.subr.mxu0 0.0
  %51 = vmatpush1.msra.mxu0 %v32
  %52 = vmatprep.subr.mxu0 0.0
  %53 = vmatpush1.msra.mxu0 %v33
  %54 = vmatprep.subr.mxu0 0.0
  %55 = vmatpush1.msra.mxu0 %v34
  %56 = vmatprep.subr.mxu0 0.0
  %57 = vmatpush1.msra.mxu0 %v35
  %58 = vmatprep.subr.mxu0 0.0
  %59 = vmatpush1.msra.mxu0 %v36
  %60 = vmatprep.subr.mxu0 0.0
  %61 = vmatpush1.msra.mxu0 %v37
  %62 = vmatprep.subr.mxu0 0.0
  %63 = vmatpush1.msra.mxu0 %v38
  %64 = vmatprep.subr.mxu0 0.0
  %65 = vmatpush1.msra.mxu0 %v39
  %66 = vmatprep.subr.mxu0 0.0
  %67 = vmatpush1.msra.mxu0 %v40
  %68 = vmatprep.subr.mxu0 0.0
  %69 = vmatpush1.msra.mxu0 %v41
  %70 = vmatprep.subr.mxu0 0.0
  %71 = vmatpush1.msra.mxu0 %v42
  %72 = vmatprep.subr.mxu0 0.0
  %73 = vmatpush1.msra.mxu0 %v43
  %74 = vmatprep.subr.mxu0 0.0
  %75 = vmatpush1.msra.mxu0 %v44
  %76 = vmatprep.subr.mxu0 0.0
  %77 = vmatpush1.msra.mxu0 %v45
  %78 = vmatprep.subr.mxu0 0.0
  %79 = vmatpush1.msra.mxu0 0.0
  %80 = vmatprep.subr.mxu0 0.0
  %81 = vmatpush1.msra.mxu0 0.0
  %82 = vmatprep.subr.mxu0 0.0
  %83 = vmatpush1.msra.mxu0 0.0
  %84 = vmatprep.subr.mxu0 0.0
  %85 = vmatpush1.msra.mxu0 0.0
  %86 = vmatprep.subr.mxu0 0.0
  %87 = vmatpush1.msra.mxu0 0.0
  %88 = vmatprep.subr.mxu0 0.0
  %89 = vmatpush1.msra.mxu0 0.0
  %90 = vmatprep.subr.mxu0 0.0
  %91 = vmatpush1.msra.mxu0 0.0
  %92 = vmatprep.subr.mxu0 0.0
  %93 = vmatpush1.msra.mxu0 0.0
  %94 = vmatprep.subr.mxu0 0.0
  %95 = vmatpush1.msra.mxu0 0.0
  %96 = vmatprep.subr.mxu0 0.0
  %97 = vmatpush1.msra.mxu0 0.0
  %98 = vmatprep.subr.mxu0 0.0
  %99 = vmatpush1.msra.mxu0 0.0
  %100 = vmatprep.subr.mxu0 0.0
  %101 = vmatpush1.msra.mxu0 0.0
  %102 = vmatprep.subr.mxu0 0.0
  %103 = vmatpush1.msra.mxu0 0.0
  %104 = vmatprep.subr.mxu0 0.0
  %105 = vmatpush1.msra.mxu0 0.0
  %106 = vmatprep.subr.mxu0 0.0
  %107 = vmatpush1.msra.mxu0 0.0
  %108 = vmatprep.subr.mxu0 0.0
  %109 = vmatpush1.msra.mxu0 0.0
  %110 = vmatprep.mubr.f32.mxu0 0.0
  %111 = vmatmul.mubr.f32.gmra.mrb[0].mxu0 %v26
  %v112 = vpop.f32.mrb[0].mxu0
  %v113 = vadd.f32 0.0, %v112
  %v114 = vpop.f32.mrb[0].mxu0
  %115 = vmatprep.mubr.f32.mxu0 0.0
  %116 = vmatmul.mubr.f32.gmra.mrb[0].mxu0 %v27
  %v117 = vpop.f32.mrb[0].mxu0
  %v118 = vadd.f32 0.0, %v117
  %v119 = vpop.f32.mrb[0].mxu0
  %120 = vmatprep.mubr.f32.mxu0 0.0
  %121 = vmatmul.mubr.f32.gmra.mrb[0].mxu0 %v28
  %v122 = vpop.f32.mrb[0].mxu0
  %v123 = vadd.f32 0.0, %v122
  %v124 = vpop.f32.mrb[0].mxu0
  %125 = vmatprep.mubr.f32.mxu0 0.0
  %126 = vmatmul.mubr.f32.gmra.mrb[0].mxu0 %v29
  %v127 = vpop.f32.mrb[0].mxu0
  %v128 = vadd.f32 0.0, %v127
  %v129 = vpop.f32.mrb[0].mxu0
  %130 = vdwg.mxu0
  %v131 = vadd.f32 %v22, %v113
  %v132 = vadd.f32 %v23, %v118
  %v133 = vadd.f32 %v24, %v123
  %v134 = vadd.f32 %v25, %v128
  %135 = vst [vmem:[#allocation2] sm:$0xff] %v131
  %136 = vst [vmem:[#allocation2 + $0x8] sm:$0xff] %v132
  %137 = vst [vmem:[#allocation2 + $0x10] sm:$0xff] %v133
  %138 = vst [vmem:[#allocation2 + $0x18] sm:$0xff] %v134
  // Predicated region
  $region18: #{_lambda_.19} parent=0 // pred_check
    %p139 = pneg %p14
  $region19: #{_lambda_.19} parent=0 // pred_check_branch
    %141 = sbr.rel (%p139) target = $region21
  $region20: #{_lambda_.19} parent=0 // pred_region
    %v142 = vld [vmem:[#allocation2] sm:$0xff]
    %v143 = vld [vmem:[#allocation2 + $0x8] sm:$0xff]
    %v144 = vld [vmem:[#allocation2 + $0x10] sm:$0xff]
    %v145 = vld [vmem:[#allocation2 + $0x18] sm:$0xff]
    %v146 = vld [vmem:[%s2] sm:$0x1]
    %v148 = vlaneseq
    %v149 = vshrl.u32 %v148, 7
    %v150 = vsub.s32 0, %v149
    %v151 = vrot.slane %v146, %v150
    %v153 = vadd.f32 %v142, %v151
    %v154 = vadd.f32 %v143, %v151
    %v155 = vadd.f32 %v144, %v151
    %v156 = vadd.f32 %v145, %v151
    %157 = vst [vmem:[%s3] sm:$0xff] %v153
    %158 = vst [vmem:[%s3 + $0x8] sm:$0xff] %v154
    %159 = vst [vmem:[%s3 + $0x10] sm:$0xff] %v155
    %160 = vst [vmem:[%s3 + $0x18] sm:$0xff] %v156
  $region21: #{_lambda_.19} parent=0 // pred_fallthru
    _
  // Predicated region
  $region22: #{_lambda_.19} parent=0 // pred_check
    _
  $region23: #{_lambda_.19} parent=0 // pred_check_branch
    %162 = sbr.rel (0) target = $region25
  $region24: #{_lambda_.19} parent=0 // pred_region
    _
  $region25: #{_lambda_.19} parent=0 // pred_fallthru
    _
  // Predicated region
  $region26: #{_lambda_.19} parent=0 // pred_check
    _
  $region27: #{_lambda_.19} parent=0 // pred_check_branch
    %164 = sbr.rel (0) target = $region29
  $region28: #{_lambda_.19} parent=0 // pred_region
    _
  $region29: #{_lambda_.19} parent=0 // pred_fallthru
    _

// kernel: _lambda_.17
$region0: #{_lambda_.17}
  #allocation0 [shape = 'u32[]', space=smem, size = 0x4, offset = 0x4, fixed_abs, tag = 'smem constant byte address 0x4 - core index']
  #allocation1 [shape = 'u32[144,128]{1,0:T(1,128)}', space=vmem, size = 0x12000, scoped, tag = 'internal scratch']
  #allocation2 [shape = 'f32[32,384]{1,0:T(8,128)}', space=vmem, size = 0xc000, scoped, tag = 'scratch operand']
  %s0 = inlined_call_operand.vmem [shape: f32[32,128], index: 0, kind: input, shape index: {}]
  %s1 = inlined_call_operand.vmem [shape: f32[128,384], index: 1, kind: input, shape index: {}]
  %s2 = inlined_call_operand.vmem [shape: f32[1,384], index: 2, kind: input, shape index: {}]
  %s3 = inlined_call_operand.vmem [shape: f32[32,384], index: 3, kind: output, shape index: {}]
  %s4 = sld [smem:[#allocation0]]
  $region30: #{_lambda_.17} parent=0
    _
  %s6 = ssub.s32 1, %s4
  %s7 = scalar_select 0, %s6, %s4
  // Predicated region
  $region2: #{_lambda_.17} parent=0 // pred_check
    _
  $region3: #{_lambda_.17} parent=0 // pred_check_branch
    %9 = sbr.rel (0) target = $region5
  $region4: #{_lambda_.17} parent=0 // pred_region
    _
  $region5: #{_lambda_.17} parent=0 // pred_fallthru
    _
  // Predicated region
  $region6: #{_lambda_.17} parent=0 // pred_check
    _
  $region7: #{_lambda_.17} parent=0 // pred_check_branch
    %11 = sbr.rel (0) target = $region9
  $region8: #{_lambda_.17} parent=0 // pred_region
    _
  $region9: #{_lambda_.17} parent=0 // pred_fallthru
    _
  // Predicated region
  $region10: #{_lambda_.17} parent=0 // pred_check
    _
  $region11: #{_lambda_.17} parent=0 // pred_check_branch
    %13 = sbr.rel (0) target = $region13
  $region12: #{_lambda_.17} parent=0 // pred_region
    _
  $region13: #{_lambda_.17} parent=0 // pred_fallthru
    _
  %p14 = scmp.eq.s32.totalorder 0, 0
  // Predicated region
  $region14: #{_lambda_.17} parent=0 // pred_check
    %p15 = pneg %p14
  $region15: #{_lambda_.17} parent=0 // pred_check_branch
    %17 = sbr.rel (%p15) target = $region17
  $region16: #{_lambda_.17} parent=0 // pred_region
    %18 = vst [vmem:[#allocation2] sm:$0xff] 0.0
    %19 = vst [vmem:[#allocation2 + $0x8] sm:$0xff] 0.0
    %20 = vst [vmem:[#allocation2 + $0x10] sm:$0xff] 0.0
    %21 = vst [vmem:[#allocation2 + $0x18] sm:$0xff] 0.0
    %22 = vst [vmem:[#allocation2 + $0x20] sm:$0xff] 0.0
    %23 = vst [vmem:[#allocation2 + $0x28] sm:$0xff] 0.0
    %24 = vst [vmem:[#allocation2 + $0x30] sm:$0xff] 0.0
    %25 = vst [vmem:[#allocation2 + $0x38] sm:$0xff] 0.0
    %26 = vst [vmem:[#allocation2 + $0x40] sm:$0xff] 0.0
    %27 = vst [vmem:[#allocation2 + $0x48] sm:$0xff] 0.0
    %28 = vst [vmem:[#allocation2 + $0x50] sm:$0xff] 0.0
    %29 = vst [vmem:[#allocation2 + $0x58] sm:$0xff] 0.0
  $region17: #{_lambda_.17} parent=0 // pred_fallthru
    _
  %v30 = vld [vmem:[#allocation2] sm:$0xff]
  %v31 = vld [vmem:[#allocation2 + $0x8] sm:$0xff]
  %v32 = vld [vmem:[#allocation2 + $0x10] sm:$0xff]
  %v33 = vld [vmem:[#allocation2 + $0x18] sm:$0xff]
  %v34 = vld [vmem:[#allocation2 + $0x20] sm:$0xff]
  %v35 = vld [vmem:[#allocation2 + $0x28] sm:$0xff]
  %v36 = vld [vmem:[#allocation2 + $0x30] sm:$0xff]
  %v37 = vld [vmem:[#allocation2 + $0x38] sm:$0xff]
  %v38 = vld [vmem:[#allocation2 + $0x40] sm:$0xff]
  %v39 = vld [vmem:[#allocation2 + $0x48] sm:$0xff]
  %v40 = vld [vmem:[#allocation2 + $0x50] sm:$0xff]
  %v41 = vld [vmem:[#allocation2 + $0x58] sm:$0xff]
  %v42 = vld [vmem:[%s0] sm:$0xff]
  %v43 = vld [vmem:[%s0 + $0x8] sm:$0xff]
  %v44 = vld [vmem:[%s0 + $0x10] sm:$0xff]
  %v45 = vld [vmem:[%s0 + $0x18] sm:$0xff]
  %v46 = vld [vmem:[%s1] sm:$0xff]
  %v47 = vld [vmem:[%s1 + $0x8] sm:$0xff]
  %v48 = vld [vmem:[%s1 + $0x10] sm:$0xff]
  %v49 = vld [vmem:[%s1 + $0x18] sm:$0xff]
  %v50 = vld [vmem:[%s1 + $0x20] sm:$0xff]
  %v51 = vld [vmem:[%s1 + $0x28] sm:$0xff]
  %v52 = vld [vmem:[%s1 + $0x30] sm:$0xff]
  %v53 = vld [vmem:[%s1 + $0x38] sm:$0xff]
  %v54 = vld [vmem:[%s1 + $0x40] sm:$0xff]
  %v55 = vld [vmem:[%s1 + $0x48] sm:$0xff]
  %v56 = vld [vmem:[%s1 + $0x50] sm:$0xff]
  %v57 = vld [vmem:[%s1 + $0x58] sm:$0xff]
  %v58 = vld [vmem:[%s1 + $0x60] sm:$0xff]
  %v59 = vld [vmem:[%s1 + $0x68] sm:$0xff]
  %v60 = vld [vmem:[%s1 + $0x70] sm:$0xff]
  %v61 = vld [vmem:[%s1 + $0x78] sm:$0xff]
  %v62 = vld [vmem:[%s1 + $0x80] sm:$0xff]
  %v63 = vld [vmem:[%s1 + $0x88] sm:$0xff]
  %v64 = vld [vmem:[%s1 + $0x90] sm:$0xff]
  %v65 = vld [vmem:[%s1 + $0x98] sm:$0xff]
  %v66 = vld [vmem:[%s1 + $0xa0] sm:$0xff]
  %v67 = vld [vmem:[%s1 + $0xa8] sm:$0xff]
  %v68 = vld [vmem:[%s1 + $0xb0] sm:$0xff]
  %v69 = vld [vmem:[%s1 + $0xb8] sm:$0xff]
  %v70 = vld [vmem:[%s1 + $0xc0] sm:$0xff]
  %v71 = vld [vmem:[%s1 + $0xc8] sm:$0xff]
  %v72 = vld [vmem:[%s1 + $0xd0] sm:$0xff]
  %v73 = vld [vmem:[%s1 + $0xd8] sm:$0xff]
  %v74 = vld [vmem:[%s1 + $0xe0] sm:$0xff]
  %v75 = vld [vmem:[%s1 + $0xe8] sm:$0xff]
  %v76 = vld [vmem:[%s1 + $0xf0] sm:$0xff]
  %v77 = vld [vmem:[%s1 + $0xf8] sm:$0xff]
  %v78 = vld [vmem:[%s1 + $0x100] sm:$0xff]
  %v79 = vld [vmem:[%s1 + $0x108] sm:$0xff]
  %v80 = vld [vmem:[%s1 + $0x110] sm:$0xff]
  %v81 = vld [vmem:[%s1 + $0x118] sm:$0xff]
  %v82 = vld [vmem:[%s1 + $0x120] sm:$0xff]
  %v83 = vld [vmem:[%s1 + $0x128] sm:$0xff]
  %v84 = vld [vmem:[%s1 + $0x130] sm:$0xff]
  %v85 = vld [vmem:[%s1 + $0x138] sm:$0xff]
  %v86 = vld [vmem:[%s1 + $0x140] sm:$0xff]
  %v87 = vld [vmem:[%s1 + $0x148] sm:$0xff]
  %v88 = vld [vmem:[%s1 + $0x150] sm:$0xff]
  %v89 = vld [vmem:[%s1 + $0x158] sm:$0xff]
  %v90 = vld [vmem:[%s1 + $0x160] sm:$0xff]
  %v91 = vld [vmem:[%s1 + $0x168] sm:$0xff]
  %v92 = vld [vmem:[%s1 + $0x170] sm:$0xff]
  %v93 = vld [vmem:[%s1 + $0x178] sm:$0xff]
  %94 = vmatprep.subr.mxu0 %v47
  %95 = vmatpush1.msra.mxu0 %v46
  %96 = vmatprep.subr.mxu0 %v50
  %97 = vmatpush1.msra.mxu0 %v49
  %98 = vmatprep.subr.mxu0 %v53
  %99 = vmatpush1.msra.mxu0 %v52
  %100 = vmatprep.subr.mxu0 %v56
  %101 = vmatpush1.msra.mxu0 %v55
  %102 = vmatprep.subr.mxu0 %v59
  %103 = vmatpush1.msra.mxu0 %v58
  %104 = vmatprep.subr.mxu0 %v62
  %105 = vmatpush1.msra.mxu0 %v61
  %106 = vmatprep.subr.mxu0 %v65
  %107 = vmatpush1.msra.mxu0 %v64
  %108 = vmatprep.subr.mxu0 %v68
  %109 = vmatpush1.msra.mxu0 %v67
  %110 = vmatprep.subr.mxu0 %v71
  %111 = vmatpush1.msra.mxu0 %v70
  %112 = vmatprep.subr.mxu0 %v74
  %113 = vmatpush1.msra.mxu0 %v73
  %114 = vmatprep.subr.mxu0 %v77
  %115 = vmatpush1.msra.mxu0 %v76
  %116 = vmatprep.subr.mxu0 %v80
  %117 = vmatpush1.msra.mxu0 %v79
  %118 = vmatprep.subr.mxu0 %v83
  %119 = vmatpush1.msra.mxu0 %v82
  %120 = vmatprep.subr.mxu0 %v86
  %121 = vmatpush1.msra.mxu0 %v85
  %122 = vmatprep.subr.mxu0 %v89
  %123 = vmatpush1.msra.mxu0 %v88
  %124 = vmatprep.subr.mxu0 %v92
  %125 = vmatpush1.msra.mxu0 %v91
  %126 = vmatprep.subr.mxu0 0.0
  %127 = vmatpush1.msra.mxu0 0.0
  %128 = vmatprep.subr.mxu0 0.0
  %129 = vmatpush1.msra.mxu0 0.0
  %130 = vmatprep.subr.mxu0 0.0
  %131 = vmatpush1.msra.mxu0 0.0
  %132 = vmatprep.subr.mxu0 0.0
  %133 = vmatpush1.msra.mxu0 0.0
  %134 = vmatprep.subr.mxu0 0.0
  %135 = vmatpush1.msra.mxu0 0.0
  %136 = vmatprep.subr.mxu0 0.0
  %137 = vmatpush1.msra.mxu0 0.0
  %138 = vmatprep.subr.mxu0 0.0
  %139 = vmatpush1.msra.mxu0 0.0
  %140 = vmatprep.subr.mxu0 0.0
  %141 = vmatpush1.msra.mxu0 0.0
  %142 = vmatprep.subr.mxu0 0.0
  %143 = vmatpush1.msra.mxu0 0.0
  %144 = vmatprep.subr.mxu0 0.0
  %145 = vmatpush1.msra.mxu0 0.0
  %146 = vmatprep.subr.mxu0 0.0
  %147 = vmatpush1.msra.mxu0 0.0
  %148 = vmatprep.subr.mxu0 0.0
  %149 = vmatpush1.msra.mxu0 0.0
  %150 = vmatprep.subr.mxu0 0.0
  %151 = vmatpush1.msra.mxu0 0.0
  %152 = vmatprep.subr.mxu0 0.0
  %153 = vmatpush1.msra.mxu0 0.0
  %154 = vmatprep.subr.mxu0 0.0
  %155 = vmatpush1.msra.mxu0 0.0
  %156 = vmatprep.subr.mxu0 0.0
  %157 = vmatpush1.msra.mxu0 0.0
  %158 = vmatprep.mubr.f32.mxu0 0.0
  %159 = vmatmul.mubr.f32.gmra.mrb[0].mxu0 %v42
  %v160 = vpop.f32.mrb[0].mxu0
  %v161 = vadd.f32 0.0, %v160
  %v162 = vpop.f32.mrb[0].mxu0
  %v163 = vadd.f32 0.0, %v162
  %164 = vmatprep.mubr.f32.mxu0 0.0
  %165 = vmatmul.mubr.f32.gmra.mrb[0].mxu0 %v43
  %v166 = vpop.f32.mrb[0].mxu0
  %v167 = vadd.f32 0.0, %v166
  %v168 = vpop.f32.mrb[0].mxu0
  %v169 = vadd.f32 0.0, %v168
  %170 = vmatprep.mubr.f32.mxu0 0.0
  %171 = vmatmul.mubr.f32.gmra.mrb[0].mxu0 %v44
  %v172 = vpop.f32.mrb[0].mxu0
  %v173 = vadd.f32 0.0, %v172
  %v174 = vpop.f32.mrb[0].mxu0
  %v175 = vadd.f32 0.0, %v174
  %176 = vmatprep.mubr.f32.mxu0 0.0
  %177 = vmatmul.mubr.f32.gmra.mrb[0].mxu0 %v45
  %v178 = vpop.f32.mrb[0].mxu0
  %v179 = vadd.f32 0.0, %v178
  %v180 = vpop.f32.mrb[0].mxu0
  %v181 = vadd.f32 0.0, %v180
  %182 = vdwg.mxu0
  %183 = vmatprep.subr.mxu0 0.0
  %184 = vmatpush1.msra.mxu0 %v48
  %185 = vmatprep.subr.mxu0 0.0
  %186 = vmatpush1.msra.mxu0 %v51
  %187 = vmatprep.subr.mxu0 0.0
  %188 = vmatpush1.msra.mxu0 %v54
  %189 = vmatprep.subr.mxu0 0.0
  %190 = vmatpush1.msra.mxu0 %v57
  %191 = vmatprep.subr.mxu0 0.0
  %192 = vmatpush1.msra.mxu0 %v60
  %193 = vmatprep.subr.mxu0 0.0
  %194 = vmatpush1.msra.mxu0 %v63
  %195 = vmatprep.subr.mxu0 0.0
  %196 = vmatpush1.msra.mxu0 %v66
  %197 = vmatprep.subr.mxu0 0.0
  %198 = vmatpush1.msra.mxu0 %v69
  %199 = vmatprep.subr.mxu0 0.0
  %200 = vmatpush1.msra.mxu0 %v72
  %201 = vmatprep.subr.mxu0 0.0
  %202 = vmatpush1.msra.mxu0 %v75
  %203 = vmatprep.subr.mxu0 0.0
  %204 = vmatpush1.msra.mxu0 %v78
  %205 = vmatprep.subr.mxu0 0.0
  %206 = vmatpush1.msra.mxu0 %v81
  %207 = vmatprep.subr.mxu0 0.0
  %208 = vmatpush1.msra.mxu0 %v84
  %209 = vmatprep.subr.mxu0 0.0
  %210 = vmatpush1.msra.mxu0 %v87
  %211 = vmatprep.subr.mxu0 0.0
  %212 = vmatpush1.msra.mxu0 %v90
  %213 = vmatprep.subr.mxu0 0.0
  %214 = vmatpush1.msra.mxu0 %v93
  %215 = vmatprep.subr.mxu0 0.0
  %216 = vmatpush1.msra.mxu0 0.0
  %217 = vmatprep.subr.mxu0 0.0
  %218 = vmatpush1.msra.mxu0 0.0
  %219 = vmatprep.subr.mxu0 0.0
  %220 = vmatpush1.msra.mxu0 0.0
  %221 = vmatprep.subr.mxu0 0.0
  %222 = vmatpush1.msra.mxu0 0.0
  %223 = vmatprep.subr.mxu0 0.0
  %224 = vmatpush1.msra.mxu0 0.0
  %225 = vmatprep.subr.mxu0 0.0
  %226 = vmatpush1.msra.mxu0 0.0
  %227 = vmatprep.subr.mxu0 0.0
  %228 = vmatpush1.msra.mxu0 0.0
  %229 = vmatprep.subr.mxu0 0.0
  %230 = vmatpush1.msra.mxu0 0.0
  %231 = vmatprep.subr.mxu0 0.0
  %232 = vmatpush1.msra.mxu0 0.0
  %233 = vmatprep.subr.mxu0 0.0
  %234 = vmatpush1.msra.mxu0 0.0
  %235 = vmatprep.subr.mxu0 0.0
  %236 = vmatpush1.msra.mxu0 0.0
  %237 = vmatprep.subr.mxu0 0.0
  %238 = vmatpush1.msra.mxu0 0.0
  %239 = vmatprep.subr.mxu0 0.0
  %240 = vmatpush1.msra.mxu0 0.0
  %241 = vmatprep.subr.mxu0 0.0
  %242 = vmatpush1.msra.mxu0 0.0
  %243 = vmatprep.subr.mxu0 0.0
  %244 = vmatpush1.msra.mxu0 0.0
  %245 = vmatprep.subr.mxu0 0.0
  %246 = vmatpush1.msra.mxu0 0.0
  %247 = vmatprep.mubr.f32.mxu0 0.0
  %248 = vmatmul.mubr.f32.gmra.mrb[0].mxu0 %v42
  %v249 = vpop.f32.mrb[0].mxu0
  %v250 = vadd.f32 0.0, %v249
  %v251 = vpop.f32.mrb[0].mxu0
  %252 = vmatprep.mubr.f32.mxu0 0.0
  %253 = vmatmul.mubr.f32.gmra.mrb[0].mxu0 %v43
  %v254 = vpop.f32.mrb[0].mxu0
  %v255 = vadd.f32 0.0, %v254
  %v256 = vpop.f32.mrb[0].mxu0
  %257 = vmatprep.mubr.f32.mxu0 0.0
  %258 = vmatmul.mubr.f32.gmra.mrb[0].mxu0 %v44
  %v259 = vpop.f32.mrb[0].mxu0
  %v260 = vadd.f32 0.0, %v259
  %v261 = vpop.f32.mrb[0].mxu0
  %262 = vmatprep.mubr.f32.mxu0 0.0
  %263 = vmatmul.mubr.f32.gmra.mrb[0].mxu0 %v45
  %v264 = vpop.f32.mrb[0].mxu0
  %v265 = vadd.f32 0.0, %v264
  %v266 = vpop.f32.mrb[0].mxu0
  %267 = vdwg.mxu0
  %v268 = vadd.f32 %v30, %v161
  %v269 = vadd.f32 %v31, %v163
  %v270 = vadd.f32 %v32, %v250
  %v271 = vadd.f32 %v33, %v167
  %v272 = vadd.f32 %v34, %v169
  %v273 = vadd.f32 %v35, %v255
  %v274 = vadd.f32 %v36, %v173
  %v275 = vadd.f32 %v37, %v175
  %v276 = vadd.f32 %v38, %v260
  %v277 = vadd.f32 %v39, %v179
  %v278 = vadd.f32 %v40, %v181
  %v279 = vadd.f32 %v41, %v265
  %280 = vst [vmem:[#allocation2] sm:$0xff] %v268
  %281 = vst [vmem:[#allocation2 + $0x8] sm:$0xff] %v269
  %282 = vst [vmem:[#allocation2 + $0x10] sm:$0xff] %v270
  %283 = vst [vmem:[#allocation2 + $0x18] sm:$0xff] %v271
  %284 = vst [vmem:[#allocation2 + $0x20] sm:$0xff] %v272
  %285 = vst [vmem:[#allocation2 + $0x28] sm:$0xff] %v273
  %286 = vst [vmem:[#allocation2 + $0x30] sm:$0xff] %v274
  %287 = vst [vmem:[#allocation2 + $0x38] sm:$0xff] %v275
  %288 = vst [vmem:[#allocation2 + $0x40] sm:$0xff] %v276
  %289 = vst [vmem:[#allocation2 + $0x48] sm:$0xff] %v277
  %290 = vst [vmem:[#allocation2 + $0x50] sm:$0xff] %v278
  %291 = vst [vmem:[#allocation2 + $0x58] sm:$0xff] %v279
  // Predicated region
  $region18: #{_lambda_.17} parent=0 // pred_check
    %p292 = pneg %p14
  $region19: #{_lambda_.17} parent=0 // pred_check_branch
    %294 = sbr.rel (%p292) target = $region21
  $region20: #{_lambda_.17} parent=0 // pred_region
    %v295 = vld [vmem:[#allocation2] sm:$0xff]
    %v296 = vld [vmem:[#allocation2 + $0x8] sm:$0xff]
    %v297 = vld [vmem:[#allocation2 + $0x10] sm:$0xff]
    %v298 = vld [vmem:[#allocation2 + $0x18] sm:$0xff]
    %v299 = vld [vmem:[#allocation2 + $0x20] sm:$0xff]
    %v300 = vld [vmem:[#allocation2 + $0x28] sm:$0xff]
    %v301 = vld [vmem:[#allocation2 + $0x30] sm:$0xff]
    %v302 = vld [vmem:[#allocation2 + $0x38] sm:$0xff]
    %v303 = vld [vmem:[#allocation2 + $0x40] sm:$0xff]
    %v304 = vld [vmem:[#allocation2 + $0x48] sm:$0xff]
    %v305 = vld [vmem:[#allocation2 + $0x50] sm:$0xff]
    %v306 = vld [vmem:[#allocation2 + $0x58] sm:$0xff]
    %v307 = vld [vmem:[%s2] sm:$0x7]
    %v309 = vlaneseq
    %v310 = vshrl.u32 %v309, 7
    %v311 = vsub.s32 0, %v310
    %v312 = vrot.slane %v307, %v311
    %v313 = vlaneseq
    %v314 = vshrl.u32 %v313, 7
    %v315 = vsub.s32 1, %v314
    %v316 = vrot.slane %v307, %v315
    %v317 = vlaneseq
    %v318 = vshrl.u32 %v317, 7
    %v319 = vsub.s32 2, %v318
    %v320 = vrot.slane %v307, %v319
    %v324 = vadd.f32 %v295, %v312
    %v325 = vadd.f32 %v296, %v316
    %v326 = vadd.f32 %v297, %v320
    %v327 = vadd.f32 %v298, %v312
    %v328 = vadd.f32 %v299, %v316
    %v329 = vadd.f32 %v300, %v320
    %v330 = vadd.f32 %v301, %v312
    %v331 = vadd.f32 %v302, %v316
    %v332 = vadd.f32 %v303, %v320
    %v333 = vadd.f32 %v304, %v312
    %v334 = vadd.f32 %v305, %v316
    %v335 = vadd.f32 %v306, %v320
    %336 = vst [vmem:[%s3] sm:$0xff] %v324
    %337 = vst [vmem:[%s3 + $0x8] sm:$0xff] %v325
    %338 = vst [vmem:[%s3 + $0x10] sm:$0xff] %v326
    %339 = vst [vmem:[%s3 + $0x18] sm:$0xff] %v327
    %340 = vst [vmem:[%s3 + $0x20] sm:$0xff] %v328
    %341 = vst [vmem:[%s3 + $0x28] sm:$0xff] %v329
    %342 = vst [vmem:[%s3 + $0x30] sm:$0xff] %v330
    %343 = vst [vmem:[%s3 + $0x38] sm:$0xff] %v331
    %344 = vst [vmem:[%s3 + $0x40] sm:$0xff] %v332
    %345 = vst [vmem:[%s3 + $0x48] sm:$0xff] %v333
    %346 = vst [vmem:[%s3 + $0x50] sm:$0xff] %v334
    %347 = vst [vmem:[%s3 + $0x58] sm:$0xff] %v335
  $region21: #{_lambda_.17} parent=0 // pred_fallthru
    _
  // Predicated region
  $region22: #{_lambda_.17} parent=0 // pred_check
    _
  $region23: #{_lambda_.17} parent=0 // pred_check_branch
    %349 = sbr.rel (0) target = $region25
  $region24: #{_lambda_.17} parent=0 // pred_region
    _
  $region25: #{_lambda_.17} parent=0 // pred_fallthru
    _
  // Predicated region
  $region26: #{_lambda_.17} parent=0 // pred_check
    _
  $region27: #{_lambda_.17} parent=0 // pred_check_branch
    %351 = sbr.rel (0) target = $region29
  $region28: #{_lambda_.17} parent=0 // pred_region
    _
  $region29: #{_lambda_.17} parent=0 // pred_fallthru
    _

// kernel: _lambda_.18
$region0: #{_lambda_.18}
  #allocation0 [shape = 'u32[]', space=smem, size = 0x4, offset = 0x4, fixed_abs, tag = 'smem constant byte address 0x4 - core index']
  #allocation1 [shape = 'u32[144,128]{1,0:T(1,128)}', space=vmem, size = 0x12000, scoped, tag = 'internal scratch']
  %s0 = inlined_call_operand.vmem [shape: f32[2,16,384], index: 0, kind: input, shape index: {}, may-alias: {0,1,2}]
  %s1 = inlined_call_operand.vmem [shape: f32[2,16,384], index: 1, kind: input, shape index: {}, may-alias: {0,1,2}]
  %s2 = inlined_call_operand.vmem [shape: f32[2,16,384], index: 2, kind: input, shape index: {}, may-alias: {0,1,2}]
  %s3 = inlined_call_operand.vmem [shape: f32[16,16], index: 3, kind: input, shape index: {}]
  %s4 = inlined_call_operand.vmem [shape: f32[2,16,128], index: 4, kind: output, shape index: {}]
  %s5 = sld [smem:[#allocation0]]
  $region163: #{_lambda_.18} parent=0
    _
  %s7 = ssub.s32 1, %s5
  %s8 = scalar_select 0, %s7, %s5
  $region1: #{_lambda_.18} parent=0
    #allocation2 [shape = 'u8[16384]{0}', space=vmem, size = 0x4000, scoped, tag = 'input window, operand 0']
    #allocation3 [shape = 'u8[16384]{0}', space=vmem, size = 0x4000, scoped, tag = 'input window, operand 1']
    #allocation4 [shape = 'u8[16384]{0}', space=vmem, size = 0x4000, scoped, tag = 'input window, operand 2']
    loop: start=0, step=1, limit=4
    $region2: #{_lambda_.18} parent=1 // loop_pre_header
      _
    $region3: #{_lambda_.18} parent=1 // loop_header
      %s10 = sphi 0, %s14
      %p11 = scmp.ge.s32.totalorder %s10, 4
      %s17 = sphi 0, %s29
      %s18 = sphi 0, %s25
      %s19 = sphi 0, %s17
      %s20 = sphi 0, %s18
      %s21 = sphi 0, %s19
      %s22 = sphi 0, %s20
      %s34 = sphi 0, %s36
      %s37 = sphi 0, %s34
      %s38 = sphi 0, %s37
      %s54 = sphi 0, %s38
      %s64 = sphi 0, %s66
      %s67 = sphi 0, %s64
      %s68 = sphi 0, %s67
      %s84 = sphi 0, %s68
      %s94 = sphi 0, %s96
      %s97 = sphi 0, %s94
      %s98 = sphi 0, %s97
      %s114 = sphi 0, %s98
      %s118 = sphi 0, %s118
      %s120 = sphi 0, %s118
      %s121 = sphi 0, %s120
      %s135 = sphi 0, %s121
      %s143 = sphi 0, %s145
      %s146 = sphi 0, %s143
      %s147 = sphi 0, %s146
      %s163 = sphi 0, %s147
    $region4: #{_lambda_.18} parent=1 // loop_header_branch
      %13 = sbr.rel (%p11) target = $region8
    $region5: #{_lambda_.18} parent=1 // loop_body
      %s15 = ssub.s32 %s10, 1
      %s16 = ssub.s32 %s10, 2
      %s23 = sadd.s32 1, %s18
      %p24 = scmp.ge.s32.totalorder %s23, 1
      %s25 = scalar_select %p24, 0, %s23
      %s26 = sadd.s32 1, %s17
      %s27 = scalar_select %p24, %s26, %s17
      %p28 = scmp.ge.s32.totalorder %s27, 2
      %s29 = scalar_select %p28, 0, %s27
      %s30 = ssub.s32 %s17, %s29
      %s31 = ssub.s32 %s18, %s25
      %s32 = sor.u32 %s30, %s31
      %p33 = scmp.eq.s32.totalorder %s32, 0
      %s35 = sadd.s32 %s34, 1
      %s36 = scalar_select %p33, %s34, %s35
      %p39 = pneg %p33
      %p40 = scmp.eq.s32.totalorder %s10, 1
      %p41 = por %p39, %p40
      %p42 = scmp.ne.s32.totalorder %s34, %s37
      %p43 = scmp.eq.s32.totalorder %s10, 0
      %p44 = por %p42, %p43
      %p45 = scmp.ne.s32.totalorder %s34, %s37
      %p46 = scmp.eq.s32.totalorder %s15, 1
      %p47 = por %p45, %p46
      %p48 = scmp.ne.s32.totalorder %s37, %s38
      %p49 = scmp.eq.s32.totalorder %s15, 0
      %p50 = por %p48, %p49
      %p51 = scmp.ne.s32.totalorder %s37, %s38
      %p52 = scmp.eq.s32.totalorder %s16, 1
      %p53 = por %p51, %p52
      %p55 = scmp.ne.s32.totalorder %s38, %s54
      %p56 = scmp.eq.s32.totalorder %s16, 0
      %p57 = por %p55, %p56
      %s58 = sadd.s32 %s18, 1
      %s59 = sadd.s32 %s25, 1
      %s60 = ssub.s32 %s17, %s29
      %s61 = ssub.s32 %s58, %s59
      %s62 = sor.u32 %s60, %s61
      %p63 = scmp.eq.s32.totalorder %s62, 0
      %s65 = sadd.s32 %s64, 1
      %s66 = scalar_select %p63, %s64, %s65
      %p69 = pneg %p63
      %p70 = scmp.eq.s32.totalorder %s10, 1
      %p71 = por %p69, %p70
      %p72 = scmp.ne.s32.totalorder %s64, %s67
      %p73 = scmp.eq.s32.totalorder %s10, 0
      %p74 = por %p72, %p73
      %p75 = scmp.ne.s32.totalorder %s64, %s67
      %p76 = scmp.eq.s32.totalorder %s15, 1
      %p77 = por %p75, %p76
      %p78 = scmp.ne.s32.totalorder %s67, %s68
      %p79 = scmp.eq.s32.totalorder %s15, 0
      %p80 = por %p78, %p79
      %p81 = scmp.ne.s32.totalorder %s67, %s68
      %p82 = scmp.eq.s32.totalorder %s16, 1
      %p83 = por %p81, %p82
      %p85 = scmp.ne.s32.totalorder %s68, %s84
      %p86 = scmp.eq.s32.totalorder %s16, 0
      %p87 = por %p85, %p86
      %s88 = sadd.s32 %s18, 2
      %s89 = sadd.s32 %s25, 2
      %s90 = ssub.s32 %s17, %s29
      %s91 = ssub.s32 %s88, %s89
      %s92 = sor.u32 %s90, %s91
      %p93 = scmp.eq.s32.totalorder %s92, 0
      %s95 = sadd.s32 %s94, 1
      %s96 = scalar_select %p93, %s94, %s95
      %p99 = pneg %p93
      %p100 = scmp.eq.s32.totalorder %s10, 1
      %p101 = por %p99, %p100
      %p102 = scmp.ne.s32.totalorder %s94, %s97
      %p103 = scmp.eq.s32.totalorder %s10, 0
      %p104 = por %p102, %p103
      %p105 = scmp.ne.s32.totalorder %s94, %s97
      %p106 = scmp.eq.s32.totalorder %s15, 1
      %p107 = por %p105, %p106
      %p108 = scmp.ne.s32.totalorder %s97, %s98
      %p109 = scmp.eq.s32.totalorder %s15, 0
      %p110 = por %p108, %p109
      %p111 = scmp.ne.s32.totalorder %s97, %s98
      %p112 = scmp.eq.s32.totalorder %s16, 1
      %p113 = por %p111, %p112
      %p115 = scmp.ne.s32.totalorder %s98, %s114
      %p116 = scmp.eq.s32.totalorder %s16, 0
      %p117 = por %p115, %p116
      %s119 = sadd.s32 %s118, 1
      %p122 = scmp.eq.s32.totalorder %s10, 1
      %p123 = scmp.ne.s32.totalorder %s118, %s120
      %p124 = scmp.eq.s32.totalorder %s10, 0
      %p125 = por %p123, %p124
      %p126 = scmp.ne.s32.totalorder %s118, %s120
      %p127 = scmp.eq.s32.totalorder %s15, 1
      %p128 = por %p126, %p127
      %p129 = scmp.ne.s32.totalorder %s120, %s121
      %p130 = scmp.eq.s32.totalorder %s15, 0
      %p131 = por %p129, %p130
      %p132 = scmp.ne.s32.totalorder %s120, %s121
      %p133 = scmp.eq.s32.totalorder %s16, 1
      %p134 = por %p132, %p133
      %p136 = scmp.ne.s32.totalorder %s121, %s135
      %p137 = scmp.eq.s32.totalorder %s16, 0
      %p138 = por %p136, %p137
      %s139 = ssub.s32 %s17, %s29
      %s140 = ssub.s32 %s18, %s25
      %s141 = sor.u32 %s139, %s140
      %p142 = scmp.eq.s32.totalorder %s141, 0
      %s144 = sadd.s32 %s143, 1
      %s145 = scalar_select %p142, %s143, %s144
      %p148 = pneg %p142
      %p149 = scmp.eq.s32.totalorder %s10, 1
      %p150 = por %p148, %p149
      %p151 = scmp.ne.s32.totalorder %s143, %s146
      %p152 = scmp.eq.s32.totalorder %s10, 0
      %p153 = por %p151, %p152
      %p154 = scmp.ne.s32.totalorder %s143, %s146
      %p155 = scmp.eq.s32.totalorder %s15, 1
      %p156 = por %p154, %p155
      %p157 = scmp.ne.s32.totalorder %s146, %s147
      %p158 = scmp.eq.s32.totalorder %s15, 0
      %p159 = por %p157, %p158
      %p160 = scmp.ne.s32.totalorder %s146, %s147
      %p161 = scmp.eq.s32.totalorder %s16, 1
      %p162 = por %p160, %p161
      %p164 = scmp.ne.s32.totalorder %s147, %s163
      %p165 = scmp.eq.s32.totalorder %s16, 0
      %p166 = por %p164, %p165
      %p167 = scmp.le.s32.totalorder 1, %s10
      %p168 = scmp.lt.s32.totalorder %s10, 3
      %p169 = pnand %p167, %p168
      %p170 = pneg %p169
      // Predicated region
      $region9: #{_lambda_.18} parent=5 // pred_check
        _
      $region10: #{_lambda_.18} parent=5 // pred_check_branch
        %172 = sbr.rel (%p169) target = $region12
      $region11: #{_lambda_.18} parent=5 // pred_region
        %s173 = ssub.s32 %s10, 1
        // Predicated region
        $region13: #{_lambda_.18} parent=11 // pred_check
          %p174 = pneg %p131
        $region14: #{_lambda_.18} parent=11 // pred_check_branch
          %176 = sbr.rel (%p174) target = $region16
        $region15: #{_lambda_.18} parent=11 // pred_region
          _
        $region16: #{_lambda_.18} parent=11 // pred_fallthru
          _
      $region12: #{_lambda_.18} parent=5 // pred_fallthru
        _
      %p177 = scmp.lt.s32.totalorder %s10, 2
      // Predicated region
      $region17: #{_lambda_.18} parent=5 // pred_check
        %p178 = pneg %p177
      $region18: #{_lambda_.18} parent=5 // pred_check_branch
        %180 = sbr.rel (%p178) target = $region20
      $region19: #{_lambda_.18} parent=5 // pred_region
        // Predicated region
        $region21: #{_lambda_.18} parent=19 // pred_check
          %p181 = pneg %p44
        $region22: #{_lambda_.18} parent=19 // pred_check_branch
          %183 = sbr.rel (%p181) target = $region24
        $region23: #{_lambda_.18} parent=19 // pred_region
          %s184 = sand.u32 %s34, 1
          %s185 = sand.u32 %s34, 1
          %s186 = smul.addr %s185, 16
          %s187 = scalar_lea.vmem [#allocation2], %s186
          %s188 = smul.addr %s17, 6
          %s189 = sadd.s32 %s18, %s188
          %s190 = smul.addr %s189, 8
          %s191 = scalar_lea.vmem %s0, %s190
          // Predicated region
          $region25: #{_lambda_.18} parent=23 // pred_check
            _
          $region26: #{_lambda_.18} parent=23 // pred_check_branch
            %193 = sbr.rel (0) target = $region28
          $region27: #{_lambda_.18} parent=23 // pred_region
            // Predicated region
            $region29: #{_lambda_.18} parent=27 // pred_check
              _
            $region30: #{_lambda_.18} parent=27 // pred_check_branch
              %195 = sbr.rel (0) target = $region32
            $region31: #{_lambda_.18} parent=27 // pred_region
              // Predicated region
              $region44: #{_lambda_.18} parent=31 // pred_check
                _
              $region45: #{_lambda_.18} parent=31 // pred_check_branch
                %212 = sbr.rel (0) target = $region47
              $region46: #{_lambda_.18} parent=31 // pred_region
                loop: start=0, step=1, limit=1
                $region48: #{_lambda_.18} parent=46 // loop_pre_header
                  _
                $region49: #{_lambda_.18} parent=46 // loop_header
                  %s214 = sphi 0, %s218
                  %p215 = scmp.ge.s32.totalorder %s214, 1
                  %s219 = sphi %s191, %s191
                  %s220 = sphi %s187, %s187
                $region50: #{_lambda_.18} parent=46 // loop_header_branch
                  %217 = sbr.rel (%p215) target = $region54
                $region51: #{_lambda_.18} parent=46 // loop_body
                  %v221 = vld [vmem:[%s219] sm:$0xff]
                  %222 = vst [vmem:[%s220] sm:$0xff] %v221
                  %v223 = vld [vmem:[%s219 + $0x18] sm:$0xff]
                  %224 = vst [vmem:[%s220 + $0x8] sm:$0xff] %v223
                $region52: #{_lambda_.18} parent=46 // loop_footer
                  %s218 = sadd.s32 1, %s214
                $region53: #{_lambda_.18} parent=46 // loop_footer_branch
                  %213 = sbr.rel target = $region49
                $region54: #{_lambda_.18} parent=46 // loop_exit
                  _
              $region47: #{_lambda_.18} parent=31 // pred_fallthru
                _
              // Predicated region
              $region55: #{_lambda_.18} parent=31 // pred_check
                _
              $region56: #{_lambda_.18} parent=31 // pred_check_branch
                %226 = sbr.rel target = $region58
              $region57: #{_lambda_.18} parent=31 // pred_region
                _
              $region58: #{_lambda_.18} parent=31 // pred_fallthru
                _
            $region32: #{_lambda_.18} parent=27 // pred_fallthru
              _
            // Predicated region
            $region33: #{_lambda_.18} parent=27 // pred_check
              _
            $region34: #{_lambda_.18} parent=27 // pred_check_branch
              %197 = sbr.rel target = $region36
            $region35: #{_lambda_.18} parent=27 // pred_region
              loop: start=0, step=1, limit=1
              $region37: #{_lambda_.18} parent=35 // loop_pre_header
                _
              $region38: #{_lambda_.18} parent=35 // loop_header
                %s200 = sphi 0, %s204
                %p201 = scmp.ge.s32.totalorder %s200, 1
                %s205 = sphi %s191, %s191
                %s206 = sphi %s187, %s187
              $region39: #{_lambda_.18} parent=35 // loop_header_branch
                %203 = sbr.rel (%p201) target = $region43
              $region40: #{_lambda_.18} parent=35 // loop_body
                %v207 = vld [vmem:[%s205] sm:$0xff]
                %208 = vst [vmem:[%s206] sm:$0xff] %v207
                %v209 = vld [vmem:[%s205 + $0x18] sm:$0xff]
                %210 = vst [vmem:[%s206 + $0x8] sm:$0xff] %v209
              $region41: #{_lambda_.18} parent=35 // loop_footer
                %s204 = sadd.s32 1, %s200
              $region42: #{_lambda_.18} parent=35 // loop_footer_branch
                %199 = sbr.rel target = $region38
              $region43: #{_lambda_.18} parent=35 // loop_exit
                _
            $region36: #{_lambda_.18} parent=27 // pred_fallthru
              _
          $region28: #{_lambda_.18} parent=23 // pred_fallthru
            _
          %227 = vnop
        $region24: #{_lambda_.18} parent=19 // pred_fallthru
          _
        // Predicated region
        $region59: #{_lambda_.18} parent=19 // pred_check
          %p228 = pneg %p74
        $region60: #{_lambda_.18} parent=19 // pred_check_branch
          %230 = sbr.rel (%p228) target = $region62
        $region61: #{_lambda_.18} parent=19 // pred_region
          %s231 = sand.u32 %s64, 1
          %s232 = sand.u32 %s64, 1
          %s233 = smul.addr %s232, 16
          %s234 = scalar_lea.vmem [#allocation3], %s233
          %s235 = sadd.s32 %s18, 1
          %s236 = smul.addr %s17, 6
          %s237 = sadd.s32 %s235, %s236
          %s238 = smul.addr %s237, 8
          %s239 = scalar_lea.vmem %s1, %s238
          // Predicated region
          $region63: #{_lambda_.18} parent=61 // pred_check
            _
          $region64: #{_lambda_.18} parent=61 // pred_check_branch
            %241 = sbr.rel (0) target = $region66
          $region65: #{_lambda_.18} parent=61 // pred_region
            // Predicated region
            $region67: #{_lambda_.18} parent=65 // pred_check
              _
            $region68: #{_lambda_.18} parent=65 // pred_check_branch
              %243 = sbr.rel (0) target = $region70
            $region69: #{_lambda_.18} parent=65 // pred_region
              // Predicated region
              $region82: #{_lambda_.18} parent=69 // pred_check
                _
              $region83: #{_lambda_.18} parent=69 // pred_check_branch
                %260 = sbr.rel (0) target = $region85
              $region84: #{_lambda_.18} parent=69 // pred_region
                loop: start=0, step=1, limit=1
                $region86: #{_lambda_.18} parent=84 // loop_pre_header
                  _
                $region87: #{_lambda_.18} parent=84 // loop_header
                  %s262 = sphi 0, %s266
                  %p263 = scmp.ge.s32.totalorder %s262, 1
                  %s267 = sphi %s239, %s239
                  %s268 = sphi %s234, %s234
                $region88: #{_lambda_.18} parent=84 // loop_header_branch
                  %265 = sbr.rel (%p263) target = $region92
                $region89: #{_lambda_.18} parent=84 // loop_body
                  %v269 = vld [vmem:[%s267] sm:$0xff]
                  %270 = vst [vmem:[%s268] sm:$0xff] %v269
                  %v271 = vld [vmem:[%s267 + $0x18] sm:$0xff]
                  %272 = vst [vmem:[%s268 + $0x8] sm:$0xff] %v271
                $region90: #{_lambda_.18} parent=84 // loop_footer
                  %s266 = sadd.s32 1, %s262
                $region91: #{_lambda_.18} parent=84 // loop_footer_branch
                  %261 = sbr.rel target = $region87
                $region92: #{_lambda_.18} parent=84 // loop_exit
                  _
              $region85: #{_lambda_.18} parent=69 // pred_fallthru
                _
              // Predicated region
              $region93: #{_lambda_.18} parent=69 // pred_check
                _
              $region94: #{_lambda_.18} parent=69 // pred_check_branch
                %274 = sbr.rel target = $region96
              $region95: #{_lambda_.18} parent=69 // pred_region
                _
              $region96: #{_lambda_.18} parent=69 // pred_fallthru
                _
            $region70: #{_lambda_.18} parent=65 // pred_fallthru
              _
            // Predicated region
            $region71: #{_lambda_.18} parent=65 // pred_check
              _
            $region72: #{_lambda_.18} parent=65 // pred_check_branch
              %245 = sbr.rel target = $region74
            $region73: #{_lambda_.18} parent=65 // pred_region
              loop: start=0, step=1, limit=1
              $region75: #{_lambda_.18} parent=73 // loop_pre_header
                _
              $region76: #{_lambda_.18} parent=73 // loop_header
                %s248 = sphi 0, %s252
                %p249 = scmp.ge.s32.totalorder %s248, 1
                %s253 = sphi %s239, %s239
                %s254 = sphi %s234, %s234
              $region77: #{_lambda_.18} parent=73 // loop_header_branch
                %251 = sbr.rel (%p249) target = $region81
              $region78: #{_lambda_.18} parent=73 // loop_body
                %v255 = vld [vmem:[%s253] sm:$0xff]
                %256 = vst [vmem:[%s254] sm:$0xff] %v255
                %v257 = vld [vmem:[%s253 + $0x18] sm:$0xff]
                %258 = vst [vmem:[%s254 + $0x8] sm:$0xff] %v257
              $region79: #{_lambda_.18} parent=73 // loop_footer
                %s252 = sadd.s32 1, %s248
              $region80: #{_lambda_.18} parent=73 // loop_footer_branch
                %247 = sbr.rel target = $region76
              $region81: #{_lambda_.18} parent=73 // loop_exit
                _
            $region74: #{_lambda_.18} parent=65 // pred_fallthru
              _
          $region66: #{_lambda_.18} parent=61 // pred_fallthru
            _
          %275 = vnop
        $region62: #{_lambda_.18} parent=19 // pred_fallthru
          _
        // Predicated region
        $region97: #{_lambda_.18} parent=19 // pred_check
          %p276 = pneg %p104
        $region98: #{_lambda_.18} parent=19 // pred_check_branch
          %278 = sbr.rel (%p276) target = $region100
        $region99: #{_lambda_.18} parent=19 // pred_region
          %s279 = sand.u32 %s94, 1
          %s280 = sand.u32 %s94, 1
          %s281 = smul.addr %s280, 16
          %s282 = scalar_lea.vmem [#allocation4], %s281
          %s283 = sadd.s32 %s18, 2
          %s284 = smul.addr %s17, 6
          %s285 = sadd.s32 %s283, %s284
          %s286 = smul.addr %s285, 8
          %s287 = scalar_lea.vmem %s2, %s286
          // Predicated region
          $region101: #{_lambda_.18} parent=99 // pred_check
            _
          $region102: #{_lambda_.18} parent=99 // pred_check_branch
            %289 = sbr.rel (0) target = $region104
          $region103: #{_lambda_.18} parent=99 // pred_region
            // Predicated region
            $region105: #{_lambda_.18} parent=103 // pred_check
              _
            $region106: #{_lambda_.18} parent=103 // pred_check_branch
              %291 = sbr.rel (0) target = $region108
            $region107: #{_lambda_.18} parent=103 // pred_region
              // Predicated region
              $region120: #{_lambda_.18} parent=107 // pred_check
                _
              $region121: #{_lambda_.18} parent=107 // pred_check_branch
                %308 = sbr.rel (0) target = $region123
              $region122: #{_lambda_.18} parent=107 // pred_region
                loop: start=0, step=1, limit=1
                $region124: #{_lambda_.18} parent=122 // loop_pre_header
                  _
                $region125: #{_lambda_.18} parent=122 // loop_header
                  %s310 = sphi 0, %s314
                  %p311 = scmp.ge.s32.totalorder %s310, 1
                  %s315 = sphi %s287, %s287
                  %s316 = sphi %s282, %s282
                $region126: #{_lambda_.18} parent=122 // loop_header_branch
                  %313 = sbr.rel (%p311) target = $region130
                $region127: #{_lambda_.18} parent=122 // loop_body
                  %v317 = vld [vmem:[%s315] sm:$0xff]
                  %318 = vst [vmem:[%s316] sm:$0xff] %v317
                  %v319 = vld [vmem:[%s315 + $0x18] sm:$0xff]
                  %320 = vst [vmem:[%s316 + $0x8] sm:$0xff] %v319
                $region128: #{_lambda_.18} parent=122 // loop_footer
                  %s314 = sadd.s32 1, %s310
                $region129: #{_lambda_.18} parent=122 // loop_footer_branch
                  %309 = sbr.rel target = $region125
                $region130: #{_lambda_.18} parent=122 // loop_exit
                  _
              $region123: #{_lambda_.18} parent=107 // pred_fallthru
                _
              // Predicated region
              $region131: #{_lambda_.18} parent=107 // pred_check
                _
              $region132: #{_lambda_.18} parent=107 // pred_check_branch
                %322 = sbr.rel target = $region134
              $region133: #{_lambda_.18} parent=107 // pred_region
                _
              $region134: #{_lambda_.18} parent=107 // pred_fallthru
                _
            $region108: #{_lambda_.18} parent=103 // pred_fallthru
              _
            // Predicated region
            $region109: #{_lambda_.18} parent=103 // pred_check
              _
            $region110: #{_lambda_.18} parent=103 // pred_check_branch
              %293 = sbr.rel target = $region112
            $region111: #{_lambda_.18} parent=103 // pred_region
              loop: start=0, step=1, limit=1
              $region113: #{_lambda_.18} parent=111 // loop_pre_header
                _
              $region114: #{_lambda_.18} parent=111 // loop_header
                %s296 = sphi 0, %s300
                %p297 = scmp.ge.s32.totalorder %s296, 1
                %s301 = sphi %s287, %s287
                %s302 = sphi %s282, %s282
              $region115: #{_lambda_.18} parent=111 // loop_header_branch
                %299 = sbr.rel (%p297) target = $region119
              $region116: #{_lambda_.18} parent=111 // loop_body
                %v303 = vld [vmem:[%s301] sm:$0xff]
                %304 = vst [vmem:[%s302] sm:$0xff] %v303
                %v305 = vld [vmem:[%s301 + $0x18] sm:$0xff]
                %306 = vst [vmem:[%s302 + $0x8] sm:$0xff] %v305
              $region117: #{_lambda_.18} parent=111 // loop_footer
                %s300 = sadd.s32 1, %s296
              $region118: #{_lambda_.18} parent=111 // loop_footer_branch
                %295 = sbr.rel target = $region114
              $region119: #{_lambda_.18} parent=111 // loop_exit
                _
            $region112: #{_lambda_.18} parent=103 // pred_fallthru
              _
          $region104: #{_lambda_.18} parent=99 // pred_fallthru
            _
          %323 = vnop
        $region100: #{_lambda_.18} parent=19 // pred_fallthru
          _
      $region20: #{_lambda_.18} parent=5 // pred_fallthru
        _
      %p324 = scmp.le.s32.totalorder 1, %s10
      %p325 = scmp.lt.s32.totalorder %s10, 3
      %p326 = pnand %p324, %p325
      %p327 = pneg %p326
      // Predicated region
      $region135: #{_lambda_.18} parent=5 // pred_check
        _
      $region136: #{_lambda_.18} parent=5 // pred_check_branch
        %329 = sbr.rel (%p326) target = $region138
      $region137: #{_lambda_.18} parent=5 // pred_region
        %s330 = ssub.s32 %s10, 1
        %s331 = sand.u32 %s37, 1
        %s332 = sand.u32 %s37, 1
        %s333 = smul.addr %s332, 16
        %s334 = scalar_lea.vmem [#allocation2], %s333
        // Predicated region
        $region139: #{_lambda_.18} parent=137 // pred_check
          %p335 = pneg %p50
        $region140: #{_lambda_.18} parent=137 // pred_check_branch
          %337 = sbr.rel (%p335) target = $region142
        $region141: #{_lambda_.18} parent=137 // pred_region
          _
        $region142: #{_lambda_.18} parent=137 // pred_fallthru
          _
        %s338 = sand.u32 %s67, 1
        %s339 = sand.u32 %s67, 1
        %s340 = smul.addr %s339, 16
        %s341 = scalar_lea.vmem [#allocation3], %s340
        // Predicated region
        $region143: #{_lambda_.18} parent=137 // pred_check
          %p342 = pneg %p80
        $region144: #{_lambda_.18} parent=137 // pred_check_branch
          %344 = sbr.rel (%p342) target = $region146
        $region145: #{_lambda_.18} parent=137 // pred_region
          _
        $region146: #{_lambda_.18} parent=137 // pred_fallthru
          _
        %s345 = sand.u32 %s97, 1
        %s346 = sand.u32 %s97, 1
        %s347 = smul.addr %s346, 16
        %s348 = scalar_lea.vmem [#allocation4], %s347
        // Predicated region
        $region147: #{_lambda_.18} parent=137 // pred_check
          %p349 = pneg %p110
        $region148: #{_lambda_.18} parent=137 // pred_check_branch
          %351 = sbr.rel (%p349) target = $region150
        $region149: #{_lambda_.18} parent=137 // pred_region
          _
        $region150: #{_lambda_.18} parent=137 // pred_fallthru
          _
        %s352 = sand.u32 %s37, 1
        %s353 = sand.u32 %s37, 1
        %s354 = smul.addr %s353, 16
        %s355 = scalar_lea.vmem [#allocation2], %s354
        %p356 = pneg %p50
        %p357 = pneg %p47
        %s358 = sand.u32 %s67, 1
        %s359 = sand.u32 %s67, 1
        %s360 = smul.addr %s359, 16
        %s361 = scalar_lea.vmem [#allocation3], %s360
        %p362 = pneg %p80
        %p363 = pneg %p77
        %s364 = sand.u32 %s97, 1
        %s365 = sand.u32 %s97, 1
        %s366 = smul.addr %s365, 16
        %s367 = scalar_lea.vmem [#allocation4], %s366
        %p368 = pneg %p110
        %p369 = pneg %p107
        %p370 = pneg %p131
        %p371 = pneg %p128
        %p372 = pneg %p159
        %p373 = pneg %p156
        %p374 = scmp.lt.s32.totalorder %s19, 1
        %s375 = scalar_select %p374, %s19, 1
        %p376 = scmp.lt.s32.totalorder %s20, 0
        %s377 = scalar_select %p376, %s20, 0
        %s378 = smul.addr %s375, 2
        %s379 = sadd.s32 %s377, %s378
        %s380 = smul.addr %s379, 8
        %s381 = scalar_lea.vmem %s4, %s380
        %s382 = sadd.s32 %s20, 1
        %s383 = sadd.s32 %s20, 2
        %p384 = scmp.lt.s32.totalorder %s19, 1
        %s385 = scalar_select %p384, %s19, 1
        %p386 = scmp.lt.s32.totalorder %s20, 0
        %s387 = scalar_select %p386, %s20, 0
        %s388 = smul.addr %s385, 2
        %s389 = sadd.s32 %s387, %s388
        %s390 = smul.addr %s389, 8
        %s391 = scalar_lea.vmem %s4, %s390
        %v392 = vld [vmem:[%s3] sm:$0xff]
        %v393 = vld [vmem:[%s3 + $0x8] sm:$0xff]
        %v394 = vld [vmem:[%s334] sm:$0xff]
        %v395 = vld [vmem:[%s334 + $0x8] sm:$0xff]
        %v396 = vld [vmem:[%s341] sm:$0xff]
        %v397 = vld [vmem:[%s341 + $0x8] sm:$0xff]
        %v398 = vld [vmem:[%s348] sm:$0xff]
        %v399 = vld [vmem:[%s348 + $0x8] sm:$0xff]
        %vm400 = vcmask 261120
        %v402 = vsel %vm400, %v394, 0
        %v405 = vsel %vm400, %v395, 0
        %v408 = vsel %vm400, %v396, 0
        %v411 = vsel %vm400, %v397, 0
        %413 = vmatprep.subr.mxu0 0.0
        %414 = vmatpush1.xpose.msra.mxu0 %v408
        %415 = vmatprep.subr.mxu0 0.0
        %416 = vmatpush1.xpose.msra.mxu0 %v411
        %417 = vmatprep.subr.mxu0 0.0
        %418 = vmatpush1.xpose.msra.mxu0 0.0
        %419 = vmatprep.subr.mxu0 0.0
        %420 = vmatpush1.xpose.msra.mxu0 0.0
        %421 = vmatprep.subr.mxu0 0.0
        %422 = vmatpush1.xpose.msra.mxu0 0.0
        %423 = vmatprep.subr.mxu0 0.0
        %424 = vmatpush1.xpose.msra.mxu0 0.0
        %425 = vmatprep.subr.mxu0 0.0
        %426 = vmatpush1.xpose.msra.mxu0 0.0
        %427 = vmatprep.subr.mxu0 0.0
        %428 = vmatpush1.xpose.msra.mxu0 0.0
        %429 = vmatprep.subr.mxu0 0.0
        %430 = vmatpush1.xpose.msra.mxu0 0.0
        %431 = vmatprep.subr.mxu0 0.0
        %432 = vmatpush1.xpose.msra.mxu0 0.0
        %433 = vmatprep.subr.mxu0 0.0
        %434 = vmatpush1.xpose.msra.mxu0 0.0
        %435 = vmatprep.subr.mxu0 0.0
        %436 = vmatpush1.xpose.msra.mxu0 0.0
        %437 = vmatprep.subr.mxu0 0.0
        %438 = vmatpush1.xpose.msra.mxu0 0.0
        %439 = vmatprep.subr.mxu0 0.0
        %440 = vmatpush1.xpose.msra.mxu0 0.0
        %441 = vmatprep.subr.mxu0 0.0
        %442 = vmatpush1.xpose.msra.mxu0 0.0
        %443 = vmatprep.subr.mxu0 0.0
        %444 = vmatpush1.xpose.msra.mxu0 0.0
        %445 = vmatprep.subr.mxu0 0.0
        %446 = vmatpush1.xpose.msra.mxu0 0.0
        %447 = vmatprep.subr.mxu0 0.0
        %448 = vmatpush1.xpose.msra.mxu0 0.0
        %449 = vmatprep.subr.mxu0 0.0
        %450 = vmatpush1.xpose.msra.mxu0 0.0
        %451 = vmatprep.subr.mxu0 0.0
        %452 = vmatpush1.xpose.msra.mxu0 0.0
        %453 = vmatprep.subr.mxu0 0.0
        %454 = vmatpush1.xpose.msra.mxu0 0.0
        %455 = vmatprep.subr.mxu0 0.0
        %456 = vmatpush1.xpose.msra.mxu0 0.0
        %457 = vmatprep.subr.mxu0 0.0
        %458 = vmatpush1.xpose.msra.mxu0 0.0
        %459 = vmatprep.subr.mxu0 0.0
        %460 = vmatpush1.xpose.msra.mxu0 0.0
        %461 = vmatprep.subr.mxu0 0.0
        %462 = vmatpush1.xpose.msra.mxu0 0.0
        %463 = vmatprep.subr.mxu0 0.0
        %464 = vmatpush1.xpose.msra.mxu0 0.0
        %465 = vmatprep.subr.mxu0 0.0
        %466 = vmatpush1.xpose.msra.mxu0 0.0
        %467 = vmatprep.subr.mxu0 0.0
        %468 = vmatpush1.xpose.msra.mxu0 0.0
        %469 = vmatprep.subr.mxu0 0.0
        %470 = vmatpush1.xpose.msra.mxu0 0.0
        %471 = vmatprep.subr.mxu0 0.0
        %472 = vmatpush1.xpose.msra.mxu0 0.0
        %473 = vmatprep.subr.mxu0 0.0
        %474 = vmatpush1.xpose.msra.mxu0 0.0
        %475 = vmatprep.subr.mxu0 0.0
        %476 = vmatpush1.xpose.msra.mxu0 0.0
        %477 = vmatprep.mubr.f32.mxu0 0.0
        %478 = vmatmul.mubr.f32.gmra.mrb[0].mxu0 %v402
        %v479 = vpop.f32.mrb[0].mxu0
        %v480 = vadd.f32 0.0, %v479
        %v481 = vpop.f32.mrb[0].mxu0
        %482 = vmatprep.mubr.f32.mxu0 0.0
        %483 = vmatmul.mubr.f32.gmra.mrb[0].mxu0 %v405
        %v484 = vpop.f32.mrb[0].mxu0
        %v485 = vadd.f32 0.0, %v484
        %v486 = vpop.f32.mrb[0].mxu0
        %487 = vdwg.mxu0
        %v488 = vmul.f32 %v480, 0.17677669
        %v489 = vmul.f32 %v485, 0.17677669
        %v490 = vadd.f32 %v488, %v392
        %v491 = vadd.f32 %v489, %v393
        %vm492 = vcmask 130048
        %v493 = vsel %vm492, %v490, -inf
        %494 = vmax.xlane.f32.xlu0 %v493
        %v495 = vpop.xlane.xlu0 %494
        %v496 = vsel %vm492, %v491, -inf
        %497 = vmax.xlane.f32.xlu0 %v496
        %v498 = vpop.xlane.xlu0 %497
        %v499 = vsub.f32 %v490, %v495
        %v500 = vsub.f32 %v491, %v498
        %v501 = vmul.f32 %v499, 1.442695
        %v502 = vpow.pop %v501
        %v503 = vmul.f32 %v500, 1.442695
        %v504 = vpow.pop %v503
        %v505 = vsel %vm492, %v502, 0.0
        %506 = vadd.xlane.f32.xlu0 %v505
        %v507 = vpop.xlane.xlu0 %506
        %v508 = vsel %vm492, %v504, 0.0
        %509 = vadd.xlane.f32.xlu0 %v508
        %v510 = vpop.xlane.xlu0 %509
        %v511 = vrcp.pop %v507
        %v512 = vrcp.pop %v510
        %v513 = vmul.f32 %v507, %v511
        %v514 = vmul.f32 %v510, %v512
        %v515 = vsub.f32 2.0, %v513
        %v516 = vsub.f32 2.0, %v514
        %v517 = vmul.f32 %v511, %v515
        %v518 = vmul.f32 %v512, %v516
        %v519 = vmul.f32 %v502, %v517
        %v520 = vmul.f32 %v504, %v518
        %v522 = vsel %vm492, %v519, 0
        %v525 = vsel %vm492, %v520, 0
        %527 = vmatprep.subr.mxu0 0.0
        %528 = vmatpush1.msra.mxu0 %v398
        %529 = vmatprep.subr.mxu0 0.0
        %530 = vmatpush1.msra.mxu0 %v399
        %531 = vmatprep.subr.mxu0 0.0
        %532 = vmatpush1.msra.mxu0 0.0
        %533 = vmatprep.subr.mxu0 0.0
        %534 = vmatpush1.msra.mxu0 0.0
        %535 = vmatprep.subr.mxu0 0.0
        %536 = vmatpush1.msra.mxu0 0.0
        %537 = vmatprep.subr.mxu0 0.0
        %538 = vmatpush1.msra.mxu0 0.0
        %539 = vmatprep.subr.mxu0 0.0
        %540 = vmatpush1.msra.mxu0 0.0
        %541 = vmatprep.subr.mxu0 0.0
        %542 = vmatpush1.msra.mxu0 0.0
        %543 = vmatprep.subr.mxu0 0.0
        %544 = vmatpush1.msra.mxu0 0.0
        %545 = vmatprep.subr.mxu0 0.0
        %546 = vmatpush1.msra.mxu0 0.0
        %547 = vmatprep.subr.mxu0 0.0
        %548 = vmatpush1.msra.mxu0 0.0
        %549 = vmatprep.subr.mxu0 0.0
        %550 = vmatpush1.msra.mxu0 0.0
        %551 = vmatprep.subr.mxu0 0.0
        %552 = vmatpush1.msra.mxu0 0.0
        %553 = vmatprep.subr.mxu0 0.0
        %554 = vmatpush1.msra.mxu0 0.0
        %555 = vmatprep.subr.mxu0 0.0
        %556 = vmatpush1.msra.mxu0 0.0
        %557 = vmatprep.subr.mxu0 0.0
        %558 = vmatpush1.msra.mxu0 0.0
        %559 = vmatprep.subr.mxu0 0.0
        %560 = vmatpush1.msra.mxu0 0.0
        %561 = vmatprep.subr.mxu0 0.0
        %562 = vmatpush1.msra.mxu0 0.0
        %563 = vmatprep.subr.mxu0 0.0
        %564 = vmatpush1.msra.mxu0 0.0
        %565 = vmatprep.subr.mxu0 0.0
        %566 = vmatpush1.msra.mxu0 0.0
        %567 = vmatprep.subr.mxu0 0.0
        %568 = vmatpush1.msra.mxu0 0.0
        %569 = vmatprep.subr.mxu0 0.0
        %570 = vmatpush1.msra.mxu0 0.0
        %571 = vmatprep.subr.mxu0 0.0
        %572 = vmatpush1.msra.mxu0 0.0
        %573 = vmatprep.subr.mxu0 0.0
        %574 = vmatpush1.msra.mxu0 0.0
        %575 = vmatprep.subr.mxu0 0.0
        %576 = vmatpush1.msra.mxu0 0.0
        %577 = vmatprep.subr.mxu0 0.0
        %578 = vmatpush1.msra.mxu0 0.0
        %579 = vmatprep.subr.mxu0 0.0
        %580 = vmatpush1.msra.mxu0 0.0
        %581 = vmatprep.subr.mxu0 0.0
        %582 = vmatpush1.msra.mxu0 0.0
        %583 = vmatprep.subr.mxu0 0.0
        %584 = vmatpush1.msra.mxu0 0.0
        %585 = vmatprep.subr.mxu0 0.0
        %586 = vmatpush1.msra.mxu0 0.0
        %587 = vmatprep.subr.mxu0 0.0
        %588 = vmatpush1.msra.mxu0 0.0
        %589 = vmatprep.subr.mxu0 0.0
        %590 = vmatpush1.msra.mxu0 0.0
        %591 = vmatprep.mubr.f32.mxu0 0.0
        %592 = vmatmul.mubr.f32.gmra.mrb[0].mxu0 %v522
        %v593 = vpop.f32.mrb[0].mxu0
        %v594 = vadd.f32 0.0, %v593
        %v595 = vpop.f32.mrb[0].mxu0
        %596 = vmatprep.mubr.f32.mxu0 0.0
        %597 = vmatmul.mubr.f32.gmra.mrb[0].mxu0 %v525
        %v598 = vpop.f32.mrb[0].mxu0
        %v599 = vadd.f32 0.0, %v598
        %v600 = vpop.f32.mrb[0].mxu0
        %601 = vdwg.mxu0
        %602 = vrot.lane.b32.xlu0 %v394, 96
        %v603 = vpop.permute.xlu0 %602
        %604 = vrot.lane.b32.xlu0 %v395, 96
        %v605 = vpop.permute.xlu0 %604
        %606 = vrot.lane.b32.xlu0 %v396, 96
        %v607 = vpop.permute.xlu0 %606
        %608 = vrot.lane.b32.xlu0 %v397, 96
        %v609 = vpop.permute.xlu0 %608
        %v610 = vsel %vm400, %v603, 0
        %v612 = vsel %vm400, %v605, 0
        %v614 = vsel %vm400, %v607, 0
        %v616 = vsel %vm400, %v609, 0
        %618 = vmatprep.subr.mxu0 0.0
        %619 = vmatpush1.xpose.msra.mxu0 %v614
        %620 = vmatprep.subr.mxu0 0.0
        %621 = vmatpush1.xpose.msra.mxu0 %v616
        %622 = vmatprep.subr.mxu0 0.0
        %623 = vmatpush1.xpose.msra.mxu0 0.0
        %624 = vmatprep.subr.mxu0 0.0
        %625 = vmatpush1.xpose.msra.mxu0 0.0
        %626 = vmatprep.subr.mxu0 0.0
        %627 = vmatpush1.xpose.msra.mxu0 0.0
        %628 = vmatprep.subr.mxu0 0.0
        %629 = vmatpush1.xpose.msra.mxu0 0.0
        %630 = vmatprep.subr.mxu0 0.0
        %631 = vmatpush1.xpose.msra.mxu0 0.0
        %632 = vmatprep.subr.mxu0 0.0
        %633 = vmatpush1.xpose.msra.mxu0 0.0
        %634 = vmatprep.subr.mxu0 0.0
        %635 = vmatpush1.xpose.msra.mxu0 0.0
        %636 = vmatprep.subr.mxu0 0.0
        %637 = vmatpush1.xpose.msra.mxu0 0.0
        %638 = vmatprep.subr.mxu0 0.0
        %639 = vmatpush1.xpose.msra.mxu0 0.0
        %640 = vmatprep.subr.mxu0 0.0
        %641 = vmatpush1.xpose.msra.mxu0 0.0
        %642 = vmatprep.subr.mxu0 0.0
        %643 = vmatpush1.xpose.msra.mxu0 0.0
        %644 = vmatprep.subr.mxu0 0.0
        %645 = vmatpush1.xpose.msra.mxu0 0.0
        %646 = vmatprep.subr.mxu0 0.0
        %647 = vmatpush1.xpose.msra.mxu0 0.0
        %648 = vmatprep.subr.mxu0 0.0
        %649 = vmatpush1.xpose.msra.mxu0 0.0
        %650 = vmatprep.subr.mxu0 0.0
        %651 = vmatpush1.xpose.msra.mxu0 0.0
        %652 = vmatprep.subr.mxu0 0.0
        %653 = vmatpush1.xpose.msra.mxu0 0.0
        %654 = vmatprep.subr.mxu0 0.0
        %655 = vmatpush1.xpose.msra.mxu0 0.0
        %656 = vmatprep.subr.mxu0 0.0
        %657 = vmatpush1.xpose.msra.mxu0 0.0
        %658 = vmatprep.subr.mxu0 0.0
        %659 = vmatpush1.xpose.msra.mxu0 0.0
        %660 = vmatprep.subr.mxu0 0.0
        %661 = vmatpush1.xpose.msra.mxu0 0.0
        %662 = vmatprep.subr.mxu0 0.0
        %663 = vmatpush1.xpose.msra.mxu0 0.0
        %664 = vmatprep.subr.mxu0 0.0
        %665 = vmatpush1.xpose.msra.mxu0 0.0
        %666 = vmatprep.subr.mxu0 0.0
        %667 = vmatpush1.xpose.msra.mxu0 0.0
        %668 = vmatprep.subr.mxu0 0.0
        %669 = vmatpush1.xpose.msra.mxu0 0.0
        %670 = vmatprep.subr.mxu0 0.0
        %671 = vmatpush1.xpose.msra.mxu0 0.0
        %672 = vmatprep.subr.mxu0 0.0
        %673 = vmatpush1.xpose.msra.mxu0 0.0
        %674 = vmatprep.subr.mxu0 0.0
        %675 = vmatpush1.xpose.msra.mxu0 0.0
        %676 = vmatprep.subr.mxu0 0.0
        %677 = vmatpush1.xpose.msra.mxu0 0.0
        %678 = vmatprep.subr.mxu0 0.0
        %679 = vmatpush1.xpose.msra.mxu0 0.0
        %680 = vmatprep.subr.mxu0 0.0
        %681 = vmatpush1.xpose.msra.mxu0 0.0
        %682 = vmatprep.mubr.f32.mxu0 0.0
        %683 = vmatmul.mubr.f32.gmra.mrb[0].mxu0 %v610
        %v684 = vpop.f32.mrb[0].mxu0
        %v685 = vadd.f32 0.0, %v684
        %v686 = vpop.f32.mrb[0].mxu0
        %687 = vmatprep.mubr.f32.mxu0 0.0
        %688 = vmatmul.mubr.f32.gmra.mrb[0].mxu0 %v612
        %v689 = vpop.f32.mrb[0].mxu0
        %v690 = vadd.f32 0.0, %v689
        %v691 = vpop.f32.mrb[0].mxu0
        %692 = vdwg.mxu0
        %v693 = vmul.f32 %v685, 0.17677669
        %v694 = vmul.f32 %v690, 0.17677669
        %v695 = vadd.f32 %v693, %v392
        %v696 = vadd.f32 %v694, %v393
        %v697 = vsel %vm492, %v695, -inf
        %698 = vmax.xlane.f32.xlu0 %v697
        %v699 = vpop.xlane.xlu0 %698
        %v700 = vsel %vm492, %v696, -inf
        %701 = vmax.xlane.f32.xlu0 %v700
        %v702 = vpop.xlane.xlu0 %701
        %v703 = vsub.f32 %v695, %v699
        %v704 = vsub.f32 %v696, %v702
        %v705 = vmul.f32 %v703, 1.442695
        %v706 = vpow.pop %v705
        %v707 = vmul.f32 %v704, 1.442695
        %v708 = vpow.pop %v707
        %v709 = vsel %vm492, %v706, 0.0
        %710 = vadd.xlane.f32.xlu0 %v709
        %v711 = vpop.xlane.xlu0 %710
        %v712 = vsel %vm492, %v708, 0.0
        %713 = vadd.xlane.f32.xlu0 %v712
        %v714 = vpop.xlane.xlu0 %713
        %v715 = vrcp.pop %v711
        %v716 = vrcp.pop %v714
        %v717 = vmul.f32 %v711, %v715
        %v718 = vmul.f32 %v714, %v716
        %v719 = vsub.f32 2.0, %v717
        %v720 = vsub.f32 2.0, %v718
        %v721 = vmul.f32 %v715, %v719
        %v722 = vmul.f32 %v716, %v720
        %v723 = vmul.f32 %v706, %v721
        %v724 = vmul.f32 %v708, %v722
        %727 = vrot.lane.b32.xlu0 %v398, 96
        %v728 = vpop.permute.xlu0 %727
        %729 = vrot.lane.b32.xlu0 %v399, 96
        %v730 = vpop.permute.xlu0 %729
        %v734 = vsel %vm492, %v723, 0
        %v737 = vsel %vm492, %v724, 0
        %739 = vmatprep.subr.mxu0 0.0
        %740 = vmatpush1.msra.mxu0 %v728
        %741 = vmatprep.subr.mxu0 0.0
        %742 = vmatpush1.msra.mxu0 %v730
        %743 = vmatprep.subr.mxu0 0.0
        %744 = vmatpush1.msra.mxu0 0.0
        %745 = vmatprep.subr.mxu0 0.0
        %746 = vmatpush1.msra.mxu0 0.0
        %747 = vmatprep.subr.mxu0 0.0
        %748 = vmatpush1.msra.mxu0 0.0
        %749 = vmatprep.subr.mxu0 0.0
        %750 = vmatpush1.msra.mxu0 0.0
        %751 = vmatprep.subr.mxu0 0.0
        %752 = vmatpush1.msra.mxu0 0.0
        %753 = vmatprep.subr.mxu0 0.0
        %754 = vmatpush1.msra.mxu0 0.0
        %755 = vmatprep.subr.mxu0 0.0
        %756 = vmatpush1.msra.mxu0 0.0
        %757 = vmatprep.subr.mxu0 0.0
        %758 = vmatpush1.msra.mxu0 0.0
        %759 = vmatprep.subr.mxu0 0.0
        %760 = vmatpush1.msra.mxu0 0.0
        %761 = vmatprep.subr.mxu0 0.0
        %762 = vmatpush1.msra.mxu0 0.0
        %763 = vmatprep.subr.mxu0 0.0
        %764 = vmatpush1.msra.mxu0 0.0
        %765 = vmatprep.subr.mxu0 0.0
        %766 = vmatpush1.msra.mxu0 0.0
        %767 = vmatprep.subr.mxu0 0.0
        %768 = vmatpush1.msra.mxu0 0.0
        %769 = vmatprep.subr.mxu0 0.0
        %770 = vmatpush1.msra.mxu0 0.0
        %771 = vmatprep.subr.mxu0 0.0
        %772 = vmatpush1.msra.mxu0 0.0
        %773 = vmatprep.subr.mxu0 0.0
        %774 = vmatpush1.msra.mxu0 0.0
        %775 = vmatprep.subr.mxu0 0.0
        %776 = vmatpush1.msra.mxu0 0.0
        %777 = vmatprep.subr.mxu0 0.0
        %778 = vmatpush1.msra.mxu0 0.0
        %779 = vmatprep.subr.mxu0 0.0
        %780 = vmatpush1.msra.mxu0 0.0
        %781 = vmatprep.subr.mxu0 0.0
        %782 = vmatpush1.msra.mxu0 0.0
        %783 = vmatprep.subr.mxu0 0.0
        %784 = vmatpush1.msra.mxu0 0.0
        %785 = vmatprep.subr.mxu0 0.0
        %786 = vmatpush1.msra.mxu0 0.0
        %787 = vmatprep.subr.mxu0 0.0
        %788 = vmatpush1.msra.mxu0 0.0
        %789 = vmatprep.subr.mxu0 0.0
        %790 = vmatpush1.msra.mxu0 0.0
        %791 = vmatprep.subr.mxu0 0.0
        %792 = vmatpush1.msra.mxu0 0.0
        %793 = vmatprep.subr.mxu0 0.0
        %794 = vmatpush1.msra.mxu0 0.0
        %795 = vmatprep.subr.mxu0 0.0
        %796 = vmatpush1.msra.mxu0 0.0
        %797 = vmatprep.subr.mxu0 0.0
        %798 = vmatpush1.msra.mxu0 0.0
        %799 = vmatprep.subr.mxu0 0.0
        %800 = vmatpush1.msra.mxu0 0.0
        %801 = vmatprep.subr.mxu0 0.0
        %802 = vmatpush1.msra.mxu0 0.0
        %803 = vmatprep.mubr.f32.mxu0 0.0
        %804 = vmatmul.mubr.f32.gmra.mrb[0].mxu0 %v734
        %v805 = vpop.f32.mrb[0].mxu0
        %v806 = vadd.f32 0.0, %v805
        %v807 = vpop.f32.mrb[0].mxu0
        %808 = vmatprep.mubr.f32.mxu0 0.0
        %809 = vmatmul.mubr.f32.gmra.mrb[0].mxu0 %v737
        %v810 = vpop.f32.mrb[0].mxu0
        %v811 = vadd.f32 0.0, %v810
        %v812 = vpop.f32.mrb[0].mxu0
        %813 = vdwg.mxu0
        %814 = vrot.lane.b32.xlu0 %v394, 64
        %v815 = vpop.permute.xlu0 %814
        %816 = vrot.lane.b32.xlu0 %v395, 64
        %v817 = vpop.permute.xlu0 %816
        %818 = vrot.lane.b32.xlu0 %v396, 64
        %v819 = vpop.permute.xlu0 %818
        %820 = vrot.lane.b32.xlu0 %v397, 64
        %v821 = vpop.permute.xlu0 %820
        %v822 = vsel %vm400, %v815, 0
        %v824 = vsel %vm400, %v817, 0
        %v826 = vsel %vm400, %v819, 0
        %v828 = vsel %vm400, %v821, 0
        %830 = vmatprep.subr.mxu0 0.0
        %831 = vmatpush1.xpose.msra.mxu0 %v826
        %832 = vmatprep.subr.mxu0 0.0
        %833 = vmatpush1.xpose.msra.mxu0 %v828
        %834 = vmatprep.subr.mxu0 0.0
        %835 = vmatpush1.xpose.msra.mxu0 0.0
        %836 = vmatprep.subr.mxu0 0.0
        %837 = vmatpush1.xpose.msra.mxu0 0.0
        %838 = vmatprep.subr.mxu0 0.0
        %839 = vmatpush1.xpose.msra.mxu0 0.0
        %840 = vmatprep.subr.mxu0 0.0
        %841 = vmatpush1.xpose.msra.mxu0 0.0
        %842 = vmatprep.subr.mxu0 0.0
        %843 = vmatpush1.xpose.msra.mxu0 0.0
        %844 = vmatprep.subr.mxu0 0.0
        %845 = vmatpush1.xpose.msra.mxu0 0.0
        %846 = vmatprep.subr.mxu0 0.0
        %847 = vmatpush1.xpose.msra.mxu0 0.0
        %848 = vmatprep.subr.mxu0 0.0
        %849 = vmatpush1.xpose.msra.mxu0 0.0
        %850 = vmatprep.subr.mxu0 0.0
        %851 = vmatpush1.xpose.msra.mxu0 0.0
        %852 = vmatprep.subr.mxu0 0.0
        %853 = vmatpush1.xpose.msra.mxu0 0.0
        %854 = vmatprep.subr.mxu0 0.0
        %855 = vmatpush1.xpose.msra.mxu0 0.0
        %856 = vmatprep.subr.mxu0 0.0
        %857 = vmatpush1.xpose.msra.mxu0 0.0
        %858 = vmatprep.subr.mxu0 0.0
        %859 = vmatpush1.xpose.msra.mxu0 0.0
        %860 = vmatprep.subr.mxu0 0.0
        %861 = vmatpush1.xpose.msra.mxu0 0.0
        %862 = vmatprep.subr.mxu0 0.0
        %863 = vmatpush1.xpose.msra.mxu0 0.0
        %864 = vmatprep.subr.mxu0 0.0
        %865 = vmatpush1.xpose.msra.mxu0 0.0
        %866 = vmatprep.subr.mxu0 0.0
        %867 = vmatpush1.xpose.msra.mxu0 0.0
        %868 = vmatprep.subr.mxu0 0.0
        %869 = vmatpush1.xpose.msra.mxu0 0.0
        %870 = vmatprep.subr.mxu0 0.0
        %871 = vmatpush1.xpose.msra.mxu0 0.0
        %872 = vmatprep.subr.mxu0 0.0
        %873 = vmatpush1.xpose.msra.mxu0 0.0
        %874 = vmatprep.subr.mxu0 0.0
        %875 = vmatpush1.xpose.msra.mxu0 0.0
        %876 = vmatprep.subr.mxu0 0.0
        %877 = vmatpush1.xpose.msra.mxu0 0.0
        %878 = vmatprep.subr.mxu0 0.0
        %879 = vmatpush1.xpose.msra.mxu0 0.0
        %880 = vmatprep.subr.mxu0 0.0
        %881 = vmatpush1.xpose.msra.mxu0 0.0
        %882 = vmatprep.subr.mxu0 0.0
        %883 = vmatpush1.xpose.msra.mxu0 0.0
        %884 = vmatprep.subr.mxu0 0.0
        %885 = vmatpush1.xpose.msra.mxu0 0.0
        %886 = vmatprep.subr.mxu0 0.0
        %887 = vmatpush1.xpose.msra.mxu0 0.0
        %888 = vmatprep.subr.mxu0 0.0
        %889 = vmatpush1.xpose.msra.mxu0 0.0
        %890 = vmatprep.subr.mxu0 0.0
        %891 = vmatpush1.xpose.msra.mxu0 0.0
        %892 = vmatprep.subr.mxu0 0.0
        %893 = vmatpush1.xpose.msra.mxu0 0.0
        %894 = vmatprep.mubr.f32.mxu0 0.0
        %895 = vmatmul.mubr.f32.gmra.mrb[0].mxu0 %v822
        %v896 = vpop.f32.mrb[0].mxu0
        %v897 = vadd.f32 0.0, %v896
        %v898 = vpop.f32.mrb[0].mxu0
        %899 = vmatprep.mubr.f32.mxu0 0.0
        %900 = vmatmul.mubr.f32.gmra.mrb[0].mxu0 %v824
        %v901 = vpop.f32.mrb[0].mxu0
        %v902 = vadd.f32 0.0, %v901
        %v903 = vpop.f32.mrb[0].mxu0
        %904 = vdwg.mxu0
        %v905 = vmul.f32 %v897, 0.17677669
        %v906 = vmul.f32 %v902, 0.17677669
        %v907 = vadd.f32 %v905, %v392
        %v908 = vadd.f32 %v906, %v393
        %v909 = vsel %vm492, %v907, -inf
        %910 = vmax.xlane.f32.xlu0 %v909
        %v911 = vpop.xlane.xlu0 %910
        %v912 = vsel %vm492, %v908, -inf
        %913 = vmax.xlane.f32.xlu0 %v912
        %v914 = vpop.xlane.xlu0 %913
        %v915 = vsub.f32 %v907, %v911
        %v916 = vsub.f32 %v908, %v914
        %v917 = vmul.f32 %v915, 1.442695
        %v918 = vpow.pop %v917
        %v919 = vmul.f32 %v916, 1.442695
        %v920 = vpow.pop %v919
        %v921 = vsel %vm492, %v918, 0.0
        %922 = vadd.xlane.f32.xlu0 %v921
        %v923 = vpop.xlane.xlu0 %922
        %v924 = vsel %vm492, %v920, 0.0
        %925 = vadd.xlane.f32.xlu0 %v924
        %v926 = vpop.xlane.xlu0 %925
        %v927 = vrcp.pop %v923
        %v928 = vrcp.pop %v926
        %v929 = vmul.f32 %v923, %v927
        %v930 = vmul.f32 %v926, %v928
        %v931 = vsub.f32 2.0, %v929
        %v932 = vsub.f32 2.0, %v930
        %v933 = vmul.f32 %v927, %v931
        %v934 = vmul.f32 %v928, %v932
        %v935 = vmul.f32 %v918, %v933
        %v936 = vmul.f32 %v920, %v934
        %937 = vrot.lane.b32.xlu0 %v398, 64
        %v938 = vpop.permute.xlu0 %937
        %939 = vrot.lane.b32.xlu0 %v399, 64
        %v940 = vpop.permute.xlu0 %939
        %v944 = vsel %vm492, %v935, 0
        %v947 = vsel %vm492, %v936, 0
        %949 = vmatprep.subr.mxu0 0.0
        %950 = vmatpush1.msra.mxu0 %v938
        %951 = vmatprep.subr.mxu0 0.0
        %952 = vmatpush1.msra.mxu0 %v940
        %953 = vmatprep.subr.mxu0 0.0
        %954 = vmatpush1.msra.mxu0 0.0
        %955 = vmatprep.subr.mxu0 0.0
        %956 = vmatpush1.msra.mxu0 0.0
        %957 = vmatprep.subr.mxu0 0.0
        %958 = vmatpush1.msra.mxu0 0.0
        %959 = vmatprep.subr.mxu0 0.0
        %960 = vmatpush1.msra.mxu0 0.0
        %961 = vmatprep.subr.mxu0 0.0
        %962 = vmatpush1.msra.mxu0 0.0
        %963 = vmatprep.subr.mxu0 0.0
        %964 = vmatpush1.msra.mxu0 0.0
        %965 = vmatprep.subr.mxu0 0.0
        %966 = vmatpush1.msra.mxu0 0.0
        %967 = vmatprep.subr.mxu0 0.0
        %968 = vmatpush1.msra.mxu0 0.0
        %969 = vmatprep.subr.mxu0 0.0
        %970 = vmatpush1.msra.mxu0 0.0
        %971 = vmatprep.subr.mxu0 0.0
        %972 = vmatpush1.msra.mxu0 0.0
        %973 = vmatprep.subr.mxu0 0.0
        %974 = vmatpush1.msra.mxu0 0.0
        %975 = vmatprep.subr.mxu0 0.0
        %976 = vmatpush1.msra.mxu0 0.0
        %977 = vmatprep.subr.mxu0 0.0
        %978 = vmatpush1.msra.mxu0 0.0
        %979 = vmatprep.subr.mxu0 0.0
        %980 = vmatpush1.msra.mxu0 0.0
        %981 = vmatprep.subr.mxu0 0.0
        %982 = vmatpush1.msra.mxu0 0.0
        %983 = vmatprep.subr.mxu0 0.0
        %984 = vmatpush1.msra.mxu0 0.0
        %985 = vmatprep.subr.mxu0 0.0
        %986 = vmatpush1.msra.mxu0 0.0
        %987 = vmatprep.subr.mxu0 0.0
        %988 = vmatpush1.msra.mxu0 0.0
        %989 = vmatprep.subr.mxu0 0.0
        %990 = vmatpush1.msra.mxu0 0.0
        %991 = vmatprep.subr.mxu0 0.0
        %992 = vmatpush1.msra.mxu0 0.0
        %993 = vmatprep.subr.mxu0 0.0
        %994 = vmatpush1.msra.mxu0 0.0
        %995 = vmatprep.subr.mxu0 0.0
        %996 = vmatpush1.msra.mxu0 0.0
        %997 = vmatprep.subr.mxu0 0.0
        %998 = vmatpush1.msra.mxu0 0.0
        %999 = vmatprep.subr.mxu0 0.0
        %1000 = vmatpush1.msra.mxu0 0.0
        %1001 = vmatprep.subr.mxu0 0.0
        %1002 = vmatpush1.msra.mxu0 0.0
        %1003 = vmatprep.subr.mxu0 0.0
        %1004 = vmatpush1.msra.mxu0 0.0
        %1005 = vmatprep.subr.mxu0 0.0
        %1006 = vmatpush1.msra.mxu0 0.0
        %1007 = vmatprep.subr.mxu0 0.0
        %1008 = vmatpush1.msra.mxu0 0.0
        %1009 = vmatprep.subr.mxu0 0.0
        %1010 = vmatpush1.msra.mxu0 0.0
        %1011 = vmatprep.subr.mxu0 0.0
        %1012 = vmatpush1.msra.mxu0 0.0
        %1013 = vmatprep.mubr.f32.mxu0 0.0
        %1014 = vmatmul.mubr.f32.gmra.mrb[0].mxu0 %v944
        %v1015 = vpop.f32.mrb[0].mxu0
        %v1016 = vadd.f32 0.0, %v1015
        %v1017 = vpop.f32.mrb[0].mxu0
        %1018 = vmatprep.mubr.f32.mxu0 0.0
        %1019 = vmatmul.mubr.f32.gmra.mrb[0].mxu0 %v947
        %v1020 = vpop.f32.mrb[0].mxu0
        %v1021 = vadd.f32 0.0, %v1020
        %v1022 = vpop.f32.mrb[0].mxu0
        %1023 = vdwg.mxu0
        %1024 = vrot.lane.b32.xlu0 %v394, 32
        %v1025 = vpop.permute.xlu0 %1024
        %1026 = vrot.lane.b32.xlu0 %v395, 32
        %v1027 = vpop.permute.xlu0 %1026
        %1028 = vrot.lane.b32.xlu0 %v396, 32
        %v1029 = vpop.permute.xlu0 %1028
        %1030 = vrot.lane.b32.xlu0 %v397, 32
        %v1031 = vpop.permute.xlu0 %1030
        %v1032 = vsel %vm400, %v1025, 0
        %v1034 = vsel %vm400, %v1027, 0
        %v1036 = vsel %vm400, %v1029, 0
        %v1038 = vsel %vm400, %v1031, 0
        %1040 = vmatprep.subr.mxu0 0.0
        %1041 = vmatpush1.xpose.msra.mxu0 %v1036
        %1042 = vmatprep.subr.mxu0 0.0
        %1043 = vmatpush1.xpose.msra.mxu0 %v1038
        %1044 = vmatprep.subr.mxu0 0.0
        %1045 = vmatpush1.xpose.msra.mxu0 0.0
        %1046 = vmatprep.subr.mxu0 0.0
        %1047 = vmatpush1.xpose.msra.mxu0 0.0
        %1048 = vmatprep.subr.mxu0 0.0
        %1049 = vmatpush1.xpose.msra.mxu0 0.0
        %1050 = vmatprep.subr.mxu0 0.0
        %1051 = vmatpush1.xpose.msra.mxu0 0.0
        %1052 = vmatprep.subr.mxu0 0.0
        %1053 = vmatpush1.xpose.msra.mxu0 0.0
        %1054 = vmatprep.subr.mxu0 0.0
        %1055 = vmatpush1.xpose.msra.mxu0 0.0
        %1056 = vmatprep.subr.mxu0 0.0
        %1057 = vmatpush1.xpose.msra.mxu0 0.0
        %1058 = vmatprep.subr.mxu0 0.0
        %1059 = vmatpush1.xpose.msra.mxu0 0.0
        %1060 = vmatprep.subr.mxu0 0.0
        %1061 = vmatpush1.xpose.msra.mxu0 0.0
        %1062 = vmatprep.subr.mxu0 0.0
        %1063 = vmatpush1.xpose.msra.mxu0 0.0
        %1064 = vmatprep.subr.mxu0 0.0
        %1065 = vmatpush1.xpose.msra.mxu0 0.0
        %1066 = vmatprep.subr.mxu0 0.0
        %1067 = vmatpush1.xpose.msra.mxu0 0.0
        %1068 = vmatprep.subr.mxu0 0.0
        %1069 = vmatpush1.xpose.msra.mxu0 0.0
        %1070 = vmatprep.subr.mxu0 0.0
        %1071 = vmatpush1.xpose.msra.mxu0 0.0
        %1072 = vmatprep.subr.mxu0 0.0
        %1073 = vmatpush1.xpose.msra.mxu0 0.0
        %1074 = vmatprep.subr.mxu0 0.0
        %1075 = vmatpush1.xpose.msra.mxu0 0.0
        %1076 = vmatprep.subr.mxu0 0.0
        %1077 = vmatpush1.xpose.msra.mxu0 0.0
        %1078 = vmatprep.subr.mxu0 0.0
        %1079 = vmatpush1.xpose.msra.mxu0 0.0
        %1080 = vmatprep.subr.mxu0 0.0
        %1081 = vmatpush1.xpose.msra.mxu0 0.0
        %1082 = vmatprep.subr.mxu0 0.0
        %1083 = vmatpush1.xpose.msra.mxu0 0.0
        %1084 = vmatprep.subr.mxu0 0.0
        %1085 = vmatpush1.xpose.msra.mxu0 0.0
        %1086 = vmatprep.subr.mxu0 0.0
        %1087 = vmatpush1.xpose.msra.mxu0 0.0
        %1088 = vmatprep.subr.mxu0 0.0
        %1089 = vmatpush1.xpose.msra.mxu0 0.0
        %1090 = vmatprep.subr.mxu0 0.0
        %1091 = vmatpush1.xpose.msra.mxu0 0.0
        %1092 = vmatprep.subr.mxu0 0.0
        %1093 = vmatpush1.xpose.msra.mxu0 0.0
        %1094 = vmatprep.subr.mxu0 0.0
        %1095 = vmatpush1.xpose.msra.mxu0 0.0
        %1096 = vmatprep.subr.mxu0 0.0
        %1097 = vmatpush1.xpose.msra.mxu0 0.0
        %1098 = vmatprep.subr.mxu0 0.0
        %1099 = vmatpush1.xpose.msra.mxu0 0.0
        %1100 = vmatprep.subr.mxu0 0.0
        %1101 = vmatpush1.xpose.msra.mxu0 0.0
        %1102 = vmatprep.subr.mxu0 0.0
        %1103 = vmatpush1.xpose.msra.mxu0 0.0
        %1104 = vmatprep.mubr.f32.mxu0 0.0
        %1105 = vmatmul.mubr.f32.gmra.mrb[0].mxu0 %v1032
        %v1106 = vpop.f32.mrb[0].mxu0
        %v1107 = vadd.f32 0.0, %v1106
        %v1108 = vpop.f32.mrb[0].mxu0
        %1109 = vmatprep.mubr.f32.mxu0 0.0
        %1110 = vmatmul.mubr.f32.gmra.mrb[0].mxu0 %v1034
        %v1111 = vpop.f32.mrb[0].mxu0
        %v1112 = vadd.f32 0.0, %v1111
        %v1113 = vpop.f32.mrb[0].mxu0
        %1114 = vdwg.mxu0
        %v1115 = vmul.f32 %v1107, 0.17677669
        %v1116 = vmul.f32 %v1112, 0.17677669
        %v1117 = vadd.f32 %v1115, %v392
        %v1118 = vadd.f32 %v1116, %v393
        %v1119 = vsel %vm492, %v1117, -inf
        %1120 = vmax.xlane.f32.xlu0 %v1119
        %v1121 = vpop.xlane.xlu0 %1120
        %v1122 = vsel %vm492, %v1118, -inf
        %1123 = vmax.xlane.f32.xlu0 %v1122
        %v1124 = vpop.xlane.xlu0 %1123
        %v1125 = vsub.f32 %v1117, %v1121
        %v1126 = vsub.f32 %v1118, %v1124
        %v1127 = vmul.f32 %v1125, 1.442695
        %v1128 = vpow.pop %v1127
        %v1129 = vmul.f32 %v1126, 1.442695
        %v1130 = vpow.pop %v1129
        %v1131 = vsel %vm492, %v1128, 0.0
        %1132 = vadd.xlane.f32.xlu0 %v1131
        %v1133 = vpop.xlane.xlu0 %1132
        %v1134 = vsel %vm492, %v1130, 0.0
        %1135 = vadd.xlane.f32.xlu0 %v1134
        %v1136 = vpop.xlane.xlu0 %1135
        %v1137 = vrcp.pop %v1133
        %v1138 = vrcp.pop %v1136
        %v1139 = vmul.f32 %v1133, %v1137
        %v1140 = vmul.f32 %v1136, %v1138
        %v1141 = vsub.f32 2.0, %v1139
        %v1142 = vsub.f32 2.0, %v1140
        %v1143 = vmul.f32 %v1137, %v1141
        %v1144 = vmul.f32 %v1138, %v1142
        %v1145 = vmul.f32 %v1128, %v1143
        %v1146 = vmul.f32 %v1130, %v1144
        %1147 = vrot.lane.b32.xlu0 %v398, 32
        %v1148 = vpop.permute.xlu0 %1147
        %1149 = vrot.lane.b32.xlu0 %v399, 32
        %v1150 = vpop.permute.xlu0 %1149
        %v1154 = vsel %vm492, %v1145, 0
        %v1157 = vsel %vm492, %v1146, 0
        %1159 = vmatprep.subr.mxu0 0.0
        %1160 = vmatpush1.msra.mxu0 %v1148
        %1161 = vmatprep.subr.mxu0 0.0
        %1162 = vmatpush1.msra.mxu0 %v1150
        %1163 = vmatprep.subr.mxu0 0.0
        %1164 = vmatpush1.msra.mxu0 0.0
        %1165 = vmatprep.subr.mxu0 0.0
        %1166 = vmatpush1.msra.mxu0 0.0
        %1167 = vmatprep.subr.mxu0 0.0
        %1168 = vmatpush1.msra.mxu0 0.0
        %1169 = vmatprep.subr.mxu0 0.0
        %1170 = vmatpush1.msra.mxu0 0.0
        %1171 = vmatprep.subr.mxu0 0.0
        %1172 = vmatpush1.msra.mxu0 0.0
        %1173 = vmatprep.subr.mxu0 0.0
        %1174 = vmatpush1.msra.mxu0 0.0
        %1175 = vmatprep.subr.mxu0 0.0
        %1176 = vmatpush1.msra.mxu0 0.0
        %1177 = vmatprep.subr.mxu0 0.0
        %1178 = vmatpush1.msra.mxu0 0.0
        %1179 = vmatprep.subr.mxu0 0.0
        %1180 = vmatpush1.msra.mxu0 0.0
        %1181 = vmatprep.subr.mxu0 0.0
        %1182 = vmatpush1.msra.mxu0 0.0
        %1183 = vmatprep.subr.mxu0 0.0
        %1184 = vmatpush1.msra.mxu0 0.0
        %1185 = vmatprep.subr.mxu0 0.0
        %1186 = vmatpush1.msra.mxu0 0.0
        %1187 = vmatprep.subr.mxu0 0.0
        %1188 = vmatpush1.msra.mxu0 0.0
        %1189 = vmatprep.subr.mxu0 0.0
        %1190 = vmatpush1.msra.mxu0 0.0
        %1191 = vmatprep.subr.mxu0 0.0
        %1192 = vmatpush1.msra.mxu0 0.0
        %1193 = vmatprep.subr.mxu0 0.0
        %1194 = vmatpush1.msra.mxu0 0.0
        %1195 = vmatprep.subr.mxu0 0.0
        %1196 = vmatpush1.msra.mxu0 0.0
        %1197 = vmatprep.subr.mxu0 0.0
        %1198 = vmatpush1.msra.mxu0 0.0
        %1199 = vmatprep.subr.mxu0 0.0
        %1200 = vmatpush1.msra.mxu0 0.0
        %1201 = vmatprep.subr.mxu0 0.0
        %1202 = vmatpush1.msra.mxu0 0.0
        %1203 = vmatprep.subr.mxu0 0.0
        %1204 = vmatpush1.msra.mxu0 0.0
        %1205 = vmatprep.subr.mxu0 0.0
        %1206 = vmatpush1.msra.mxu0 0.0
        %1207 = vmatprep.subr.mxu0 0.0
        %1208 = vmatpush1.msra.mxu0 0.0
        %1209 = vmatprep.subr.mxu0 0.0
        %1210 = vmatpush1.msra.mxu0 0.0
        %1211 = vmatprep.subr.mxu0 0.0
        %1212 = vmatpush1.msra.mxu0 0.0
        %1213 = vmatprep.subr.mxu0 0.0
        %1214 = vmatpush1.msra.mxu0 0.0
        %1215 = vmatprep.subr.mxu0 0.0
        %1216 = vmatpush1.msra.mxu0 0.0
        %1217 = vmatprep.subr.mxu0 0.0
        %1218 = vmatpush1.msra.mxu0 0.0
        %1219 = vmatprep.subr.mxu0 0.0
        %1220 = vmatpush1.msra.mxu0 0.0
        %1221 = vmatprep.subr.mxu0 0.0
        %1222 = vmatpush1.msra.mxu0 0.0
        %1223 = vmatprep.mubr.f32.mxu0 0.0
        %1224 = vmatmul.mubr.f32.gmra.mrb[0].mxu0 %v1154
        %v1225 = vpop.f32.mrb[0].mxu0
        %v1226 = vadd.f32 0.0, %v1225
        %v1227 = vpop.f32.mrb[0].mxu0
        %1228 = vmatprep.mubr.f32.mxu0 0.0
        %1229 = vmatmul.mubr.f32.gmra.mrb[0].mxu0 %v1157
        %v1230 = vpop.f32.mrb[0].mxu0
        %v1231 = vadd.f32 0.0, %v1230
        %v1232 = vpop.f32.mrb[0].mxu0
        %1233 = vdwg.mxu0
        %1236 = vrot.lane.b32.xlu0 %v806, 32
        %v1237 = vpop.permute.xlu0 %1236
        %1238 = vrot.lane.b32.xlu0 %v811, 32
        %v1239 = vpop.permute.xlu0 %1238
        %1244 = vrot.lane.b32.xlu0 %v1016, 64
        %v1245 = vpop.permute.xlu0 %1244
        %1246 = vrot.lane.b32.xlu0 %v1021, 64
        %v1247 = vpop.permute.xlu0 %1246
        %1252 = vrot.lane.b32.xlu0 %v1226, 96
        %v1253 = vpop.permute.xlu0 %1252
        %1254 = vrot.lane.b32.xlu0 %v1231, 96
        %v1255 = vpop.permute.xlu0 %1254
        %v1258 = vsel %vm400, %v594, %v1237
        %v1259 = vsel %vm400, %v599, %v1239
        %vm1260 = vcmask 523264
        %v1261 = vsel %vm1260, %v1258, %v1245
        %v1262 = vsel %vm1260, %v1259, %v1247
        %vm1263 = vcmask 785408
        %v1264 = vsel %vm1263, %v1261, %v1253
        %v1265 = vsel %vm1263, %v1262, %v1255
        %1266 = vst [vmem:[%s391] sm:$0xff] %v1264
        %1267 = vst [vmem:[%s391 + $0x8] sm:$0xff] %v1265
        %p1268 = scmp.lt.s32.totalorder %s19, 1
        %s1269 = scalar_select %p1268, %s19, 1
        %p1270 = scmp.lt.s32.totalorder %s20, 0
        %s1271 = scalar_select %p1270, %s20, 0
        %s1272 = smul.addr %s1269, 2
        %s1273 = sadd.s32 %s1271, %s1272
        %s1274 = smul.addr %s1273, 8
        %s1275 = scalar_lea.vmem %s4, %s1274
        // Predicated region
        $region151: #{_lambda_.18} parent=137 // pred_check
          %p1276 = pneg %p156
        $region152: #{_lambda_.18} parent=137 // pred_check_branch
          %1278 = sbr.rel (%p1276) target = $region154
        $region153: #{_lambda_.18} parent=137 // pred_region
          _
        $region154: #{_lambda_.18} parent=137 // pred_fallthru
          _
      $region138: #{_lambda_.18} parent=5 // pred_fallthru
        _
      %p1279 = scmp.le.s32.totalorder 2, %s10
      // Predicated region
      $region155: #{_lambda_.18} parent=5 // pred_check
        %p1280 = pneg %p1279
      $region156: #{_lambda_.18} parent=5 // pred_check_branch
        %1282 = sbr.rel (%p1280) target = $region158
      $region157: #{_lambda_.18} parent=5 // pred_region
        %s1283 = ssub.s32 %s10, 2
        // Predicated region
        $region159: #{_lambda_.18} parent=157 // pred_check
          %p1284 = pneg %p162
        $region160: #{_lambda_.18} parent=157 // pred_check_branch
          %1286 = sbr.rel (%p1284) target = $region162
        $region161: #{_lambda_.18} parent=157 // pred_region
          %p1287 = scmp.lt.s32.totalorder %s21, 1
          %s1288 = scalar_select %p1287, %s21, 1
          %p1289 = scmp.lt.s32.totalorder %s22, 0
          %s1290 = scalar_select %p1289, %s22, 0
          %s1291 = smul.addr %s1288, 2
          %s1292 = sadd.s32 %s1290, %s1291
          %s1293 = smul.addr %s1292, 8
          %s1294 = scalar_lea.vmem %s4, %s1293
        $region162: #{_lambda_.18} parent=157 // pred_fallthru
          _
      $region158: #{_lambda_.18} parent=5 // pred_fallthru
        _
    $region6: #{_lambda_.18} parent=1 // loop_footer
      %s14 = sadd.s32 1, %s10
    $region7: #{_lambda_.18} parent=1 // loop_footer_branch
      %9 = sbr.rel target = $region3
    $region8: #{_lambda_.18} parent=1 // loop_exit
      _

// kernel: _lambda_.22
$region0: #{_lambda_.22}
  #allocation0 [shape = 'u32[]', space=smem, size = 0x4, offset = 0x4, fixed_abs, tag = 'smem constant byte address 0x4 - core index']
  #allocation1 [shape = 'u32[144,128]{1,0:T(1,128)}', space=vmem, size = 0x12000, scoped, tag = 'internal scratch']
  #allocation2 [shape = 'f32[32,128]{1,0:T(8,128)}', space=vmem, size = 0x4000, scoped, tag = 'scratch operand']
  %s0 = inlined_call_operand.vmem [shape: f32[32,512], index: 0, kind: input, shape index: {}]
  %s1 = inlined_call_operand.vmem [shape: f32[512,128], index: 1, kind: input, shape index: {}]
  %s2 = inlined_call_operand.vmem [shape: f32[1,128], index: 2, kind: input, shape index: {}]
  %s3 = inlined_call_operand.vmem [shape: f32[32,128], index: 3, kind: output, shape index: {}]
  %s4 = sld [smem:[#allocation0]]
  $region30: #{_lambda_.22} parent=0
    _
  %s6 = ssub.s32 1, %s4
  %s7 = scalar_select 0, %s6, %s4
  // Predicated region
  $region2: #{_lambda_.22} parent=0 // pred_check
    _
  $region3: #{_lambda_.22} parent=0 // pred_check_branch
    %9 = sbr.rel (0) target = $region5
  $region4: #{_lambda_.22} parent=0 // pred_region
    _
  $region5: #{_lambda_.22} parent=0 // pred_fallthru
    _
  // Predicated region
  $region6: #{_lambda_.22} parent=0 // pred_check
    _
  $region7: #{_lambda_.22} parent=0 // pred_check_branch
    %11 = sbr.rel (0) target = $region9
  $region8: #{_lambda_.22} parent=0 // pred_region
    _
  $region9: #{_lambda_.22} parent=0 // pred_fallthru
    _
  // Predicated region
  $region10: #{_lambda_.22} parent=0 // pred_check
    _
  $region11: #{_lambda_.22} parent=0 // pred_check_branch
    %13 = sbr.rel (0) target = $region13
  $region12: #{_lambda_.22} parent=0 // pred_region
    _
  $region13: #{_lambda_.22} parent=0 // pred_fallthru
    _
  %p14 = scmp.eq.s32.totalorder 0, 0
  // Predicated region
  $region14: #{_lambda_.22} parent=0 // pred_check
    %p15 = pneg %p14
  $region15: #{_lambda_.22} parent=0 // pred_check_branch
    %17 = sbr.rel (%p15) target = $region17
  $region16: #{_lambda_.22} parent=0 // pred_region
    %18 = vst [vmem:[#allocation2] sm:$0xff] 0.0
    %19 = vst [vmem:[#allocation2 + $0x8] sm:$0xff] 0.0
    %20 = vst [vmem:[#allocation2 + $0x10] sm:$0xff] 0.0
    %21 = vst [vmem:[#allocation2 + $0x18] sm:$0xff] 0.0
  $region17: #{_lambda_.22} parent=0 // pred_fallthru
    _
  %v22 = vld [vmem:[#allocation2] sm:$0xff]
  %v23 = vld [vmem:[#allocation2 + $0x8] sm:$0xff]
  %v24 = vld [vmem:[#allocation2 + $0x10] sm:$0xff]
  %v25 = vld [vmem:[#allocation2 + $0x18] sm:$0xff]
  %v26 = vld [vmem:[%s0] sm:$0xff]
  %v27 = vld [vmem:[%s0 + $0x8] sm:$0xff]
  %v28 = vld [vmem:[%s0 + $0x10] sm:$0xff]
  %v29 = vld [vmem:[%s0 + $0x18] sm:$0xff]
  %v30 = vld [vmem:[%s0 + $0x20] sm:$0xff]
  %v31 = vld [vmem:[%s0 + $0x28] sm:$0xff]
  %v32 = vld [vmem:[%s0 + $0x30] sm:$0xff]
  %v33 = vld [vmem:[%s0 + $0x38] sm:$0xff]
  %v34 = vld [vmem:[%s0 + $0x40] sm:$0xff]
  %v35 = vld [vmem:[%s0 + $0x48] sm:$0xff]
  %v36 = vld [vmem:[%s0 + $0x50] sm:$0xff]
  %v37 = vld [vmem:[%s0 + $0x58] sm:$0xff]
  %v38 = vld [vmem:[%s0 + $0x60] sm:$0xff]
  %v39 = vld [vmem:[%s0 + $0x68] sm:$0xff]
  %v40 = vld [vmem:[%s0 + $0x70] sm:$0xff]
  %v41 = vld [vmem:[%s0 + $0x78] sm:$0xff]
  %v42 = vld [vmem:[%s1] sm:$0xff]
  %v43 = vld [vmem:[%s1 + $0x8] sm:$0xff]
  %v44 = vld [vmem:[%s1 + $0x10] sm:$0xff]
  %v45 = vld [vmem:[%s1 + $0x18] sm:$0xff]
  %v46 = vld [vmem:[%s1 + $0x20] sm:$0xff]
  %v47 = vld [vmem:[%s1 + $0x28] sm:$0xff]
  %v48 = vld [vmem:[%s1 + $0x30] sm:$0xff]
  %v49 = vld [vmem:[%s1 + $0x38] sm:$0xff]
  %v50 = vld [vmem:[%s1 + $0x40] sm:$0xff]
  %v51 = vld [vmem:[%s1 + $0x48] sm:$0xff]
  %v52 = vld [vmem:[%s1 + $0x50] sm:$0xff]
  %v53 = vld [vmem:[%s1 + $0x58] sm:$0xff]
  %v54 = vld [vmem:[%s1 + $0x60] sm:$0xff]
  %v55 = vld [vmem:[%s1 + $0x68] sm:$0xff]
  %v56 = vld [vmem:[%s1 + $0x70] sm:$0xff]
  %v57 = vld [vmem:[%s1 + $0x78] sm:$0xff]
  %v58 = vld [vmem:[%s1 + $0x80] sm:$0xff]
  %v59 = vld [vmem:[%s1 + $0x88] sm:$0xff]
  %v60 = vld [vmem:[%s1 + $0x90] sm:$0xff]
  %v61 = vld [vmem:[%s1 + $0x98] sm:$0xff]
  %v62 = vld [vmem:[%s1 + $0xa0] sm:$0xff]
  %v63 = vld [vmem:[%s1 + $0xa8] sm:$0xff]
  %v64 = vld [vmem:[%s1 + $0xb0] sm:$0xff]
  %v65 = vld [vmem:[%s1 + $0xb8] sm:$0xff]
  %v66 = vld [vmem:[%s1 + $0xc0] sm:$0xff]
  %v67 = vld [vmem:[%s1 + $0xc8] sm:$0xff]
  %v68 = vld [vmem:[%s1 + $0xd0] sm:$0xff]
  %v69 = vld [vmem:[%s1 + $0xd8] sm:$0xff]
  %v70 = vld [vmem:[%s1 + $0xe0] sm:$0xff]
  %v71 = vld [vmem:[%s1 + $0xe8] sm:$0xff]
  %v72 = vld [vmem:[%s1 + $0xf0] sm:$0xff]
  %v73 = vld [vmem:[%s1 + $0xf8] sm:$0xff]
  %v74 = vld [vmem:[%s1 + $0x100] sm:$0xff]
  %v75 = vld [vmem:[%s1 + $0x108] sm:$0xff]
  %v76 = vld [vmem:[%s1 + $0x110] sm:$0xff]
  %v77 = vld [vmem:[%s1 + $0x118] sm:$0xff]
  %v78 = vld [vmem:[%s1 + $0x120] sm:$0xff]
  %v79 = vld [vmem:[%s1 + $0x128] sm:$0xff]
  %v80 = vld [vmem:[%s1 + $0x130] sm:$0xff]
  %v81 = vld [vmem:[%s1 + $0x138] sm:$0xff]
  %v82 = vld [vmem:[%s1 + $0x140] sm:$0xff]
  %v83 = vld [vmem:[%s1 + $0x148] sm:$0xff]
  %v84 = vld [vmem:[%s1 + $0x150] sm:$0xff]
  %v85 = vld [vmem:[%s1 + $0x158] sm:$0xff]
  %v86 = vld [vmem:[%s1 + $0x160] sm:$0xff]
  %v87 = vld [vmem:[%s1 + $0x168] sm:$0xff]
  %v88 = vld [vmem:[%s1 + $0x170] sm:$0xff]
  %v89 = vld [vmem:[%s1 + $0x178] sm:$0xff]
  %v90 = vld [vmem:[%s1 + $0x180] sm:$0xff]
  %v91 = vld [vmem:[%s1 + $0x188] sm:$0xff]
  %v92 = vld [vmem:[%s1 + $0x190] sm:$0xff]
  %v93 = vld [vmem:[%s1 + $0x198] sm:$0xff]
  %v94 = vld [vmem:[%s1 + $0x1a0] sm:$0xff]
  %v95 = vld [vmem:[%s1 + $0x1a8] sm:$0xff]
  %v96 = vld [vmem:[%s1 + $0x1b0] sm:$0xff]
  %v97 = vld [vmem:[%s1 + $0x1b8] sm:$0xff]
  %v98 = vld [vmem:[%s1 + $0x1c0] sm:$0xff]
  %v99 = vld [vmem:[%s1 + $0x1c8] sm:$0xff]
  %v100 = vld [vmem:[%s1 + $0x1d0] sm:$0xff]
  %v101 = vld [vmem:[%s1 + $0x1d8] sm:$0xff]
  %v102 = vld [vmem:[%s1 + $0x1e0] sm:$0xff]
  %v103 = vld [vmem:[%s1 + $0x1e8] sm:$0xff]
  %v104 = vld [vmem:[%s1 + $0x1f0] sm:$0xff]
  %v105 = vld [vmem:[%s1 + $0x1f8] sm:$0xff]
  %106 = vmatprep.subr.mxu0 0.0
  %107 = vmatpush1.msra.mxu0 %v42
  %108 = vmatprep.subr.mxu0 0.0
  %109 = vmatpush1.msra.mxu0 %v43
  %110 = vmatprep.subr.mxu0 0.0
  %111 = vmatpush1.msra.mxu0 %v44
  %112 = vmatprep.subr.mxu0 0.0
  %113 = vmatpush1.msra.mxu0 %v45
  %114 = vmatprep.subr.mxu0 0.0
  %115 = vmatpush1.msra.mxu0 %v46
  %116 = vmatprep.subr.mxu0 0.0
  %117 = vmatpush1.msra.mxu0 %v47
  %118 = vmatprep.subr.mxu0 0.0
  %119 = vmatpush1.msra.mxu0 %v48
  %120 = vmatprep.subr.mxu0 0.0
  %121 = vmatpush1.msra.mxu0 %v49
  %122 = vmatprep.subr.mxu0 0.0
  %123 = vmatpush1.msra.mxu0 %v50
  %124 = vmatprep.subr.mxu0 0.0
  %125 = vmatpush1.msra.mxu0 %v51
  %126 = vmatprep.subr.mxu0 0.0
  %127 = vmatpush1.msra.mxu0 %v52
  %128 = vmatprep.subr.mxu0 0.0
  %129 = vmatpush1.msra.mxu0 %v53
  %130 = vmatprep.subr.mxu0 0.0
  %131 = vmatpush1.msra.mxu0 %v54
  %132 = vmatprep.subr.mxu0 0.0
  %133 = vmatpush1.msra.mxu0 %v55
  %134 = vmatprep.subr.mxu0 0.0
  %135 = vmatpush1.msra.mxu0 %v56
  %136 = vmatprep.subr.mxu0 0.0
  %137 = vmatpush1.msra.mxu0 %v57
  %138 = vmatprep.subr.mxu0 0.0
  %139 = vmatpush1.msra.mxu0 %v58
  %140 = vmatprep.subr.mxu0 0.0
  %141 = vmatpush1.msra.mxu0 %v59
  %142 = vmatprep.subr.mxu0 0.0
  %143 = vmatpush1.msra.mxu0 %v60
  %144 = vmatprep.subr.mxu0 0.0
  %145 = vmatpush1.msra.mxu0 %v61
  %146 = vmatprep.subr.mxu0 0.0
  %147 = vmatpush1.msra.mxu0 %v62
  %148 = vmatprep.subr.mxu0 0.0
  %149 = vmatpush1.msra.mxu0 %v63
  %150 = vmatprep.subr.mxu0 0.0
  %151 = vmatpush1.msra.mxu0 %v64
  %152 = vmatprep.subr.mxu0 0.0
  %153 = vmatpush1.msra.mxu0 %v65
  %154 = vmatprep.subr.mxu0 0.0
  %155 = vmatpush1.msra.mxu0 %v66
  %156 = vmatprep.subr.mxu0 0.0
  %157 = vmatpush1.msra.mxu0 %v67
  %158 = vmatprep.subr.mxu0 0.0
  %159 = vmatpush1.msra.mxu0 %v68
  %160 = vmatprep.subr.mxu0 0.0
  %161 = vmatpush1.msra.mxu0 %v69
  %162 = vmatprep.subr.mxu0 0.0
  %163 = vmatpush1.msra.mxu0 %v70
  %164 = vmatprep.subr.mxu0 0.0
  %165 = vmatpush1.msra.mxu0 %v71
  %166 = vmatprep.subr.mxu0 0.0
  %167 = vmatpush1.msra.mxu0 %v72
  %168 = vmatprep.subr.mxu0 0.0
  %169 = vmatpush1.msra.mxu0 %v73
  %170 = vmatprep.mubr.f32.mxu0 %v27
  %171 = vmatmul.mubr.f32.gmra.mrb[0].mxu0 %v26
  %v172 = vpop.f32.mrb[0].mxu0
  %v173 = vadd.f32 0.0, %v172
  %v174 = vpop.f32.mrb[0].mxu0
  %175 = vmatprep.mubr.f32.mxu0 %v31
  %176 = vmatmul.mubr.f32.gmra.mrb[0].mxu0 %v30
  %v177 = vpop.f32.mrb[0].mxu0
  %v178 = vadd.f32 0.0, %v177
  %v179 = vpop.f32.mrb[0].mxu0
  %180 = vmatprep.mubr.f32.mxu0 %v35
  %181 = vmatmul.mubr.f32.gmra.mrb[0].mxu0 %v34
  %v182 = vpop.f32.mrb[0].mxu0
  %v183 = vadd.f32 0.0, %v182
  %v184 = vpop.f32.mrb[0].mxu0
  %185 = vmatprep.mubr.f32.mxu0 %v39
  %186 = vmatmul.mubr.f32.gmra.mrb[0].mxu0 %v38
  %v187 = vpop.f32.mrb[0].mxu0
  %v188 = vadd.f32 0.0, %v187
  %v189 = vpop.f32.mrb[0].mxu0
  %190 = vdwg.mxu0
  %191 = vmatprep.subr.mxu0 0.0
  %192 = vmatpush1.msra.mxu0 %v74
  %193 = vmatprep.subr.mxu0 0.0
  %194 = vmatpush1.msra.mxu0 %v75
  %195 = vmatprep.subr.mxu0 0.0
  %196 = vmatpush1.msra.mxu0 %v76
  %197 = vmatprep.subr.mxu0 0.0
  %198 = vmatpush1.msra.mxu0 %v77
  %199 = vmatprep.subr.mxu0 0.0
  %200 = vmatpush1.msra.mxu0 %v78
  %201 = vmatprep.subr.mxu0 0.0
  %202 = vmatpush1.msra.mxu0 %v79
  %203 = vmatprep.subr.mxu0 0.0
  %204 = vmatpush1.msra.mxu0 %v80
  %205 = vmatprep.subr.mxu0 0.0
  %206 = vmatpush1.msra.mxu0 %v81
  %207 = vmatprep.subr.mxu0 0.0
  %208 = vmatpush1.msra.mxu0 %v82
  %209 = vmatprep.subr.mxu0 0.0
  %210 = vmatpush1.msra.mxu0 %v83
  %211 = vmatprep.subr.mxu0 0.0
  %212 = vmatpush1.msra.mxu0 %v84
  %213 = vmatprep.subr.mxu0 0.0
  %214 = vmatpush1.msra.mxu0 %v85
  %215 = vmatprep.subr.mxu0 0.0
  %216 = vmatpush1.msra.mxu0 %v86
  %217 = vmatprep.subr.mxu0 0.0
  %218 = vmatpush1.msra.mxu0 %v87
  %219 = vmatprep.subr.mxu0 0.0
  %220 = vmatpush1.msra.mxu0 %v88
  %221 = vmatprep.subr.mxu0 0.0
  %222 = vmatpush1.msra.mxu0 %v89
  %223 = vmatprep.subr.mxu0 0.0
  %224 = vmatpush1.msra.mxu0 %v90
  %225 = vmatprep.subr.mxu0 0.0
  %226 = vmatpush1.msra.mxu0 %v91
  %227 = vmatprep.subr.mxu0 0.0
  %228 = vmatpush1.msra.mxu0 %v92
  %229 = vmatprep.subr.mxu0 0.0
  %230 = vmatpush1.msra.mxu0 %v93
  %231 = vmatprep.subr.mxu0 0.0
  %232 = vmatpush1.msra.mxu0 %v94
  %233 = vmatprep.subr.mxu0 0.0
  %234 = vmatpush1.msra.mxu0 %v95
  %235 = vmatprep.subr.mxu0 0.0
  %236 = vmatpush1.msra.mxu0 %v96
  %237 = vmatprep.subr.mxu0 0.0
  %238 = vmatpush1.msra.mxu0 %v97
  %239 = vmatprep.subr.mxu0 0.0
  %240 = vmatpush1.msra.mxu0 %v98
  %241 = vmatprep.subr.mxu0 0.0
  %242 = vmatpush1.msra.mxu0 %v99
  %243 = vmatprep.subr.mxu0 0.0
  %244 = vmatpush1.msra.mxu0 %v100
  %245 = vmatprep.subr.mxu0 0.0
  %246 = vmatpush1.msra.mxu0 %v101
  %247 = vmatprep.subr.mxu0 0.0
  %248 = vmatpush1.msra.mxu0 %v102
  %249 = vmatprep.subr.mxu0 0.0
  %250 = vmatpush1.msra.mxu0 %v103
  %251 = vmatprep.subr.mxu0 0.0
  %252 = vmatpush1.msra.mxu0 %v104
  %253 = vmatprep.subr.mxu0 0.0
  %254 = vmatpush1.msra.mxu0 %v105
  %255 = vmatprep.mubr.f32.mxu0 %v29
  %256 = vmatmul.mubr.f32.gmra.mrb[0].mxu0 %v28
  %v257 = vpop.f32.mrb[0].mxu0
  %v258 = vadd.f32 %v173, %v257
  %v259 = vpop.f32.mrb[0].mxu0
  %260 = vmatprep.mubr.f32.mxu0 %v33
  %261 = vmatmul.mubr.f32.gmra.mrb[0].mxu0 %v32
  %v262 = vpop.f32.mrb[0].mxu0
  %v263 = vadd.f32 %v178, %v262
  %v264 = vpop.f32.mrb[0].mxu0
  %265 = vmatprep.mubr.f32.mxu0 %v37
  %266 = vmatmul.mubr.f32.gmra.mrb[0].mxu0 %v36
  %v267 = vpop.f32.mrb[0].mxu0
  %v268 = vadd.f32 %v183, %v267
  %v269 = vpop.f32.mrb[0].mxu0
  %270 = vmatprep.mubr.f32.mxu0 %v41
  %271 = vmatmul.mubr.f32.gmra.mrb[0].mxu0 %v40
  %v272 = vpop.f32.mrb[0].mxu0
  %v273 = vadd.f32 %v188, %v272
  %v274 = vpop.f32.mrb[0].mxu0
  %275 = vdwg.mxu0
  %v276 = vadd.f32 %v22, %v258
  %v277 = vadd.f32 %v23, %v263
  %v278 = vadd.f32 %v24, %v268
  %v279 = vadd.f32 %v25, %v273
  %280 = vst [vmem:[#allocation2] sm:$0xff] %v276
  %281 = vst [vmem:[#allocation2 + $0x8] sm:$0xff] %v277
  %282 = vst [vmem:[#allocation2 + $0x10] sm:$0xff] %v278
  %283 = vst [vmem:[#allocation2 + $0x18] sm:$0xff] %v279
  // Predicated region
  $region18: #{_lambda_.22} parent=0 // pred_check
    %p284 = pneg %p14
  $region19: #{_lambda_.22} parent=0 // pred_check_branch
    %286 = sbr.rel (%p284) target = $region21
  $region20: #{_lambda_.22} parent=0 // pred_region
    %v287 = vld [vmem:[#allocation2] sm:$0xff]
    %v288 = vld [vmem:[#allocation2 + $0x8] sm:$0xff]
    %v289 = vld [vmem:[#allocation2 + $0x10] sm:$0xff]
    %v290 = vld [vmem:[#allocation2 + $0x18] sm:$0xff]
    %v291 = vld [vmem:[%s2] sm:$0x1]
    %v293 = vlaneseq
    %v294 = vshrl.u32 %v293, 7
    %v295 = vsub.s32 0, %v294
    %v296 = vrot.slane %v291, %v295
    %v298 = vadd.f32 %v287, %v296
    %v299 = vadd.f32 %v288, %v296
    %v300 = vadd.f32 %v289, %v296
    %v301 = vadd.f32 %v290, %v296
    %302 = vst [vmem:[%s3] sm:$0xff] %v298
    %303 = vst [vmem:[%s3 + $0x8] sm:$0xff] %v299
    %304 = vst [vmem:[%s3 + $0x10] sm:$0xff] %v300
    %305 = vst [vmem:[%s3 + $0x18] sm:$0xff] %v301
  $region21: #{_lambda_.22} parent=0 // pred_fallthru
    _
  // Predicated region
  $region22: #{_lambda_.22} parent=0 // pred_check
    _
  $region23: #{_lambda_.22} parent=0 // pred_check_branch
    %307 = sbr.rel (0) target = $region25
  $region24: #{_lambda_.22} parent=0 // pred_region
    _
  $region25: #{_lambda_.22} parent=0 // pred_fallthru
    _
  // Predicated region
  $region26: #{_lambda_.22} parent=0 // pred_check
    _
  $region27: #{_lambda_.22} parent=0 // pred_check_branch
    %309 = sbr.rel (0) target = $region29
  $region28: #{_lambda_.22} parent=0 // pred_region
    _
  $region29: #{_lambda_.22} parent=0 // pred_fallthru
    _

// kernel: _lambda_.21
$region0: #{_lambda_.21}
  #allocation0 [shape = 'u32[]', space=smem, size = 0x4, offset = 0x4, fixed_abs, tag = 'smem constant byte address 0x4 - core index']
  #allocation1 [shape = 'u32[144,128]{1,0:T(1,128)}', space=vmem, size = 0x12000, scoped, tag = 'internal scratch']
  #allocation2 [shape = 'f32[32,512]{1,0:T(8,128)}', space=vmem, size = 0x10000, scoped, tag = 'scratch operand']
  %s0 = inlined_call_operand.vmem [shape: f32[32,128], index: 0, kind: input, shape index: {}]
  %s1 = inlined_call_operand.vmem [shape: f32[128,512], index: 1, kind: input, shape index: {}]
  %s2 = inlined_call_operand.vmem [shape: f32[1,512], index: 2, kind: input, shape index: {}]
  %s3 = inlined_call_operand.vmem [shape: f32[32,512], index: 3, kind: output, shape index: {}]
  %s4 = sld [smem:[#allocation0]]
  $region30: #{_lambda_.21} parent=0
    _
  %s6 = ssub.s32 1, %s4
  %s7 = scalar_select 0, %s6, %s4
  // Predicated region
  $region2: #{_lambda_.21} parent=0 // pred_check
    _
  $region3: #{_lambda_.21} parent=0 // pred_check_branch
    %9 = sbr.rel (0) target = $region5
  $region4: #{_lambda_.21} parent=0 // pred_region
    _
  $region5: #{_lambda_.21} parent=0 // pred_fallthru
    _
  // Predicated region
  $region6: #{_lambda_.21} parent=0 // pred_check
    _
  $region7: #{_lambda_.21} parent=0 // pred_check_branch
    %11 = sbr.rel (0) target = $region9
  $region8: #{_lambda_.21} parent=0 // pred_region
    _
  $region9: #{_lambda_.21} parent=0 // pred_fallthru
    _
  // Predicated region
  $region10: #{_lambda_.21} parent=0 // pred_check
    _
  $region11: #{_lambda_.21} parent=0 // pred_check_branch
    %13 = sbr.rel (0) target = $region13
  $region12: #{_lambda_.21} parent=0 // pred_region
    _
  $region13: #{_lambda_.21} parent=0 // pred_fallthru
    _
  %p14 = scmp.eq.s32.totalorder 0, 0
  // Predicated region
  $region14: #{_lambda_.21} parent=0 // pred_check
    %p15 = pneg %p14
  $region15: #{_lambda_.21} parent=0 // pred_check_branch
    %17 = sbr.rel (%p15) target = $region17
  $region16: #{_lambda_.21} parent=0 // pred_region
    %18 = vst [vmem:[#allocation2] sm:$0xff] 0.0
    %19 = vst [vmem:[#allocation2 + $0x8] sm:$0xff] 0.0
    %20 = vst [vmem:[#allocation2 + $0x10] sm:$0xff] 0.0
    %21 = vst [vmem:[#allocation2 + $0x18] sm:$0xff] 0.0
    %22 = vst [vmem:[#allocation2 + $0x20] sm:$0xff] 0.0
    %23 = vst [vmem:[#allocation2 + $0x28] sm:$0xff] 0.0
    %24 = vst [vmem:[#allocation2 + $0x30] sm:$0xff] 0.0
    %25 = vst [vmem:[#allocation2 + $0x38] sm:$0xff] 0.0
    %26 = vst [vmem:[#allocation2 + $0x40] sm:$0xff] 0.0
    %27 = vst [vmem:[#allocation2 + $0x48] sm:$0xff] 0.0
    %28 = vst [vmem:[#allocation2 + $0x50] sm:$0xff] 0.0
    %29 = vst [vmem:[#allocation2 + $0x58] sm:$0xff] 0.0
    %30 = vst [vmem:[#allocation2 + $0x60] sm:$0xff] 0.0
    %31 = vst [vmem:[#allocation2 + $0x68] sm:$0xff] 0.0
    %32 = vst [vmem:[#allocation2 + $0x70] sm:$0xff] 0.0
    %33 = vst [vmem:[#allocation2 + $0x78] sm:$0xff] 0.0
  $region17: #{_lambda_.21} parent=0 // pred_fallthru
    _
  %v34 = vld [vmem:[#allocation2] sm:$0xff]
  %v35 = vld [vmem:[#allocation2 + $0x8] sm:$0xff]
  %v36 = vld [vmem:[#allocation2 + $0x10] sm:$0xff]
  %v37 = vld [vmem:[#allocation2 + $0x18] sm:$0xff]
  %v38 = vld [vmem:[#allocation2 + $0x20] sm:$0xff]
  %v39 = vld [vmem:[#allocation2 + $0x28] sm:$0xff]
  %v40 = vld [vmem:[#allocation2 + $0x30] sm:$0xff]
  %v41 = vld [vmem:[#allocation2 + $0x38] sm:$0xff]
  %v42 = vld [vmem:[#allocation2 + $0x40] sm:$0xff]
  %v43 = vld [vmem:[#allocation2 + $0x48] sm:$0xff]
  %v44 = vld [vmem:[#allocation2 + $0x50] sm:$0xff]
  %v45 = vld [vmem:[#allocation2 + $0x58] sm:$0xff]
  %v46 = vld [vmem:[#allocation2 + $0x60] sm:$0xff]
  %v47 = vld [vmem:[#allocation2 + $0x68] sm:$0xff]
  %v48 = vld [vmem:[#allocation2 + $0x70] sm:$0xff]
  %v49 = vld [vmem:[#allocation2 + $0x78] sm:$0xff]
  %v50 = vld [vmem:[%s0] sm:$0xff]
  %v51 = vld [vmem:[%s0 + $0x8] sm:$0xff]
  %v52 = vld [vmem:[%s0 + $0x10] sm:$0xff]
  %v53 = vld [vmem:[%s0 + $0x18] sm:$0xff]
  %v54 = vld [vmem:[%s1] sm:$0xff]
  %v55 = vld [vmem:[%s1 + $0x8] sm:$0xff]
  %v56 = vld [vmem:[%s1 + $0x10] sm:$0xff]
  %v57 = vld [vmem:[%s1 + $0x18] sm:$0xff]
  %v58 = vld [vmem:[%s1 + $0x20] sm:$0xff]
  %v59 = vld [vmem:[%s1 + $0x28] sm:$0xff]
  %v60 = vld [vmem:[%s1 + $0x30] sm:$0xff]
  %v61 = vld [vmem:[%s1 + $0x38] sm:$0xff]
  %v62 = vld [vmem:[%s1 + $0x40] sm:$0xff]
  %v63 = vld [vmem:[%s1 + $0x48] sm:$0xff]
  %v64 = vld [vmem:[%s1 + $0x50] sm:$0xff]
  %v65 = vld [vmem:[%s1 + $0x58] sm:$0xff]
  %v66 = vld [vmem:[%s1 + $0x60] sm:$0xff]
  %v67 = vld [vmem:[%s1 + $0x68] sm:$0xff]
  %v68 = vld [vmem:[%s1 + $0x70] sm:$0xff]
  %v69 = vld [vmem:[%s1 + $0x78] sm:$0xff]
  %v70 = vld [vmem:[%s1 + $0x80] sm:$0xff]
  %v71 = vld [vmem:[%s1 + $0x88] sm:$0xff]
  %v72 = vld [vmem:[%s1 + $0x90] sm:$0xff]
  %v73 = vld [vmem:[%s1 + $0x98] sm:$0xff]
  %v74 = vld [vmem:[%s1 + $0xa0] sm:$0xff]
  %v75 = vld [vmem:[%s1 + $0xa8] sm:$0xff]
  %v76 = vld [vmem:[%s1 + $0xb0] sm:$0xff]
  %v77 = vld [vmem:[%s1 + $0xb8] sm:$0xff]
  %v78 = vld [vmem:[%s1 + $0xc0] sm:$0xff]
  %v79 = vld [vmem:[%s1 + $0xc8] sm:$0xff]
  %v80 = vld [vmem:[%s1 + $0xd0] sm:$0xff]
  %v81 = vld [vmem:[%s1 + $0xd8] sm:$0xff]
  %v82 = vld [vmem:[%s1 + $0xe0] sm:$0xff]
  %v83 = vld [vmem:[%s1 + $0xe8] sm:$0xff]
  %v84 = vld [vmem:[%s1 + $0xf0] sm:$0xff]
  %v85 = vld [vmem:[%s1 + $0xf8] sm:$0xff]
  %v86 = vld [vmem:[%s1 + $0x100] sm:$0xff]
  %v87 = vld [vmem:[%s1 + $0x108] sm:$0xff]
  %v88 = vld [vmem:[%s1 + $0x110] sm:$0xff]
  %v89 = vld [vmem:[%s1 + $0x118] sm:$0xff]
  %v90 = vld [vmem:[%s1 + $0x120] sm:$0xff]
  %v91 = vld [vmem:[%s1 + $0x128] sm:$0xff]
  %v92 = vld [vmem:[%s1 + $0x130] sm:$0xff]
  %v93 = vld [vmem:[%s1 + $0x138] sm:$0xff]
  %v94 = vld [vmem:[%s1 + $0x140] sm:$0xff]
  %v95 = vld [vmem:[%s1 + $0x148] sm:$0xff]
  %v96 = vld [vmem:[%s1 + $0x150] sm:$0xff]
  %v97 = vld [vmem:[%s1 + $0x158] sm:$0xff]
  %v98 = vld [vmem:[%s1 + $0x160] sm:$0xff]
  %v99 = vld [vmem:[%s1 + $0x168] sm:$0xff]
  %v100 = vld [vmem:[%s1 + $0x170] sm:$0xff]
  %v101 = vld [vmem:[%s1 + $0x178] sm:$0xff]
  %v102 = vld [vmem:[%s1 + $0x180] sm:$0xff]
  %v103 = vld [vmem:[%s1 + $0x188] sm:$0xff]
  %v104 = vld [vmem:[%s1 + $0x190] sm:$0xff]
  %v105 = vld [vmem:[%s1 + $0x198] sm:$0xff]
  %v106 = vld [vmem:[%s1 + $0x1a0] sm:$0xff]
  %v107 = vld [vmem:[%s1 + $0x1a8] sm:$0xff]
  %v108 = vld [vmem:[%s1 + $0x1b0] sm:$0xff]
  %v109 = vld [vmem:[%s1 + $0x1b8] sm:$0xff]
  %v110 = vld [vmem:[%s1 + $0x1c0] sm:$0xff]
  %v111 = vld [vmem:[%s1 + $0x1c8] sm:$0xff]
  %v112 = vld [vmem:[%s1 + $0x1d0] sm:$0xff]
  %v113 = vld [vmem:[%s1 + $0x1d8] sm:$0xff]
  %v114 = vld [vmem:[%s1 + $0x1e0] sm:$0xff]
  %v115 = vld [vmem:[%s1 + $0x1e8] sm:$0xff]
  %v116 = vld [vmem:[%s1 + $0x1f0] sm:$0xff]
  %v117 = vld [vmem:[%s1 + $0x1f8] sm:$0xff]
  %118 = vmatprep.subr.mxu0 %v55
  %119 = vmatpush1.msra.mxu0 %v54
  %120 = vmatprep.subr.mxu0 %v59
  %121 = vmatpush1.msra.mxu0 %v58
  %122 = vmatprep.subr.mxu0 %v63
  %123 = vmatpush1.msra.mxu0 %v62
  %124 = vmatprep.subr.mxu0 %v67
  %125 = vmatpush1.msra.mxu0 %v66
  %126 = vmatprep.subr.mxu0 %v71
  %127 = vmatpush1.msra.mxu0 %v70
  %128 = vmatprep.subr.mxu0 %v75
  %129 = vmatpush1.msra.mxu0 %v74
  %130 = vmatprep.subr.mxu0 %v79
  %131 = vmatpush1.msra.mxu0 %v78
  %132 = vmatprep.subr.mxu0 %v83
  %133 = vmatpush1.msra.mxu0 %v82
  %134 = vmatprep.subr.mxu0 %v87
  %135 = vmatpush1.msra.mxu0 %v86
  %136 = vmatprep.subr.mxu0 %v91
  %137 = vmatpush1.msra.mxu0 %v90
  %138 = vmatprep.subr.mxu0 %v95
  %139 = vmatpush1.msra.mxu0 %v94
  %140 = vmatprep.subr.mxu0 %v99
  %141 = vmatpush1.msra.mxu0 %v98
  %142 = vmatprep.subr.mxu0 %v103
  %143 = vmatpush1.msra.mxu0 %v102
  %144 = vmatprep.subr.mxu0 %v107
  %145 = vmatpush1.msra.mxu0 %v106
  %146 = vmatprep.subr.mxu0 %v111
  %147 = vmatpush1.msra.mxu0 %v110
  %148 = vmatprep.subr.mxu0 %v115
  %149 = vmatpush1.msra.mxu0 %v114
  %150 = vmatprep.subr.mxu0 0.0
  %151 = vmatpush1.msra.mxu0 0.0
  %152 = vmatprep.subr.mxu0 0.0
  %153 = vmatpush1.msra.mxu0 0.0
  %154 = vmatprep.subr.mxu0 0.0
  %155 = vmatpush1.msra.mxu0 0.0
  %156 = vmatprep.subr.mxu0 0.0
  %157 = vmatpush1.msra.mxu0 0.0
  %158 = vmatprep.subr.mxu0 0.0
  %159 = vmatpush1.msra.mxu0 0.0
  %160 = vmatprep.subr.mxu0 0.0
  %161 = vmatpush1.msra.mxu0 0.0
  %162 = vmatprep.subr.mxu0 0.0
  %163 = vmatpush1.msra.mxu0 0.0
  %164 = vmatprep.subr.mxu0 0.0
  %165 = vmatpush1.msra.mxu0 0.0
  %166 = vmatprep.subr.mxu0 0.0
  %167 = vmatpush1.msra.mxu0 0.0
  %168 = vmatprep.subr.mxu0 0.0
  %169 = vmatpush1.msra.mxu0 0.0
  %170 = vmatprep.subr.mxu0 0.0
  %171 = vmatpush1.msra.mxu0 0.0
  %172 = vmatprep.subr.mxu0 0.0
  %173 = vmatpush1.msra.mxu0 0.0
  %174 = vmatprep.subr.mxu0 0.0
  %175 = vmatpush1.msra.mxu0 0.0
  %176 = vmatprep.subr.mxu0 0.0
  %177 = vmatpush1.msra.mxu0 0.0
  %178 = vmatprep.subr.mxu0 0.0
  %179 = vmatpush1.msra.mxu0 0.0
  %180 = vmatprep.subr.mxu0 0.0
  %181 = vmatpush1.msra.mxu0 0.0
  %182 = vmatprep.mubr.f32.mxu0 0.0
  %183 = vmatmul.mubr.f32.gmra.mrb[0].mxu0 %v50
  %v184 = vpop.f32.mrb[0].mxu0
  %v185 = vadd.f32 0.0, %v184
  %v186 = vpop.f32.mrb[0].mxu0
  %v187 = vadd.f32 0.0, %v186
  %188 = vmatprep.mubr.f32.mxu0 0.0
  %189 = vmatmul.mubr.f32.gmra.mrb[0].mxu0 %v51
  %v190 = vpop.f32.mrb[0].mxu0
  %v191 = vadd.f32 0.0, %v190
  %v192 = vpop.f32.mrb[0].mxu0
  %v193 = vadd.f32 0.0, %v192
  %194 = vmatprep.mubr.f32.mxu0 0.0
  %195 = vmatmul.mubr.f32.gmra.mrb[0].mxu0 %v52
  %v196 = vpop.f32.mrb[0].mxu0
  %v197 = vadd.f32 0.0, %v196
  %v198 = vpop.f32.mrb[0].mxu0
  %v199 = vadd.f32 0.0, %v198
  %200 = vmatprep.mubr.f32.mxu0 0.0
  %201 = vmatmul.mubr.f32.gmra.mrb[0].mxu0 %v53
  %v202 = vpop.f32.mrb[0].mxu0
  %v203 = vadd.f32 0.0, %v202
  %v204 = vpop.f32.mrb[0].mxu0
  %v205 = vadd.f32 0.0, %v204
  %206 = vdwg.mxu0
  %207 = vmatprep.subr.mxu0 %v57
  %208 = vmatpush1.msra.mxu0 %v56
  %209 = vmatprep.subr.mxu0 %v61
  %210 = vmatpush1.msra.mxu0 %v60
  %211 = vmatprep.subr.mxu0 %v65
  %212 = vmatpush1.msra.mxu0 %v64
  %213 = vmatprep.subr.mxu0 %v69
  %214 = vmatpush1.msra.mxu0 %v68
  %215 = vmatprep.subr.mxu0 %v73
  %216 = vmatpush1.msra.mxu0 %v72
  %217 = vmatprep.subr.mxu0 %v77
  %218 = vmatpush1.msra.mxu0 %v76
  %219 = vmatprep.subr.mxu0 %v81
  %220 = vmatpush1.msra.mxu0 %v80
  %221 = vmatprep.subr.mxu0 %v85
  %222 = vmatpush1.msra.mxu0 %v84
  %223 = vmatprep.subr.mxu0 %v89
  %224 = vmatpush1.msra.mxu0 %v88
  %225 = vmatprep.subr.mxu0 %v93
  %226 = vmatpush1.msra.mxu0 %v92
  %227 = vmatprep.subr.mxu0 %v97
  %228 = vmatpush1.msra.mxu0 %v96
  %229 = vmatprep.subr.mxu0 %v101
  %230 = vmatpush1.msra.mxu0 %v100
  %231 = vmatprep.subr.mxu0 %v105
  %232 = vmatpush1.msra.mxu0 %v104
  %233 = vmatprep.subr.mxu0 %v109
  %234 = vmatpush1.msra.mxu0 %v108
  %235 = vmatprep.subr.mxu0 %v113
  %236 = vmatpush1.msra.mxu0 %v112
  %237 = vmatprep.subr.mxu0 %v117
  %238 = vmatpush1.msra.mxu0 %v116
  %239 = vmatprep.subr.mxu0 0.0
  %240 = vmatpush1.msra.mxu0 0.0
  %241 = vmatprep.subr.mxu0 0.0
  %242 = vmatpush1.msra.mxu0 0.0
  %243 = vmatprep.subr.mxu0 0.0
  %244 = vmatpush1.msra.mxu0 0.0
  %245 = vmatprep.subr.mxu0 0.0
  %246 = vmatpush1.msra.mxu0 0.0
  %247 = vmatprep.subr.mxu0 0.0
  %248 = vmatpush1.msra.mxu0 0.0
  %249 = vmatprep.subr.mxu0 0.0
  %250 = vmatpush1.msra.mxu0 0.0
  %251 = vmatprep.subr.mxu0 0.0
  %252 = vmatpush1.msra.mxu0 0.0
  %253 = vmatprep.subr.mxu0 0.0
  %254 = vmatpush1.msra.mxu0 0.0
  %255 = vmatprep.subr.mxu0 0.0
  %256 = vmatpush1.msra.mxu0 0.0
  %257 = vmatprep.subr.mxu0 0.0
  %258 = vmatpush1.msra.mxu0 0.0
  %259 = vmatprep.subr.mxu0 0.0
  %260 = vmatpush1.msra.mxu0 0.0
  %261 = vmatprep.subr.mxu0 0.0
  %262 = vmatpush1.msra.mxu0 0.0
  %263 = vmatprep.subr.mxu0 0.0
  %264 = vmatpush1.msra.mxu0 0.0
  %265 = vmatprep.subr.mxu0 0.0
  %266 = vmatpush1.msra.mxu0 0.0
  %267 = vmatprep.subr.mxu0 0.0
  %268 = vmatpush1.msra.mxu0 0.0
  %269 = vmatprep.subr.mxu0 0.0
  %270 = vmatpush1.msra.mxu0 0.0
  %271 = vmatprep.mubr.f32.mxu0 0.0
  %272 = vmatmul.mubr.f32.gmra.mrb[0].mxu0 %v50
  %v273 = vpop.f32.mrb[0].mxu0
  %v274 = vadd.f32 0.0, %v273
  %v275 = vpop.f32.mrb[0].mxu0
  %v276 = vadd.f32 0.0, %v275
  %277 = vmatprep.mubr.f32.mxu0 0.0
  %278 = vmatmul.mubr.f32.gmra.mrb[0].mxu0 %v51
  %v279 = vpop.f32.mrb[0].mxu0
  %v280 = vadd.f32 0.0, %v279
  %v281 = vpop.f32.mrb[0].mxu0
  %v282 = vadd.f32 0.0, %v281
  %283 = vmatprep.mubr.f32.mxu0 0.0
  %284 = vmatmul.mubr.f32.gmra.mrb[0].mxu0 %v52
  %v285 = vpop.f32.mrb[0].mxu0
  %v286 = vadd.f32 0.0, %v285
  %v287 = vpop.f32.mrb[0].mxu0
  %v288 = vadd.f32 0.0, %v287
  %289 = vmatprep.mubr.f32.mxu0 0.0
  %290 = vmatmul.mubr.f32.gmra.mrb[0].mxu0 %v53
  %v291 = vpop.f32.mrb[0].mxu0
  %v292 = vadd.f32 0.0, %v291
  %v293 = vpop.f32.mrb[0].mxu0
  %v294 = vadd.f32 0.0, %v293
  %295 = vdwg.mxu0
  %v296 = vadd.f32 %v34, %v185
  %v297 = vadd.f32 %v35, %v187
  %v298 = vadd.f32 %v36, %v274
  %v299 = vadd.f32 %v37, %v276
  %v300 = vadd.f32 %v38, %v191
  %v301 = vadd.f32 %v39, %v193
  %v302 = vadd.f32 %v40, %v280
  %v303 = vadd.f32 %v41, %v282
  %v304 = vadd.f32 %v42, %v197
  %v305 = vadd.f32 %v43, %v199
  %v306 = vadd.f32 %v44, %v286
  %v307 = vadd.f32 %v45, %v288
  %v308 = vadd.f32 %v46, %v203
  %v309 = vadd.f32 %v47, %v205
  %v310 = vadd.f32 %v48, %v292
  %v311 = vadd.f32 %v49, %v294
  %312 = vst [vmem:[#allocation2] sm:$0xff] %v296
  %313 = vst [vmem:[#allocation2 + $0x8] sm:$0xff] %v297
  %314 = vst [vmem:[#allocation2 + $0x10] sm:$0xff] %v298
  %315 = vst [vmem:[#allocation2 + $0x18] sm:$0xff] %v299
  %316 = vst [vmem:[#allocation2 + $0x20] sm:$0xff] %v300
  %317 = vst [vmem:[#allocation2 + $0x28] sm:$0xff] %v301
  %318 = vst [vmem:[#allocation2 + $0x30] sm:$0xff] %v302
  %319 = vst [vmem:[#allocation2 + $0x38] sm:$0xff] %v303
  %320 = vst [vmem:[#allocation2 + $0x40] sm:$0xff] %v304
  %321 = vst [vmem:[#allocation2 + $0x48] sm:$0xff] %v305
  %322 = vst [vmem:[#allocation2 + $0x50] sm:$0xff] %v306
  %323 = vst [vmem:[#allocation2 + $0x58] sm:$0xff] %v307
  %324 = vst [vmem:[#allocation2 + $0x60] sm:$0xff] %v308
  %325 = vst [vmem:[#allocation2 + $0x68] sm:$0xff] %v309
  %326 = vst [vmem:[#allocation2 + $0x70] sm:$0xff] %v310
  %327 = vst [vmem:[#allocation2 + $0x78] sm:$0xff] %v311
  // Predicated region
  $region18: #{_lambda_.21} parent=0 // pred_check
    %p328 = pneg %p14
  $region19: #{_lambda_.21} parent=0 // pred_check_branch
    %330 = sbr.rel (%p328) target = $region21
  $region20: #{_lambda_.21} parent=0 // pred_region
    %v331 = vld [vmem:[#allocation2] sm:$0xff]
    %v332 = vld [vmem:[#allocation2 + $0x8] sm:$0xff]
    %v333 = vld [vmem:[#allocation2 + $0x10] sm:$0xff]
    %v334 = vld [vmem:[#allocation2 + $0x18] sm:$0xff]
    %v335 = vld [vmem:[#allocation2 + $0x20] sm:$0xff]
    %v336 = vld [vmem:[#allocation2 + $0x28] sm:$0xff]
    %v337 = vld [vmem:[#allocation2 + $0x30] sm:$0xff]
    %v338 = vld [vmem:[#allocation2 + $0x38] sm:$0xff]
    %v339 = vld [vmem:[#allocation2 + $0x40] sm:$0xff]
    %v340 = vld [vmem:[#allocation2 + $0x48] sm:$0xff]
    %v341 = vld [vmem:[#allocation2 + $0x50] sm:$0xff]
    %v342 = vld [vmem:[#allocation2 + $0x58] sm:$0xff]
    %v343 = vld [vmem:[#allocation2 + $0x60] sm:$0xff]
    %v344 = vld [vmem:[#allocation2 + $0x68] sm:$0xff]
    %v345 = vld [vmem:[#allocation2 + $0x70] sm:$0xff]
    %v346 = vld [vmem:[#allocation2 + $0x78] sm:$0xff]
    %v347 = vld [vmem:[%s2] sm:$0xf]
    %v349 = vlaneseq
    %v350 = vshrl.u32 %v349, 7
    %v351 = vsub.s32 0, %v350
    %v352 = vrot.slane %v347, %v351
    %v353 = vlaneseq
    %v354 = vshrl.u32 %v353, 7
    %v355 = vsub.s32 1, %v354
    %v356 = vrot.slane %v347, %v355
    %v357 = vlaneseq
    %v358 = vshrl.u32 %v357, 7
    %v359 = vsub.s32 2, %v358
    %v360 = vrot.slane %v347, %v359
    %v361 = vlaneseq
    %v362 = vshrl.u32 %v361, 7
    %v363 = vsub.s32 3, %v362
    %v364 = vrot.slane %v347, %v363
    %v369 = vadd.f32 %v331, %v352
    %v370 = vadd.f32 %v332, %v356
    %v371 = vadd.f32 %v333, %v360
    %v372 = vadd.f32 %v334, %v364
    %v373 = vadd.f32 %v335, %v352
    %v374 = vadd.f32 %v336, %v356
    %v375 = vadd.f32 %v337, %v360
    %v376 = vadd.f32 %v338, %v364
    %v377 = vadd.f32 %v339, %v352
    %v378 = vadd.f32 %v340, %v356
    %v379 = vadd.f32 %v341, %v360
    %v380 = vadd.f32 %v342, %v364
    %v381 = vadd.f32 %v343, %v352
    %v382 = vadd.f32 %v344, %v356
    %v383 = vadd.f32 %v345, %v360
    %v384 = vadd.f32 %v346, %v364
    %v385 = vmul.f32 %v369, 0.5
    %v386 = vmul.f32 %v370, 0.5
    %v387 = vmul.f32 %v371, 0.5
    %v388 = vmul.f32 %v372, 0.5
    %v389 = vmul.f32 %v373, 0.5
    %v390 = vmul.f32 %v374, 0.5
    %v391 = vmul.f32 %v375, 0.5
    %v392 = vmul.f32 %v376, 0.5
    %v393 = vmul.f32 %v377, 0.5
    %v394 = vmul.f32 %v378, 0.5
    %v395 = vmul.f32 %v379, 0.5
    %v396 = vmul.f32 %v380, 0.5
    %v397 = vmul.f32 %v381, 0.5
    %v398 = vmul.f32 %v382, 0.5
    %v399 = vmul.f32 %v383, 0.5
    %v400 = vmul.f32 %v384, 0.5
    %v401 = vmul.f32 %v369, 0.044715
    %v402 = vmul.f32 %v370, 0.044715
    %v403 = vmul.f32 %v371, 0.044715
    %v404 = vmul.f32 %v372, 0.044715
    %v405 = vmul.f32 %v373, 0.044715
    %v406 = vmul.f32 %v374, 0.044715
    %v407 = vmul.f32 %v375, 0.044715
    %v408 = vmul.f32 %v376, 0.044715
    %v409 = vmul.f32 %v377, 0.044715
    %v410 = vmul.f32 %v378, 0.044715
    %v411 = vmul.f32 %v379, 0.044715
    %v412 = vmul.f32 %v380, 0.044715
    %v413 = vmul.f32 %v381, 0.044715
    %v414 = vmul.f32 %v382, 0.044715
    %v415 = vmul.f32 %v383, 0.044715
    %v416 = vmul.f32 %v384, 0.044715
    %v417 = vmul.f32 %v401, %v369
    %v418 = vmul.f32 %v402, %v370
    %v419 = vmul.f32 %v403, %v371
    %v420 = vmul.f32 %v404, %v372
    %v421 = vmul.f32 %v405, %v373
    %v422 = vmul.f32 %v406, %v374
    %v423 = vmul.f32 %v407, %v375
    %v424 = vmul.f32 %v408, %v376
    %v425 = vmul.f32 %v409, %v377
    %v426 = vmul.f32 %v410, %v378
    %v427 = vmul.f32 %v411, %v379
    %v428 = vmul.f32 %v412, %v380
    %v429 = vmul.f32 %v413, %v381
    %v430 = vmul.f32 %v414, %v382
    %v431 = vmul.f32 %v415, %v383
    %v432 = vmul.f32 %v416, %v384
    %v433 = vmul.f32 %v417, %v369
    %v434 = vmul.f32 %v418, %v370
    %v435 = vmul.f32 %v419, %v371
    %v436 = vmul.f32 %v420, %v372
    %v437 = vmul.f32 %v421, %v373
    %v438 = vmul.f32 %v422, %v374
    %v439 = vmul.f32 %v423, %v375
    %v440 = vmul.f32 %v424, %v376
    %v441 = vmul.f32 %v425, %v377
    %v442 = vmul.f32 %v426, %v378
    %v443 = vmul.f32 %v427, %v379
    %v444 = vmul.f32 %v428, %v380
    %v445 = vmul.f32 %v429, %v381
    %v446 = vmul.f32 %v430, %v382
    %v447 = vmul.f32 %v431, %v383
    %v448 = vmul.f32 %v432, %v384
    %v449 = vadd.f32 %v369, %v433
    %v450 = vadd.f32 %v370, %v434
    %v451 = vadd.f32 %v371, %v435
    %v452 = vadd.f32 %v372, %v436
    %v453 = vadd.f32 %v373, %v437
    %v454 = vadd.f32 %v374, %v438
    %v455 = vadd.f32 %v375, %v439
    %v456 = vadd.f32 %v376, %v440
    %v457 = vadd.f32 %v377, %v441
    %v458 = vadd.f32 %v378, %v442
    %v459 = vadd.f32 %v379, %v443
    %v460 = vadd.f32 %v380, %v444
    %v461 = vadd.f32 %v381, %v445
    %v462 = vadd.f32 %v382, %v446
    %v463 = vadd.f32 %v383, %v447
    %v464 = vadd.f32 %v384, %v448
    %v465 = vmul.f32 %v449, 0.7978846
    %v466 = vmul.f32 %v450, 0.7978846
    %v467 = vmul.f32 %v451, 0.7978846
    %v468 = vmul.f32 %v452, 0.7978846
    %v469 = vmul.f32 %v453, 0.7978846
    %v470 = vmul.f32 %v454, 0.7978846
    %v471 = vmul.f32 %v455, 0.7978846
    %v472 = vmul.f32 %v456, 0.7978846
    %v473 = vmul.f32 %v457, 0.7978846
    %v474 = vmul.f32 %v458, 0.7978846
    %v475 = vmul.f32 %v459, 0.7978846
    %v476 = vmul.f32 %v460, 0.7978846
    %v477 = vmul.f32 %v461, 0.7978846
    %v478 = vmul.f32 %v462, 0.7978846
    %v479 = vmul.f32 %v463, 0.7978846
    %v480 = vmul.f32 %v464, 0.7978846
    %v481 = vtanh.pop %v465
    %v482 = vtanh.pop %v466
    %v483 = vtanh.pop %v467
    %v484 = vtanh.pop %v468
    %v485 = vtanh.pop %v469
    %v486 = vtanh.pop %v470
    %v487 = vtanh.pop %v471
    %v488 = vtanh.pop %v472
    %v489 = vtanh.pop %v473
    %v490 = vtanh.pop %v474
    %v491 = vtanh.pop %v475
    %v492 = vtanh.pop %v476
    %v493 = vtanh.pop %v477
    %v494 = vtanh.pop %v478
    %v495 = vtanh.pop %v479
    %v496 = vtanh.pop %v480
    %v497 = vadd.f32 %v481, 1.0
    %v498 = vadd.f32 %v482, 1.0
    %v499 = vadd.f32 %v483, 1.0
    %v500 = vadd.f32 %v484, 1.0
    %v501 = vadd.f32 %v485, 1.0
    %v502 = vadd.f32 %v486, 1.0
    %v503 = vadd.f32 %v487, 1.0
    %v504 = vadd.f32 %v488, 1.0
    %v505 = vadd.f32 %v489, 1.0
    %v506 = vadd.f32 %v490, 1.0
    %v507 = vadd.f32 %v491, 1.0
    %v508 = vadd.f32 %v492, 1.0
    %v509 = vadd.f32 %v493, 1.0
    %v510 = vadd.f32 %v494, 1.0
    %v511 = vadd.f32 %v495, 1.0
    %v512 = vadd.f32 %v496, 1.0
    %v513 = vmul.f32 %v385, %v497
    %v514 = vmul.f32 %v386, %v498
    %v515 = vmul.f32 %v387, %v499
    %v516 = vmul.f32 %v388, %v500
    %v517 = vmul.f32 %v389, %v501
    %v518 = vmul.f32 %v390, %v502
    %v519 = vmul.f32 %v391, %v503
    %v520 = vmul.f32 %v392, %v504
    %v521 = vmul.f32 %v393, %v505
    %v522 = vmul.f32 %v394, %v506
    %v523 = vmul.f32 %v395, %v507
    %v524 = vmul.f32 %v396, %v508
    %v525 = vmul.f32 %v397, %v509
    %v526 = vmul.f32 %v398, %v510
    %v527 = vmul.f32 %v399, %v511
    %v528 = vmul.f32 %v400, %v512
    %529 = vst [vmem:[%s3] sm:$0xff] %v513
    %530 = vst [vmem:[%s3 + $0x8] sm:$0xff] %v514
    %531 = vst [vmem:[%s3 + $0x10] sm:$0xff] %v515
    %532 = vst [vmem:[%s3 + $0x18] sm:$0xff] %v516
    %533 = vst [vmem:[%s3 + $0x20] sm:$0xff] %v517
    %534 = vst [vmem:[%s3 + $0x28] sm:$0xff] %v518
    %535 = vst [vmem:[%s3 + $0x30] sm:$0xff] %v519
    %536 = vst [vmem:[%s3 + $0x38] sm:$0xff] %v520
    %537 = vst [vmem:[%s3 + $0x40] sm:$0xff] %v521
    %538 = vst [vmem:[%s3 + $0x48] sm:$0xff] %v522
    %539 = vst [vmem:[%s3 + $0x50] sm:$0xff] %v523
    %540 = vst [vmem:[%s3 + $0x58] sm:$0xff] %v524
    %541 = vst [vmem:[%s3 + $0x60] sm:$0xff] %v525
    %542 = vst [vmem:[%s3 + $0x68] sm:$0xff] %v526
    %543 = vst [vmem:[%s3 + $0x70] sm:$0xff] %v527
    %544 = vst [vmem:[%s3 + $0x78] sm:$0xff] %v528
  $region21: #{_lambda_.21} parent=0 // pred_fallthru
    _
  // Predicated region
  $region22: #{_lambda_.21} parent=0 // pred_check
    _
  $region23: #{_lambda_.21} parent=0 // pred_check_branch
    %546 = sbr.rel (0) target = $region25
  $region24: #{_lambda_.21} parent=0 // pred_region
    _
  $region25: #{_lambda_.21} parent=0 // pred_fallthru
    _
  // Predicated region
  $region26: #{_lambda_.21} parent=0 // pred_check
    _
  $region27: #{_lambda_.21} parent=0 // pred_check_branch
    %548 = sbr.rel (0) target = $region29
  $region28: #{_lambda_.21} parent=0 // pred_region
    _
  $region29: #{_lambda_.21} parent=0 // pred_fallthru
    _

// kernel: _lambda_.31
$region0: #{_lambda_.31}
  #allocation0 [shape = 'u32[]', space=smem, size = 0x4, offset = 0x4, fixed_abs, tag = 'smem constant byte address 0x4 - core index']
  #allocation1 [shape = 'u32[144,128]{1,0:T(1,128)}', space=vmem, size = 0x12000, scoped, tag = 'internal scratch']
  #allocation2 [shape = 'f32[32,512]{1,0:T(8,128)}', space=vmem, size = 0x10000, scoped, tag = 'scratch operand']
  %s0 = inlined_call_operand.vmem [shape: f32[32,128], index: 0, kind: input, shape index: {}]
  %s1 = inlined_call_operand.vmem [shape: f32[128,512], index: 1, kind: input, shape index: {}]
  %s2 = inlined_call_operand.vmem [shape: f32[1,512], index: 2, kind: input, shape index: {}]
  %s3 = inlined_call_operand.hbm [shape: f32[32,512], index: 3, kind: output, shape index: {}]
  %s4 = sld [smem:[#allocation0]]
  $region30: #{_lambda_.31} parent=0
    _
  %s6 = ssub.s32 1, %s4
  %s7 = scalar_select 0, %s6, %s4
  $region1: #{_lambda_.31} parent=0
    #allocation3 [shape = 'u8[65536]{0}', space=vmem, size = 0x10000, scoped, tag = 'output window, operand 0, single buffered']
    #allocation4 [shape = 's32[1]{0}', space=sflag, size = 0x4, scoped, tag = 'scoped memory for _lambda_.31']
    %8 = vsyncpa [#allocation4], 0
    // Predicated region
    $region2: #{_lambda_.31} parent=1 // pred_check
      _
    $region3: #{_lambda_.31} parent=1 // pred_check_branch
      %10 = sbr.rel (0) target = $region5
    $region4: #{_lambda_.31} parent=1 // pred_region
      _
    $region5: #{_lambda_.31} parent=1 // pred_fallthru
      _
    // Predicated region
    $region6: #{_lambda_.31} parent=1 // pred_check
      _
    $region7: #{_lambda_.31} parent=1 // pred_check_branch
      %12 = sbr.rel (0) target = $region9
    $region8: #{_lambda_.31} parent=1 // pred_region
      _
    $region9: #{_lambda_.31} parent=1 // pred_fallthru
      _
    // Predicated region
    $region10: #{_lambda_.31} parent=1 // pred_check
      _
    $region11: #{_lambda_.31} parent=1 // pred_check_branch
      %14 = sbr.rel (0) target = $region13
    $region12: #{_lambda_.31} parent=1 // pred_region
      _
    $region13: #{_lambda_.31} parent=1 // pred_fallthru
      _
    %p15 = scmp.eq.s32.totalorder 0, 0
    // Predicated region
    $region14: #{_lambda_.31} parent=1 // pred_check
      %p16 = pneg %p15
    $region15: #{_lambda_.31} parent=1 // pred_check_branch
      %18 = sbr.rel (%p16) target = $region17
    $region16: #{_lambda_.31} parent=1 // pred_region
      %19 = vst [vmem:[#allocation2] sm:$0xff] 0.0
      %20 = vst [vmem:[#allocation2 + $0x8] sm:$0xff] 0.0
      %21 = vst [vmem:[#allocation2 + $0x10] sm:$0xff] 0.0
      %22 = vst [vmem:[#allocation2 + $0x18] sm:$0xff] 0.0
      %23 = vst [vmem:[#allocation2 + $0x20] sm:$0xff] 0.0
      %24 = vst [vmem:[#allocation2 + $0x28] sm:$0xff] 0.0
      %25 = vst [vmem:[#allocation2 + $0x30] sm:$0xff] 0.0
      %26 = vst [vmem:[#allocation2 + $0x38] sm:$0xff] 0.0
      %27 = vst [vmem:[#allocation2 + $0x40] sm:$0xff] 0.0
      %28 = vst [vmem:[#allocation2 + $0x48] sm:$0xff] 0.0
      %29 = vst [vmem:[#allocation2 + $0x50] sm:$0xff] 0.0
      %30 = vst [vmem:[#allocation2 + $0x58] sm:$0xff] 0.0
      %31 = vst [vmem:[#allocation2 + $0x60] sm:$0xff] 0.0
      %32 = vst [vmem:[#allocation2 + $0x68] sm:$0xff] 0.0
      %33 = vst [vmem:[#allocation2 + $0x70] sm:$0xff] 0.0
      %34 = vst [vmem:[#allocation2 + $0x78] sm:$0xff] 0.0
    $region17: #{_lambda_.31} parent=1 // pred_fallthru
      _
    %v35 = vld [vmem:[#allocation2] sm:$0xff]
    %v36 = vld [vmem:[#allocation2 + $0x8] sm:$0xff]
    %v37 = vld [vmem:[#allocation2 + $0x10] sm:$0xff]
    %v38 = vld [vmem:[#allocation2 + $0x18] sm:$0xff]
    %v39 = vld [vmem:[#allocation2 + $0x20] sm:$0xff]
    %v40 = vld [vmem:[#allocation2 + $0x28] sm:$0xff]
    %v41 = vld [vmem:[#allocation2 + $0x30] sm:$0xff]
    %v42 = vld [vmem:[#allocation2 + $0x38] sm:$0xff]
    %v43 = vld [vmem:[#allocation2 + $0x40] sm:$0xff]
    %v44 = vld [vmem:[#allocation2 + $0x48] sm:$0xff]
    %v45 = vld [vmem:[#allocation2 + $0x50] sm:$0xff]
    %v46 = vld [vmem:[#allocation2 + $0x58] sm:$0xff]
    %v47 = vld [vmem:[#allocation2 + $0x60] sm:$0xff]
    %v48 = vld [vmem:[#allocation2 + $0x68] sm:$0xff]
    %v49 = vld [vmem:[#allocation2 + $0x70] sm:$0xff]
    %v50 = vld [vmem:[#allocation2 + $0x78] sm:$0xff]
    %v51 = vld [vmem:[%s0] sm:$0xff]
    %v52 = vld [vmem:[%s0 + $0x8] sm:$0xff]
    %v53 = vld [vmem:[%s0 + $0x10] sm:$0xff]
    %v54 = vld [vmem:[%s0 + $0x18] sm:$0xff]
    %v55 = vld [vmem:[%s1] sm:$0xff]
    %v56 = vld [vmem:[%s1 + $0x8] sm:$0xff]
    %v57 = vld [vmem:[%s1 + $0x10] sm:$0xff]
    %v58 = vld [vmem:[%s1 + $0x18] sm:$0xff]
    %v59 = vld [vmem:[%s1 + $0x20] sm:$0xff]
    %v60 = vld [vmem:[%s1 + $0x28] sm:$0xff]
    %v61 = vld [vmem:[%s1 + $0x30] sm:$0xff]
    %v62 = vld [vmem:[%s1 + $0x38] sm:$0xff]
    %v63 = vld [vmem:[%s1 + $0x40] sm:$0xff]
    %v64 = vld [vmem:[%s1 + $0x48] sm:$0xff]
    %v65 = vld [vmem:[%s1 + $0x50] sm:$0xff]
    %v66 = vld [vmem:[%s1 + $0x58] sm:$0xff]
    %v67 = vld [vmem:[%s1 + $0x60] sm:$0xff]
    %v68 = vld [vmem:[%s1 + $0x68] sm:$0xff]
    %v69 = vld [vmem:[%s1 + $0x70] sm:$0xff]
    %v70 = vld [vmem:[%s1 + $0x78] sm:$0xff]
    %v71 = vld [vmem:[%s1 + $0x80] sm:$0xff]
    %v72 = vld [vmem:[%s1 + $0x88] sm:$0xff]
    %v73 = vld [vmem:[%s1 + $0x90] sm:$0xff]
    %v74 = vld [vmem:[%s1 + $0x98] sm:$0xff]
    %v75 = vld [vmem:[%s1 + $0xa0] sm:$0xff]
    %v76 = vld [vmem:[%s1 + $0xa8] sm:$0xff]
    %v77 = vld [vmem:[%s1 + $0xb0] sm:$0xff]
    %v78 = vld [vmem:[%s1 + $0xb8] sm:$0xff]
    %v79 = vld [vmem:[%s1 + $0xc0] sm:$0xff]
    %v80 = vld [vmem:[%s1 + $0xc8] sm:$0xff]
    %v81 = vld [vmem:[%s1 + $0xd0] sm:$0xff]
    %v82 = vld [vmem:[%s1 + $0xd8] sm:$0xff]
    %v83 = vld [vmem:[%s1 + $0xe0] sm:$0xff]
    %v84 = vld [vmem:[%s1 + $0xe8] sm:$0xff]
    %v85 = vld [vmem:[%s1 + $0xf0] sm:$0xff]
    %v86 = vld [vmem:[%s1 + $0xf8] sm:$0xff]
    %v87 = vld [vmem:[%s1 + $0x100] sm:$0xff]
    %v88 = vld [vmem:[%s1 + $0x108] sm:$0xff]
    %v89 = vld [vmem:[%s1 + $0x110] sm:$0xff]
    %v90 = vld [vmem:[%s1 + $0x118] sm:$0xff]
    %v91 = vld [vmem:[%s1 + $0x120] sm:$0xff]
    %v92 = vld [vmem:[%s1 + $0x128] sm:$0xff]
    %v93 = vld [vmem:[%s1 + $0x130] sm:$0xff]
    %v94 = vld [vmem:[%s1 + $0x138] sm:$0xff]
    %v95 = vld [vmem:[%s1 + $0x140] sm:$0xff]
    %v96 = vld [vmem:[%s1 + $0x148] sm:$0xff]
    %v97 = vld [vmem:[%s1 + $0x150] sm:$0xff]
    %v98 = vld [vmem:[%s1 + $0x158] sm:$0xff]
    %v99 = vld [vmem:[%s1 + $0x160] sm:$0xff]
    %v100 = vld [vmem:[%s1 + $0x168] sm:$0xff]
    %v101 = vld [vmem:[%s1 + $0x170] sm:$0xff]
    %v102 = vld [vmem:[%s1 + $0x178] sm:$0xff]
    %v103 = vld [vmem:[%s1 + $0x180] sm:$0xff]
    %v104 = vld [vmem:[%s1 + $0x188] sm:$0xff]
    %v105 = vld [vmem:[%s1 + $0x190] sm:$0xff]
    %v106 = vld [vmem:[%s1 + $0x198] sm:$0xff]
    %v107 = vld [vmem:[%s1 + $0x1a0] sm:$0xff]
    %v108 = vld [vmem:[%s1 + $0x1a8] sm:$0xff]
    %v109 = vld [vmem:[%s1 + $0x1b0] sm:$0xff]
    %v110 = vld [vmem:[%s1 + $0x1b8] sm:$0xff]
    %v111 = vld [vmem:[%s1 + $0x1c0] sm:$0xff]
    %v112 = vld [vmem:[%s1 + $0x1c8] sm:$0xff]
    %v113 = vld [vmem:[%s1 + $0x1d0] sm:$0xff]
    %v114 = vld [vmem:[%s1 + $0x1d8] sm:$0xff]
    %v115 = vld [vmem:[%s1 + $0x1e0] sm:$0xff]
    %v116 = vld [vmem:[%s1 + $0x1e8] sm:$0xff]
    %v117 = vld [vmem:[%s1 + $0x1f0] sm:$0xff]
    %v118 = vld [vmem:[%s1 + $0x1f8] sm:$0xff]
    %119 = vmatprep.subr.mxu0 %v56
    %120 = vmatpush1.msra.mxu0 %v55
    %121 = vmatprep.subr.mxu0 %v60
    %122 = vmatpush1.msra.mxu0 %v59
    %123 = vmatprep.subr.mxu0 %v64
    %124 = vmatpush1.msra.mxu0 %v63
    %125 = vmatprep.subr.mxu0 %v68
    %126 = vmatpush1.msra.mxu0 %v67
    %127 = vmatprep.subr.mxu0 %v72
    %128 = vmatpush1.msra.mxu0 %v71
    %129 = vmatprep.subr.mxu0 %v76
    %130 = vmatpush1.msra.mxu0 %v75
    %131 = vmatprep.subr.mxu0 %v80
    %132 = vmatpush1.msra.mxu0 %v79
    %133 = vmatprep.subr.mxu0 %v84
    %134 = vmatpush1.msra.mxu0 %v83
    %135 = vmatprep.subr.mxu0 %v88
    %136 = vmatpush1.msra.mxu0 %v87
    %137 = vmatprep.subr.mxu0 %v92
    %138 = vmatpush1.msra.mxu0 %v91
    %139 = vmatprep.subr.mxu0 %v96
    %140 = vmatpush1.msra.mxu0 %v95
    %141 = vmatprep.subr.mxu0 %v100
    %142 = vmatpush1.msra.mxu0 %v99
    %143 = vmatprep.subr.mxu0 %v104
    %144 = vmatpush1.msra.mxu0 %v103
    %145 = vmatprep.subr.mxu0 %v108
    %146 = vmatpush1.msra.mxu0 %v107
    %147 = vmatprep.subr.mxu0 %v112
    %148 = vmatpush1.msra.mxu0 %v111
    %149 = vmatprep.subr.mxu0 %v116
    %150 = vmatpush1.msra.mxu0 %v115
    %151 = vmatprep.subr.mxu0 0.0
    %152 = vmatpush1.msra.mxu0 0.0
    %153 = vmatprep.subr.mxu0 0.0
    %154 = vmatpush1.msra.mxu0 0.0
    %155 = vmatprep.subr.mxu0 0.0
    %156 = vmatpush1.msra.mxu0 0.0
    %157 = vmatprep.subr.mxu0 0.0
    %158 = vmatpush1.msra.mxu0 0.0
    %159 = vmatprep.subr.mxu0 0.0
    %160 = vmatpush1.msra.mxu0 0.0
    %161 = vmatprep.subr.mxu0 0.0
    %162 = vmatpush1.msra.mxu0 0.0
    %163 = vmatprep.subr.mxu0 0.0
    %164 = vmatpush1.msra.mxu0 0.0
    %165 = vmatprep.subr.mxu0 0.0
    %166 = vmatpush1.msra.mxu0 0.0
    %167 = vmatprep.subr.mxu0 0.0
    %168 = vmatpush1.msra.mxu0 0.0
    %169 = vmatprep.subr.mxu0 0.0
    %170 = vmatpush1.msra.mxu0 0.0
    %171 = vmatprep.subr.mxu0 0.0
    %172 = vmatpush1.msra.mxu0 0.0
    %173 = vmatprep.subr.mxu0 0.0
    %174 = vmatpush1.msra.mxu0 0.0
    %175 = vmatprep.subr.mxu0 0.0
    %176 = vmatpush1.msra.mxu0 0.0
    %177 = vmatprep.subr.mxu0 0.0
    %178 = vmatpush1.msra.mxu0 0.0
    %179 = vmatprep.subr.mxu0 0.0
    %180 = vmatpush1.msra.mxu0 0.0
    %181 = vmatprep.subr.mxu0 0.0
    %182 = vmatpush1.msra.mxu0 0.0
    %183 = vmatprep.mubr.f32.mxu0 0.0
    %184 = vmatmul.mubr.f32.gmra.mrb[0].mxu0 %v51
    %v185 = vpop.f32.mrb[0].mxu0
    %v186 = vadd.f32 0.0, %v185
    %v187 = vpop.f32.mrb[0].mxu0
    %v188 = vadd.f32 0.0, %v187
    %189 = vmatprep.mubr.f32.mxu0 0.0
    %190 = vmatmul.mubr.f32.gmra.mrb[0].mxu0 %v52
    %v191 = vpop.f32.mrb[0].mxu0
    %v192 = vadd.f32 0.0, %v191
    %v193 = vpop.f32.mrb[0].mxu0
    %v194 = vadd.f32 0.0, %v193
    %195 = vmatprep.mubr.f32.mxu0 0.0
    %196 = vmatmul.mubr.f32.gmra.mrb[0].mxu0 %v53
    %v197 = vpop.f32.mrb[0].mxu0
    %v198 = vadd.f32 0.0, %v197
    %v199 = vpop.f32.mrb[0].mxu0
    %v200 = vadd.f32 0.0, %v199
    %201 = vmatprep.mubr.f32.mxu0 0.0
    %202 = vmatmul.mubr.f32.gmra.mrb[0].mxu0 %v54
    %v203 = vpop.f32.mrb[0].mxu0
    %v204 = vadd.f32 0.0, %v203
    %v205 = vpop.f32.mrb[0].mxu0
    %v206 = vadd.f32 0.0, %v205
    %207 = vdwg.mxu0
    %208 = vmatprep.subr.mxu0 %v58
    %209 = vmatpush1.msra.mxu0 %v57
    %210 = vmatprep.subr.mxu0 %v62
    %211 = vmatpush1.msra.mxu0 %v61
    %212 = vmatprep.subr.mxu0 %v66
    %213 = vmatpush1.msra.mxu0 %v65
    %214 = vmatprep.subr.mxu0 %v70
    %215 = vmatpush1.msra.mxu0 %v69
    %216 = vmatprep.subr.mxu0 %v74
    %217 = vmatpush1.msra.mxu0 %v73
    %218 = vmatprep.subr.mxu0 %v78
    %219 = vmatpush1.msra.mxu0 %v77
    %220 = vmatprep.subr.mxu0 %v82
    %221 = vmatpush1.msra.mxu0 %v81
    %222 = vmatprep.subr.mxu0 %v86
    %223 = vmatpush1.msra.mxu0 %v85
    %224 = vmatprep.subr.mxu0 %v90
    %225 = vmatpush1.msra.mxu0 %v89
    %226 = vmatprep.subr.mxu0 %v94
    %227 = vmatpush1.msra.mxu0 %v93
    %228 = vmatprep.subr.mxu0 %v98
    %229 = vmatpush1.msra.mxu0 %v97
    %230 = vmatprep.subr.mxu0 %v102
    %231 = vmatpush1.msra.mxu0 %v101
    %232 = vmatprep.subr.mxu0 %v106
    %233 = vmatpush1.msra.mxu0 %v105
    %234 = vmatprep.subr.mxu0 %v110
    %235 = vmatpush1.msra.mxu0 %v109
    %236 = vmatprep.subr.mxu0 %v114
    %237 = vmatpush1.msra.mxu0 %v113
    %238 = vmatprep.subr.mxu0 %v118
    %239 = vmatpush1.msra.mxu0 %v117
    %240 = vmatprep.subr.mxu0 0.0
    %241 = vmatpush1.msra.mxu0 0.0
    %242 = vmatprep.subr.mxu0 0.0
    %243 = vmatpush1.msra.mxu0 0.0
    %244 = vmatprep.subr.mxu0 0.0
    %245 = vmatpush1.msra.mxu0 0.0
    %246 = vmatprep.subr.mxu0 0.0
    %247 = vmatpush1.msra.mxu0 0.0
    %248 = vmatprep.subr.mxu0 0.0
    %249 = vmatpush1.msra.mxu0 0.0
    %250 = vmatprep.subr.mxu0 0.0
    %251 = vmatpush1.msra.mxu0 0.0
    %252 = vmatprep.subr.mxu0 0.0
    %253 = vmatpush1.msra.mxu0 0.0
    %254 = vmatprep.subr.mxu0 0.0
    %255 = vmatpush1.msra.mxu0 0.0
    %256 = vmatprep.subr.mxu0 0.0
    %257 = vmatpush1.msra.mxu0 0.0
    %258 = vmatprep.subr.mxu0 0.0
    %259 = vmatpush1.msra.mxu0 0.0
    %260 = vmatprep.subr.mxu0 0.0
    %261 = vmatpush1.msra.mxu0 0.0
    %262 = vmatprep.subr.mxu0 0.0
    %263 = vmatpush1.msra.mxu0 0.0
    %264 = vmatprep.subr.mxu0 0.0
    %265 = vmatpush1.msra.mxu0 0.0
    %266 = vmatprep.subr.mxu0 0.0
    %267 = vmatpush1.msra.mxu0 0.0
    %268 = vmatprep.subr.mxu0 0.0
    %269 = vmatpush1.msra.mxu0 0.0
    %270 = vmatprep.subr.mxu0 0.0
    %271 = vmatpush1.msra.mxu0 0.0
    %272 = vmatprep.mubr.f32.mxu0 0.0
    %273 = vmatmul.mubr.f32.gmra.mrb[0].mxu0 %v51
    %v274 = vpop.f32.mrb[0].mxu0
    %v275 = vadd.f32 0.0, %v274
    %v276 = vpop.f32.mrb[0].mxu0
    %v277 = vadd.f32 0.0, %v276
    %278 = vmatprep.mubr.f32.mxu0 0.0
    %279 = vmatmul.mubr.f32.gmra.mrb[0].mxu0 %v52
    %v280 = vpop.f32.mrb[0].mxu0
    %v281 = vadd.f32 0.0, %v280
    %v282 = vpop.f32.mrb[0].mxu0
    %v283 = vadd.f32 0.0, %v282
    %284 = vmatprep.mubr.f32.mxu0 0.0
    %285 = vmatmul.mubr.f32.gmra.mrb[0].mxu0 %v53
    %v286 = vpop.f32.mrb[0].mxu0
    %v287 = vadd.f32 0.0, %v286
    %v288 = vpop.f32.mrb[0].mxu0
    %v289 = vadd.f32 0.0, %v288
    %290 = vmatprep.mubr.f32.mxu0 0.0
    %291 = vmatmul.mubr.f32.gmra.mrb[0].mxu0 %v54
    %v292 = vpop.f32.mrb[0].mxu0
    %v293 = vadd.f32 0.0, %v292
    %v294 = vpop.f32.mrb[0].mxu0
    %v295 = vadd.f32 0.0, %v294
    %296 = vdwg.mxu0
    %v297 = vadd.f32 %v35, %v186
    %v298 = vadd.f32 %v36, %v188
    %v299 = vadd.f32 %v37, %v275
    %v300 = vadd.f32 %v38, %v277
    %v301 = vadd.f32 %v39, %v192
    %v302 = vadd.f32 %v40, %v194
    %v303 = vadd.f32 %v41, %v281
    %v304 = vadd.f32 %v42, %v283
    %v305 = vadd.f32 %v43, %v198
    %v306 = vadd.f32 %v44, %v200
    %v307 = vadd.f32 %v45, %v287
    %v308 = vadd.f32 %v46, %v289
    %v309 = vadd.f32 %v47, %v204
    %v310 = vadd.f32 %v48, %v206
    %v311 = vadd.f32 %v49, %v293
    %v312 = vadd.f32 %v50, %v295
    %313 = vst [vmem:[#allocation2] sm:$0xff] %v297
    %314 = vst [vmem:[#allocation2 + $0x8] sm:$0xff] %v298
    %315 = vst [vmem:[#allocation2 + $0x10] sm:$0xff] %v299
    %316 = vst [vmem:[#allocation2 + $0x18] sm:$0xff] %v300
    %317 = vst [vmem:[#allocation2 + $0x20] sm:$0xff] %v301
    %318 = vst [vmem:[#allocation2 + $0x28] sm:$0xff] %v302
    %319 = vst [vmem:[#allocation2 + $0x30] sm:$0xff] %v303
    %320 = vst [vmem:[#allocation2 + $0x38] sm:$0xff] %v304
    %321 = vst [vmem:[#allocation2 + $0x40] sm:$0xff] %v305
    %322 = vst [vmem:[#allocation2 + $0x48] sm:$0xff] %v306
    %323 = vst [vmem:[#allocation2 + $0x50] sm:$0xff] %v307
    %324 = vst [vmem:[#allocation2 + $0x58] sm:$0xff] %v308
    %325 = vst [vmem:[#allocation2 + $0x60] sm:$0xff] %v309
    %326 = vst [vmem:[#allocation2 + $0x68] sm:$0xff] %v310
    %327 = vst [vmem:[#allocation2 + $0x70] sm:$0xff] %v311
    %328 = vst [vmem:[#allocation2 + $0x78] sm:$0xff] %v312
    // Predicated region
    $region18: #{_lambda_.31} parent=1 // pred_check
      %p329 = pneg %p15
    $region19: #{_lambda_.31} parent=1 // pred_check_branch
      %331 = sbr.rel (%p329) target = $region21
    $region20: #{_lambda_.31} parent=1 // pred_region
      %v332 = vld [vmem:[#allocation2] sm:$0xff]
      %v333 = vld [vmem:[#allocation2 + $0x8] sm:$0xff]
      %v334 = vld [vmem:[#allocation2 + $0x10] sm:$0xff]
      %v335 = vld [vmem:[#allocation2 + $0x18] sm:$0xff]
      %v336 = vld [vmem:[#allocation2 + $0x20] sm:$0xff]
      %v337 = vld [vmem:[#allocation2 + $0x28] sm:$0xff]
      %v338 = vld [vmem:[#allocation2 + $0x30] sm:$0xff]
      %v339 = vld [vmem:[#allocation2 + $0x38] sm:$0xff]
      %v340 = vld [vmem:[#allocation2 + $0x40] sm:$0xff]
      %v341 = vld [vmem:[#allocation2 + $0x48] sm:$0xff]
      %v342 = vld [vmem:[#allocation2 + $0x50] sm:$0xff]
      %v343 = vld [vmem:[#allocation2 + $0x58] sm:$0xff]
      %v344 = vld [vmem:[#allocation2 + $0x60] sm:$0xff]
      %v345 = vld [vmem:[#allocation2 + $0x68] sm:$0xff]
      %v346 = vld [vmem:[#allocation2 + $0x70] sm:$0xff]
      %v347 = vld [vmem:[#allocation2 + $0x78] sm:$0xff]
      %v348 = vld [vmem:[%s2] sm:$0xf]
      %v350 = vlaneseq
      %v351 = vshrl.u32 %v350, 7
      %v352 = vsub.s32 0, %v351
      %v353 = vrot.slane %v348, %v352
      %v354 = vlaneseq
      %v355 = vshrl.u32 %v354, 7
      %v356 = vsub.s32 1, %v355
      %v357 = vrot.slane %v348, %v356
      %v358 = vlaneseq
      %v359 = vshrl.u32 %v358, 7
      %v360 = vsub.s32 2, %v359
      %v361 = vrot.slane %v348, %v360
      %v362 = vlaneseq
      %v363 = vshrl.u32 %v362, 7
      %v364 = vsub.s32 3, %v363
      %v365 = vrot.slane %v348, %v364
      %v370 = vadd.f32 %v332, %v353
      %v371 = vadd.f32 %v333, %v357
      %v372 = vadd.f32 %v334, %v361
      %v373 = vadd.f32 %v335, %v365
      %v374 = vadd.f32 %v336, %v353
      %v375 = vadd.f32 %v337, %v357
      %v376 = vadd.f32 %v338, %v361
      %v377 = vadd.f32 %v339, %v365
      %v378 = vadd.f32 %v340, %v353
      %v379 = vadd.f32 %v341, %v357
      %v380 = vadd.f32 %v342, %v361
      %v381 = vadd.f32 %v343, %v365
      %v382 = vadd.f32 %v344, %v353
      %v383 = vadd.f32 %v345, %v357
      %v384 = vadd.f32 %v346, %v361
      %v385 = vadd.f32 %v347, %v365
      %386 = vst [vmem:[#allocation3] sm:$0xff] %v370
      %387 = vst [vmem:[#allocation3 + $0x8] sm:$0xff] %v371
      %388 = vst [vmem:[#allocation3 + $0x10] sm:$0xff] %v372
      %389 = vst [vmem:[#allocation3 + $0x18] sm:$0xff] %v373
      %390 = vst [vmem:[#allocation3 + $0x20] sm:$0xff] %v374
      %391 = vst [vmem:[#allocation3 + $0x28] sm:$0xff] %v375
      %392 = vst [vmem:[#allocation3 + $0x30] sm:$0xff] %v376
      %393 = vst [vmem:[#allocation3 + $0x38] sm:$0xff] %v377
      %394 = vst [vmem:[#allocation3 + $0x40] sm:$0xff] %v378
      %395 = vst [vmem:[#allocation3 + $0x48] sm:$0xff] %v379
      %396 = vst [vmem:[#allocation3 + $0x50] sm:$0xff] %v380
      %397 = vst [vmem:[#allocation3 + $0x58] sm:$0xff] %v381
      %398 = vst [vmem:[#allocation3 + $0x60] sm:$0xff] %v382
      %399 = vst [vmem:[#allocation3 + $0x68] sm:$0xff] %v383
      %400 = vst [vmem:[#allocation3 + $0x70] sm:$0xff] %v384
      %401 = vst [vmem:[#allocation3 + $0x78] sm:$0xff] %v385
    $region21: #{_lambda_.31} parent=1 // pred_fallthru
      _
    // Predicated region
    $region22: #{_lambda_.31} parent=1 // pred_check
      _
    $region23: #{_lambda_.31} parent=1 // pred_check_branch
      %403 = sbr.rel (0) target = $region25
    $region24: #{_lambda_.31} parent=1 // pred_region
      %s405 = ssub.s32 2048, 2048
      %406 = vsyncadd [#allocation4], %s405
      %s407 = sshll.u32 [#allocation3], 4
      %s408 = int_to_ptr.vmem [resolvable:$true] %s407
      %413 = dma.vmem_to_hbm [thread:$0]  %s408, 2048, %s3, [#allocation4], 512, 512, 32
    $region25: #{_lambda_.31} parent=1 // pred_fallthru
      _
    // Predicated region
    $region26: #{_lambda_.31} parent=1 // pred_check
      _
    $region27: #{_lambda_.31} parent=1 // pred_check_branch
      %415 = sbr.rel (0) target = $region29
    $region28: #{_lambda_.31} parent=1 // pred_region
      %416 = dma.done [#allocation4], 2048
    $region29: #{_lambda_.31} parent=1 // pred_fallthru
      _
    %417 = vsyncpa [#allocation4], 1

</llo_original>
